<compile_context>
chip_gen: v7x
topology: tpu7x:2x2x1
jax: 0.10.0
libtpu: 0.0.40
codegen_flags: <defaults>
</compile_context>

<pallas_src>
import functools

import jax
import jax.numpy as jnp
from jax import lax
from jax.experimental import pallas as pl
from jax.experimental.pallas import tpu as pltpu


def _conv_out_len(l, k=4, s=2, p=2):
    return (l + 2 * p - k) // s + 1


def _convT_out_len(l, k=4, s=2, p=2):
    return (l - 1) * s - 2 * p + k


# ---------------------------------------------------------------------------
# Fused kernel: one grid step == one batch element, all four layers back-to-back.
# ---------------------------------------------------------------------------
def _lis2img_fused_kernel(x_ref, w1_ref, b1_ref, w2_ref, b2_ref,
                          w3_ref, b3_ref, w4_ref, b4_ref, o_ref, *, lengths):
    L0, L1, L2, L3, L4 = lengths
    f32, bf16 = jnp.float32, jnp.bfloat16

    def tap_matrix(l_in, l_out, k, transposed, stride=2, pad=2):
        # 0/1 selection matrix built from 2-D iota (exact in bf16).
        rows = lax.broadcasted_iota(jnp.int32, (l_in, l_out), 0)
        cols = lax.broadcasted_iota(jnp.int32, (l_in, l_out), 1)
        if transposed:   # ConvTranspose1d: scatter input u to output column j
            cond = cols == stride * rows + (k - pad)
        else:            # Conv1d: gather input row j for output column m
            cond = rows == stride * cols + (k - pad)
        return jnp.where(cond, 1.0, 0.0).astype(bf16)

    def layer(x_bf, wk_ref, bias_ref, l_in, l_out, transposed, relu):
        acc = bias_ref[...]                                       # (Cout, 1) f32, lane-broadcasts
        for k in range(4):
            g = tap_matrix(l_in, l_out, k, transposed)            # (l_in, l_out) bf16
            tap = jnp.dot(x_bf, g,
                          preferred_element_type=f32).astype(bf16)     # (Cin,  l_out) exact
            acc = acc + jnp.dot(wk_ref[k], tap,
                                preferred_element_type=f32)            # (Cout, l_out) f32 acc
        if relu:
            acc = jnp.maximum(acc, 0.0)
        return acc

    x0 = x_ref[...]                                                     # (64, L0) bf16
    y1 = layer(x0, w1_ref, b1_ref, L0, L1, False, True).astype(bf16)    # (32, L1)
    y2 = layer(y1, w2_ref, b2_ref, L1, L2, False, True).astype(bf16)    # (32, L2)
    y3 = layer(y2, w3_ref, b3_ref, L2, L3, True,  True).astype(bf16)    # (32, L3)
    y4 = layer(y3, w4_ref, b4_ref, L3, L4, True,  False)                # (64, L4) f32
    o_ref[...] = y4.astype(o_ref.dtype)


# ---------------------------------------------------------------------------
# Full module forward (NCL in, NCL out — matches PyTorch)
# ---------------------------------------------------------------------------
def lis2img_forward(x, pk):
    N, Cin, L0 = x.shape                 # Cin must be 64 (Conv1d(64, ...))
    L1 = _conv_out_len(L0)
    L2 = _conv_out_len(L1)
    L3 = _convT_out_len(L2)
    L4 = _convT_out_len(L3)
    kernel = functools.partial(_lis2img_fused_kernel, lengths=(L0, L1, L2, L3, L4))

    return pl.pallas_call(
        kernel,
        out_shape=jax.ShapeDtypeStruct((N, 64, L4), jnp.float32),
        grid_spec=pltpu.PrefetchScalarGridSpec(
            num_scalar_prefetch=0,
            grid=(N,),   # batch axis; with N>=2 both v7x TensorCores get work
            in_specs=[
                pl.BlockSpec((None, Cin, L0), lambda n: (n, 0, 0)),   # activations
                pl.BlockSpec((4, 32, 64), lambda n: (0, 0, 0)),       # enc1 W (resident)
                pl.BlockSpec((32, 1), lambda n: (0, 0)),              # enc1 b
                pl.BlockSpec((4, 32, 32), lambda n: (0, 0, 0)),       # enc2 W
                pl.BlockSpec((32, 1), lambda n: (0, 0)),              # enc2 b
                pl.BlockSpec((4, 32, 32), lambda n: (0, 0, 0)),       # dec1 W
                pl.BlockSpec((32, 1), lambda n: (0, 0)),              # dec1 b
                pl.BlockSpec((4, 64, 32), lambda n: (0, 0, 0)),       # dec2 W
                pl.BlockSpec((64, 1), lambda n: (0, 0)),              # dec2 b
            ],
            out_specs=pl.BlockSpec((None, 64, L4), lambda n: (n, 0, 0)),
        ),
        compiler_params=pltpu.CompilerParams(
            dimension_semantics=("parallel",)),
    )(x.astype(jnp.bfloat16),            # cast once; the only XLA-side op
      pk["enc1_w"], pk["enc1_b"], pk["enc2_w"], pk["enc2_b"],
      pk["dec1_w"], pk["dec1_b"], pk["dec2_w"], pk["dec2_b"])


# ---------------------------------------------------------------------------
# Parameter handling
# ---------------------------------------------------------------------------
def init_params(key):
    """Raw parameters in PyTorch layouts (Conv1d: (Cout,Cin,K); ConvT1d: (Cin,Cout,K))."""
    ks = jax.random.split(key, 8)

    def u(k, shape, fan_in):
        bound = 1.0 / jnp.sqrt(fan_in)
        return jax.random.uniform(k, shape, jnp.float32, -bound, bound)

    return {
        "enc1_w": u(ks[0], (32, 64, 4), 64 * 4), "enc1_b": u(ks[1], (32,), 64 * 4),
        "enc2_w": u(ks[2], (32, 32, 4), 32 * 4), "enc2_b": u(ks[3], (32,), 32 * 4),
        "dec1_w": u(ks[4], (32, 32, 4), 32 * 4), "dec1_b": u(ks[5], (32,), 32 * 4),
        "dec2_w": u(ks[6], (32, 64, 4), 32 * 4), "dec2_b": u(ks[7], (64,), 32 * 4),
    }


def pack_params(p):
    """One-time repack: per-tap bf16 weights (K, Cout, Cin), column-shaped f32 biases."""
    def conv_w(w):      # torch Conv1d weight (Cout, Cin, K) -> (K, Cout, Cin)
        return jnp.transpose(w, (2, 0, 1)).astype(jnp.bfloat16)

    def convT_w(w):     # torch ConvTranspose1d weight (Cin, Cout, K) -> (K, Cout, Cin)
        return jnp.transpose(w, (2, 1, 0)).astype(jnp.bfloat16)

    def b_col(b):
        return b.reshape(-1, 1).astype(jnp.float32)

    return {
        "enc1_w": conv_w(p["enc1_w"]), "enc1_b": b_col(p["enc1_b"]),
        "enc2_w": conv_w(p["enc2_w"]), "enc2_b": b_col(p["enc2_b"]),
        "dec1_w": convT_w(p["dec1_w"]), "dec1_b": b_col(p["dec1_b"]),
        "dec2_w": convT_w(p["dec2_w"]), "dec2_b": b_col(p["dec2_b"]),
    }


# ---------------------------------------------------------------------------
# Pure-JAX reference (f32 lax convs) for a correctness sanity check
# ---------------------------------------------------------------------------
def _ref_forward(x_ncl, p):
    dn = ("NCH", "OIH", "NCH")

    def conv(x, w, b, stride, pad):
        y = lax.conv_general_dilated(x, w, (stride,), [(pad, pad)], dimension_numbers=dn)
        return y + b[None, :, None]

    def convT(x, w_iok, b, stride, pad):
        K = w_iok.shape[2]
        w_conv = jnp.transpose(jnp.flip(w_iok, axis=2), (1, 0, 2))
        y = lax.conv_general_dilated(x, w_conv, (1,), [(K - 1 - pad,) * 2],
                                     lhs_dilation=(stride,), dimension_numbers=dn)
        return y + b[None, :, None]

    x = jax.nn.relu(conv(x_ncl, p["enc1_w"], p["enc1_b"], 2, 2))
    x = jax.nn.relu(conv(x, p["enc2_w"], p["enc2_b"], 2, 2))
    x = jax.nn.relu(convT(x, p["dec1_w"], p["dec1_b"], 2, 2))
    x = convT(x, p["dec2_w"], p["dec2_b"], 2, 2)
    return x


if __name__ == "__main__":
    key = jax.random.PRNGKey(0)
    kx, kp = jax.random.split(key)

    N, C, L = 2, 64, 16                  # Conv1d(64, ...) requires 64 input channels
    x = jax.random.normal(kx, (N, C, L), jnp.float32)
    params = init_params(kp)
    packed = pack_params(params)

    fwd = jax.jit(lis2img_forward)
    out = jax.block_until_ready(fwd(x, packed))
    ref = jax.block_until_ready(_ref_forward(x, params))

    # expected PyTorch lengths: 16 -> 9 -> 5 -> 8 -> 14
    assert out.shape == (N, 64, 14), out.shape
    max_err = float(jnp.max(jnp.abs(out - ref)))
    # bf16 weights + bf16 layer-boundary activations -> loosened tolerance
    assert jnp.allclose(out, ref, atol=2e-2, rtol=2e-2), max_err

    print("KERNEL_OK")
</pallas_src>

<mosaic_0001>
module attributes {stable_mosaic.version = 11 : i64} {
  func.func @_lis2img_fused_kernel(%arg0: i32, %arg1: memref<1x64x16xbf16, #tpu.memory_space<vmem>>, %arg2: memref<4x32x64xbf16, #tpu.memory_space<vmem>>, %arg3: memref<32x1xf32, #tpu.memory_space<vmem>>, %arg4: memref<4x32x32xbf16, #tpu.memory_space<vmem>>, %arg5: memref<32x1xf32, #tpu.memory_space<vmem>>, %arg6: memref<4x32x32xbf16, #tpu.memory_space<vmem>>, %arg7: memref<32x1xf32, #tpu.memory_space<vmem>>, %arg8: memref<4x64x32xbf16, #tpu.memory_space<vmem>>, %arg9: memref<64x1xf32, #tpu.memory_space<vmem>>, %arg10: memref<1x64x14xf32, #tpu.memory_space<vmem>>) attributes {dimension_semantics = [#tpu.dimension_semantics<parallel>], iteration_bounds = array<i64: 2>, scalar_prefetch = 0 : i64, scratch_operands = 0 : i64, tpu.core_type = #tpu.core_type<tc>, window_params = [{transform_indices = @transform_0, window_bounds = array<i64: 1, 64, 16>}, {pipeline_mode = #tpu.pipeline_mode<synchronous>, transform_indices = @transform_1, window_bounds = array<i64: 4, 32, 64>}, {pipeline_mode = #tpu.pipeline_mode<synchronous>, transform_indices = @transform_2, window_bounds = array<i64: 32, 1>}, {pipeline_mode = #tpu.pipeline_mode<synchronous>, transform_indices = @transform_3, window_bounds = array<i64: 4, 32, 32>}, {pipeline_mode = #tpu.pipeline_mode<synchronous>, transform_indices = @transform_4, window_bounds = array<i64: 32, 1>}, {pipeline_mode = #tpu.pipeline_mode<synchronous>, transform_indices = @transform_5, window_bounds = array<i64: 4, 32, 32>}, {pipeline_mode = #tpu.pipeline_mode<synchronous>, transform_indices = @transform_6, window_bounds = array<i64: 32, 1>}, {pipeline_mode = #tpu.pipeline_mode<synchronous>, transform_indices = @transform_7, window_bounds = array<i64: 4, 64, 32>}, {pipeline_mode = #tpu.pipeline_mode<synchronous>, transform_indices = @transform_8, window_bounds = array<i64: 64, 1>}, {transform_indices = @transform_9, window_bounds = array<i64: 1, 64, 14>}]} {
    %c0 = arith.constant 0 : index
    %c0_0 = arith.constant 0 : index
    %c0_1 = arith.constant 0 : index
    %0 = vector.load %arg1[%c0, %c0_0, %c0_1] : memref<1x64x16xbf16, #tpu.memory_space<vmem>>, vector<1x64x16xbf16>
    %1 = vector.shape_cast %0 : vector<1x64x16xbf16> to vector<64x16xbf16>
    %c0_2 = arith.constant 0 : index
    %c0_3 = arith.constant 0 : index
    %2 = vector.load %arg3[%c0_2, %c0_3] : memref<32x1xf32, #tpu.memory_space<vmem>>, vector<32x1xf32>
    %3 = tpu.iota {dimensions = array<i32: 0>} : vector<16x9xi32>
    %4 = tpu.iota {dimensions = array<i32: 1>} : vector<16x9xi32>
    %c2_i32 = arith.constant 2 : i32
    %5 = vector.broadcast %c2_i32 : i32 to vector<16x9xi32>
    %6 = arith.muli %5, %4 : vector<16x9xi32>
    %c-2_i32 = arith.constant -2 : i32
    %7 = vector.broadcast %c-2_i32 : i32 to vector<16x9xi32>
    %8 = arith.addi %6, %7 : vector<16x9xi32>
    %9 = arith.cmpi eq, %3, %8 : vector<16x9xi32>
    %cst = arith.constant 1.000000e+00 : f32
    %cst_4 = arith.constant 0.000000e+00 : f32
    %10 = vector.broadcast %cst : f32 to vector<16x9xf32>
    %11 = vector.broadcast %cst_4 : f32 to vector<16x9xf32>
    %12 = arith.select %9, %10, %11 : vector<16x9xi1>, vector<16x9xf32>
    %13 = arith.truncf %12 : vector<16x9xf32> to vector<16x9xbf16>
    %cst_5 = arith.constant dense<0.000000e+00> : vector<64x9xf32>
    %14 = tpu.matmul %1, %13, %cst_5 {dimension_numbers = #tpu.dot_dimension_numbers<[1], [0], [0], [1], [0, 0, 1, 1], [], []>} : vector<64x16xbf16>, vector<16x9xbf16>, vector<64x9xf32> -> vector<64x9xf32>
    %15 = arith.truncf %14 : vector<64x9xf32> to vector<64x9xbf16>
    %c0_6 = arith.constant 0 : index
    %c0_7 = arith.constant 0 : index
    %c0_8 = arith.constant 0 : index
    %16 = vector.load %arg2[%c0_6, %c0_7, %c0_8] : memref<4x32x64xbf16, #tpu.memory_space<vmem>>, vector<1x32x64xbf16>
    %17 = vector.shape_cast %16 : vector<1x32x64xbf16> to vector<32x64xbf16>
    %cst_9 = arith.constant dense<0.000000e+00> : vector<32x9xf32>
    %18 = tpu.matmul %17, %15, %cst_9 {dimension_numbers = #tpu.dot_dimension_numbers<[1], [0], [0], [1], [0, 0, 1, 1], [], []>} : vector<32x64xbf16>, vector<64x9xbf16>, vector<32x9xf32> -> vector<32x9xf32>
    %19 = vector.broadcast %2 : vector<32x1xf32> to vector<32x9xf32>
    %20 = arith.addf %19, %18 : vector<32x9xf32>
    %21 = tpu.iota {dimensions = array<i32: 0>} : vector<16x9xi32>
    %22 = tpu.iota {dimensions = array<i32: 1>} : vector<16x9xi32>
    %c2_i32_10 = arith.constant 2 : i32
    %23 = vector.broadcast %c2_i32_10 : i32 to vector<16x9xi32>
    %24 = arith.muli %23, %22 : vector<16x9xi32>
    %c-1_i32 = arith.constant -1 : i32
    %25 = vector.broadcast %c-1_i32 : i32 to vector<16x9xi32>
    %26 = arith.addi %24, %25 : vector<16x9xi32>
    %27 = arith.cmpi eq, %21, %26 : vector<16x9xi32>
    %cst_11 = arith.constant 1.000000e+00 : f32
    %cst_12 = arith.constant 0.000000e+00 : f32
    %28 = vector.broadcast %cst_11 : f32 to vector<16x9xf32>
    %29 = vector.broadcast %cst_12 : f32 to vector<16x9xf32>
    %30 = arith.select %27, %28, %29 : vector<16x9xi1>, vector<16x9xf32>
    %31 = arith.truncf %30 : vector<16x9xf32> to vector<16x9xbf16>
    %cst_13 = arith.constant dense<0.000000e+00> : vector<64x9xf32>
    %32 = tpu.matmul %1, %31, %cst_13 {dimension_numbers = #tpu.dot_dimension_numbers<[1], [0], [0], [1], [0, 0, 1, 1], [], []>} : vector<64x16xbf16>, vector<16x9xbf16>, vector<64x9xf32> -> vector<64x9xf32>
    %33 = arith.truncf %32 : vector<64x9xf32> to vector<64x9xbf16>
    %c1 = arith.constant 1 : index
    %c0_14 = arith.constant 0 : index
    %c0_15 = arith.constant 0 : index
    %34 = vector.load %arg2[%c1, %c0_14, %c0_15] : memref<4x32x64xbf16, #tpu.memory_space<vmem>>, vector<1x32x64xbf16>
    %35 = vector.shape_cast %34 : vector<1x32x64xbf16> to vector<32x64xbf16>
    %cst_16 = arith.constant dense<0.000000e+00> : vector<32x9xf32>
    %36 = tpu.matmul %35, %33, %cst_16 {dimension_numbers = #tpu.dot_dimension_numbers<[1], [0], [0], [1], [0, 0, 1, 1], [], []>} : vector<32x64xbf16>, vector<64x9xbf16>, vector<32x9xf32> -> vector<32x9xf32>
    %37 = arith.addf %20, %36 : vector<32x9xf32>
    %38 = tpu.iota {dimensions = array<i32: 0>} : vector<16x9xi32>
    %39 = tpu.iota {dimensions = array<i32: 1>} : vector<16x9xi32>
    %c2_i32_17 = arith.constant 2 : i32
    %40 = vector.broadcast %c2_i32_17 : i32 to vector<16x9xi32>
    %41 = arith.muli %40, %39 : vector<16x9xi32>
    %c0_i32 = arith.constant 0 : i32
    %42 = vector.broadcast %c0_i32 : i32 to vector<16x9xi32>
    %43 = arith.addi %41, %42 : vector<16x9xi32>
    %44 = arith.cmpi eq, %38, %43 : vector<16x9xi32>
    %cst_18 = arith.constant 1.000000e+00 : f32
    %cst_19 = arith.constant 0.000000e+00 : f32
    %45 = vector.broadcast %cst_18 : f32 to vector<16x9xf32>
    %46 = vector.broadcast %cst_19 : f32 to vector<16x9xf32>
    %47 = arith.select %44, %45, %46 : vector<16x9xi1>, vector<16x9xf32>
    %48 = arith.truncf %47 : vector<16x9xf32> to vector<16x9xbf16>
    %cst_20 = arith.constant dense<0.000000e+00> : vector<64x9xf32>
    %49 = tpu.matmul %1, %48, %cst_20 {dimension_numbers = #tpu.dot_dimension_numbers<[1], [0], [0], [1], [0, 0, 1, 1], [], []>} : vector<64x16xbf16>, vector<16x9xbf16>, vector<64x9xf32> -> vector<64x9xf32>
    %50 = arith.truncf %49 : vector<64x9xf32> to vector<64x9xbf16>
    %c2 = arith.constant 2 : index
    %c0_21 = arith.constant 0 : index
    %c0_22 = arith.constant 0 : index
    %51 = vector.load %arg2[%c2, %c0_21, %c0_22] : memref<4x32x64xbf16, #tpu.memory_space<vmem>>, vector<1x32x64xbf16>
    %52 = vector.shape_cast %51 : vector<1x32x64xbf16> to vector<32x64xbf16>
    %cst_23 = arith.constant dense<0.000000e+00> : vector<32x9xf32>
    %53 = tpu.matmul %52, %50, %cst_23 {dimension_numbers = #tpu.dot_dimension_numbers<[1], [0], [0], [1], [0, 0, 1, 1], [], []>} : vector<32x64xbf16>, vector<64x9xbf16>, vector<32x9xf32> -> vector<32x9xf32>
    %54 = arith.addf %37, %53 : vector<32x9xf32>
    %55 = tpu.iota {dimensions = array<i32: 0>} : vector<16x9xi32>
    %56 = tpu.iota {dimensions = array<i32: 1>} : vector<16x9xi32>
    %c2_i32_24 = arith.constant 2 : i32
    %57 = vector.broadcast %c2_i32_24 : i32 to vector<16x9xi32>
    %58 = arith.muli %57, %56 : vector<16x9xi32>
    %c1_i32 = arith.constant 1 : i32
    %59 = vector.broadcast %c1_i32 : i32 to vector<16x9xi32>
    %60 = arith.addi %58, %59 : vector<16x9xi32>
    %61 = arith.cmpi eq, %55, %60 : vector<16x9xi32>
    %cst_25 = arith.constant 1.000000e+00 : f32
    %cst_26 = arith.constant 0.000000e+00 : f32
    %62 = vector.broadcast %cst_25 : f32 to vector<16x9xf32>
    %63 = vector.broadcast %cst_26 : f32 to vector<16x9xf32>
    %64 = arith.select %61, %62, %63 : vector<16x9xi1>, vector<16x9xf32>
    %65 = arith.truncf %64 : vector<16x9xf32> to vector<16x9xbf16>
    %cst_27 = arith.constant dense<0.000000e+00> : vector<64x9xf32>
    %66 = tpu.matmul %1, %65, %cst_27 {dimension_numbers = #tpu.dot_dimension_numbers<[1], [0], [0], [1], [0, 0, 1, 1], [], []>} : vector<64x16xbf16>, vector<16x9xbf16>, vector<64x9xf32> -> vector<64x9xf32>
    %67 = arith.truncf %66 : vector<64x9xf32> to vector<64x9xbf16>
    %c3 = arith.constant 3 : index
    %c0_28 = arith.constant 0 : index
    %c0_29 = arith.constant 0 : index
    %68 = vector.load %arg2[%c3, %c0_28, %c0_29] : memref<4x32x64xbf16, #tpu.memory_space<vmem>>, vector<1x32x64xbf16>
    %69 = vector.shape_cast %68 : vector<1x32x64xbf16> to vector<32x64xbf16>
    %cst_30 = arith.constant dense<0.000000e+00> : vector<32x9xf32>
    %70 = tpu.matmul %69, %67, %cst_30 {dimension_numbers = #tpu.dot_dimension_numbers<[1], [0], [0], [1], [0, 0, 1, 1], [], []>} : vector<32x64xbf16>, vector<64x9xbf16>, vector<32x9xf32> -> vector<32x9xf32>
    %71 = arith.addf %54, %70 : vector<32x9xf32>
    %cst_31 = arith.constant 0.000000e+00 : f32
    %72 = vector.broadcast %cst_31 : f32 to vector<32x9xf32>
    %73 = arith.maximumf %71, %72 : vector<32x9xf32>
    %74 = arith.truncf %73 : vector<32x9xf32> to vector<32x9xbf16>
    %c0_32 = arith.constant 0 : index
    %c0_33 = arith.constant 0 : index
    %75 = vector.load %arg5[%c0_32, %c0_33] : memref<32x1xf32, #tpu.memory_space<vmem>>, vector<32x1xf32>
    %76 = tpu.iota {dimensions = array<i32: 0>} : vector<9x5xi32>
    %77 = tpu.iota {dimensions = array<i32: 1>} : vector<9x5xi32>
    %c2_i32_34 = arith.constant 2 : i32
    %78 = vector.broadcast %c2_i32_34 : i32 to vector<9x5xi32>
    %79 = arith.muli %78, %77 : vector<9x5xi32>
    %c-2_i32_35 = arith.constant -2 : i32
    %80 = vector.broadcast %c-2_i32_35 : i32 to vector<9x5xi32>
    %81 = arith.addi %79, %80 : vector<9x5xi32>
    %82 = arith.cmpi eq, %76, %81 : vector<9x5xi32>
    %cst_36 = arith.constant 1.000000e+00 : f32
    %cst_37 = arith.constant 0.000000e+00 : f32
    %83 = vector.broadcast %cst_36 : f32 to vector<9x5xf32>
    %84 = vector.broadcast %cst_37 : f32 to vector<9x5xf32>
    %85 = arith.select %82, %83, %84 : vector<9x5xi1>, vector<9x5xf32>
    %86 = arith.truncf %85 : vector<9x5xf32> to vector<9x5xbf16>
    %cst_38 = arith.constant dense<0.000000e+00> : vector<32x5xf32>
    %87 = tpu.matmul %74, %86, %cst_38 {dimension_numbers = #tpu.dot_dimension_numbers<[1], [0], [0], [1], [0, 0, 1, 1], [], []>} : vector<32x9xbf16>, vector<9x5xbf16>, vector<32x5xf32> -> vector<32x5xf32>
    %88 = arith.truncf %87 : vector<32x5xf32> to vector<32x5xbf16>
    %c0_39 = arith.constant 0 : index
    %c0_40 = arith.constant 0 : index
    %c0_41 = arith.constant 0 : index
    %89 = vector.load %arg4[%c0_39, %c0_40, %c0_41] : memref<4x32x32xbf16, #tpu.memory_space<vmem>>, vector<1x32x32xbf16>
    %90 = vector.shape_cast %89 : vector<1x32x32xbf16> to vector<32x32xbf16>
    %cst_42 = arith.constant dense<0.000000e+00> : vector<32x5xf32>
    %91 = tpu.matmul %90, %88, %cst_42 {dimension_numbers = #tpu.dot_dimension_numbers<[1], [0], [0], [1], [0, 0, 1, 1], [], []>} : vector<32x32xbf16>, vector<32x5xbf16>, vector<32x5xf32> -> vector<32x5xf32>
    %92 = vector.broadcast %75 : vector<32x1xf32> to vector<32x5xf32>
    %93 = arith.addf %92, %91 : vector<32x5xf32>
    %94 = tpu.iota {dimensions = array<i32: 0>} : vector<9x5xi32>
    %95 = tpu.iota {dimensions = array<i32: 1>} : vector<9x5xi32>
    %c2_i32_43 = arith.constant 2 : i32
    %96 = vector.broadcast %c2_i32_43 : i32 to vector<9x5xi32>
    %97 = arith.muli %96, %95 : vector<9x5xi32>
    %c-1_i32_44 = arith.constant -1 : i32
    %98 = vector.broadcast %c-1_i32_44 : i32 to vector<9x5xi32>
    %99 = arith.addi %97, %98 : vector<9x5xi32>
    %100 = arith.cmpi eq, %94, %99 : vector<9x5xi32>
    %cst_45 = arith.constant 1.000000e+00 : f32
    %cst_46 = arith.constant 0.000000e+00 : f32
    %101 = vector.broadcast %cst_45 : f32 to vector<9x5xf32>
    %102 = vector.broadcast %cst_46 : f32 to vector<9x5xf32>
    %103 = arith.select %100, %101, %102 : vector<9x5xi1>, vector<9x5xf32>
    %104 = arith.truncf %103 : vector<9x5xf32> to vector<9x5xbf16>
    %cst_47 = arith.constant dense<0.000000e+00> : vector<32x5xf32>
    %105 = tpu.matmul %74, %104, %cst_47 {dimension_numbers = #tpu.dot_dimension_numbers<[1], [0], [0], [1], [0, 0, 1, 1], [], []>} : vector<32x9xbf16>, vector<9x5xbf16>, vector<32x5xf32> -> vector<32x5xf32>
    %106 = arith.truncf %105 : vector<32x5xf32> to vector<32x5xbf16>
    %c1_48 = arith.constant 1 : index
    %c0_49 = arith.constant 0 : index
    %c0_50 = arith.constant 0 : index
    %107 = vector.load %arg4[%c1_48, %c0_49, %c0_50] : memref<4x32x32xbf16, #tpu.memory_space<vmem>>, vector<1x32x32xbf16>
    %108 = vector.shape_cast %107 : vector<1x32x32xbf16> to vector<32x32xbf16>
    %cst_51 = arith.constant dense<0.000000e+00> : vector<32x5xf32>
    %109 = tpu.matmul %108, %106, %cst_51 {dimension_numbers = #tpu.dot_dimension_numbers<[1], [0], [0], [1], [0, 0, 1, 1], [], []>} : vector<32x32xbf16>, vector<32x5xbf16>, vector<32x5xf32> -> vector<32x5xf32>
    %110 = arith.addf %93, %109 : vector<32x5xf32>
    %111 = tpu.iota {dimensions = array<i32: 0>} : vector<9x5xi32>
    %112 = tpu.iota {dimensions = array<i32: 1>} : vector<9x5xi32>
    %c2_i32_52 = arith.constant 2 : i32
    %113 = vector.broadcast %c2_i32_52 : i32 to vector<9x5xi32>
    %114 = arith.muli %113, %112 : vector<9x5xi32>
    %c0_i32_53 = arith.constant 0 : i32
    %115 = vector.broadcast %c0_i32_53 : i32 to vector<9x5xi32>
    %116 = arith.addi %114, %115 : vector<9x5xi32>
    %117 = arith.cmpi eq, %111, %116 : vector<9x5xi32>
    %cst_54 = arith.constant 1.000000e+00 : f32
    %cst_55 = arith.constant 0.000000e+00 : f32
    %118 = vector.broadcast %cst_54 : f32 to vector<9x5xf32>
    %119 = vector.broadcast %cst_55 : f32 to vector<9x5xf32>
    %120 = arith.select %117, %118, %119 : vector<9x5xi1>, vector<9x5xf32>
    %121 = arith.truncf %120 : vector<9x5xf32> to vector<9x5xbf16>
    %cst_56 = arith.constant dense<0.000000e+00> : vector<32x5xf32>
    %122 = tpu.matmul %74, %121, %cst_56 {dimension_numbers = #tpu.dot_dimension_numbers<[1], [0], [0], [1], [0, 0, 1, 1], [], []>} : vector<32x9xbf16>, vector<9x5xbf16>, vector<32x5xf32> -> vector<32x5xf32>
    %123 = arith.truncf %122 : vector<32x5xf32> to vector<32x5xbf16>
    %c2_57 = arith.constant 2 : index
    %c0_58 = arith.constant 0 : index
    %c0_59 = arith.constant 0 : index
    %124 = vector.load %arg4[%c2_57, %c0_58, %c0_59] : memref<4x32x32xbf16, #tpu.memory_space<vmem>>, vector<1x32x32xbf16>
    %125 = vector.shape_cast %124 : vector<1x32x32xbf16> to vector<32x32xbf16>
    %cst_60 = arith.constant dense<0.000000e+00> : vector<32x5xf32>
    %126 = tpu.matmul %125, %123, %cst_60 {dimension_numbers = #tpu.dot_dimension_numbers<[1], [0], [0], [1], [0, 0, 1, 1], [], []>} : vector<32x32xbf16>, vector<32x5xbf16>, vector<32x5xf32> -> vector<32x5xf32>
    %127 = arith.addf %110, %126 : vector<32x5xf32>
    %128 = tpu.iota {dimensions = array<i32: 0>} : vector<9x5xi32>
    %129 = tpu.iota {dimensions = array<i32: 1>} : vector<9x5xi32>
    %c2_i32_61 = arith.constant 2 : i32
    %130 = vector.broadcast %c2_i32_61 : i32 to vector<9x5xi32>
    %131 = arith.muli %130, %129 : vector<9x5xi32>
    %c1_i32_62 = arith.constant 1 : i32
    %132 = vector.broadcast %c1_i32_62 : i32 to vector<9x5xi32>
    %133 = arith.addi %131, %132 : vector<9x5xi32>
    %134 = arith.cmpi eq, %128, %133 : vector<9x5xi32>
    %cst_63 = arith.constant 1.000000e+00 : f32
    %cst_64 = arith.constant 0.000000e+00 : f32
    %135 = vector.broadcast %cst_63 : f32 to vector<9x5xf32>
    %136 = vector.broadcast %cst_64 : f32 to vector<9x5xf32>
    %137 = arith.select %134, %135, %136 : vector<9x5xi1>, vector<9x5xf32>
    %138 = arith.truncf %137 : vector<9x5xf32> to vector<9x5xbf16>
    %cst_65 = arith.constant dense<0.000000e+00> : vector<32x5xf32>
    %139 = tpu.matmul %74, %138, %cst_65 {dimension_numbers = #tpu.dot_dimension_numbers<[1], [0], [0], [1], [0, 0, 1, 1], [], []>} : vector<32x9xbf16>, vector<9x5xbf16>, vector<32x5xf32> -> vector<32x5xf32>
    %140 = arith.truncf %139 : vector<32x5xf32> to vector<32x5xbf16>
    %c3_66 = arith.constant 3 : index
    %c0_67 = arith.constant 0 : index
    %c0_68 = arith.constant 0 : index
    %141 = vector.load %arg4[%c3_66, %c0_67, %c0_68] : memref<4x32x32xbf16, #tpu.memory_space<vmem>>, vector<1x32x32xbf16>
    %142 = vector.shape_cast %141 : vector<1x32x32xbf16> to vector<32x32xbf16>
    %cst_69 = arith.constant dense<0.000000e+00> : vector<32x5xf32>
    %143 = tpu.matmul %142, %140, %cst_69 {dimension_numbers = #tpu.dot_dimension_numbers<[1], [0], [0], [1], [0, 0, 1, 1], [], []>} : vector<32x32xbf16>, vector<32x5xbf16>, vector<32x5xf32> -> vector<32x5xf32>
    %144 = arith.addf %127, %143 : vector<32x5xf32>
    %cst_70 = arith.constant 0.000000e+00 : f32
    %145 = vector.broadcast %cst_70 : f32 to vector<32x5xf32>
    %146 = arith.maximumf %144, %145 : vector<32x5xf32>
    %147 = arith.truncf %146 : vector<32x5xf32> to vector<32x5xbf16>
    %c0_71 = arith.constant 0 : index
    %c0_72 = arith.constant 0 : index
    %148 = vector.load %arg7[%c0_71, %c0_72] : memref<32x1xf32, #tpu.memory_space<vmem>>, vector<32x1xf32>
    %149 = tpu.iota {dimensions = array<i32: 0>} : vector<5x8xi32>
    %150 = tpu.iota {dimensions = array<i32: 1>} : vector<5x8xi32>
    %c2_i32_73 = arith.constant 2 : i32
    %151 = vector.broadcast %c2_i32_73 : i32 to vector<5x8xi32>
    %152 = arith.muli %151, %149 : vector<5x8xi32>
    %c-2_i32_74 = arith.constant -2 : i32
    %153 = vector.broadcast %c-2_i32_74 : i32 to vector<5x8xi32>
    %154 = arith.addi %152, %153 : vector<5x8xi32>
    %155 = arith.cmpi eq, %150, %154 : vector<5x8xi32>
    %cst_75 = arith.constant 1.000000e+00 : f32
    %cst_76 = arith.constant 0.000000e+00 : f32
    %156 = vector.broadcast %cst_75 : f32 to vector<5x8xf32>
    %157 = vector.broadcast %cst_76 : f32 to vector<5x8xf32>
    %158 = arith.select %155, %156, %157 : vector<5x8xi1>, vector<5x8xf32>
    %159 = arith.truncf %158 : vector<5x8xf32> to vector<5x8xbf16>
    %cst_77 = arith.constant dense<0.000000e+00> : vector<32x8xf32>
    %160 = tpu.matmul %147, %159, %cst_77 {dimension_numbers = #tpu.dot_dimension_numbers<[1], [0], [0], [1], [0, 0, 1, 1], [], []>} : vector<32x5xbf16>, vector<5x8xbf16>, vector<32x8xf32> -> vector<32x8xf32>
    %161 = arith.truncf %160 : vector<32x8xf32> to vector<32x8xbf16>
    %c0_78 = arith.constant 0 : index
    %c0_79 = arith.constant 0 : index
    %c0_80 = arith.constant 0 : index
    %162 = vector.load %arg6[%c0_78, %c0_79, %c0_80] : memref<4x32x32xbf16, #tpu.memory_space<vmem>>, vector<1x32x32xbf16>
    %163 = vector.shape_cast %162 : vector<1x32x32xbf16> to vector<32x32xbf16>
    %cst_81 = arith.constant dense<0.000000e+00> : vector<32x8xf32>
    %164 = tpu.matmul %163, %161, %cst_81 {dimension_numbers = #tpu.dot_dimension_numbers<[1], [0], [0], [1], [0, 0, 1, 1], [], []>} : vector<32x32xbf16>, vector<32x8xbf16>, vector<32x8xf32> -> vector<32x8xf32>
    %165 = vector.broadcast %148 : vector<32x1xf32> to vector<32x8xf32>
    %166 = arith.addf %165, %164 : vector<32x8xf32>
    %167 = tpu.iota {dimensions = array<i32: 0>} : vector<5x8xi32>
    %168 = tpu.iota {dimensions = array<i32: 1>} : vector<5x8xi32>
    %c2_i32_82 = arith.constant 2 : i32
    %169 = vector.broadcast %c2_i32_82 : i32 to vector<5x8xi32>
    %170 = arith.muli %169, %167 : vector<5x8xi32>
    %c-1_i32_83 = arith.constant -1 : i32
    %171 = vector.broadcast %c-1_i32_83 : i32 to vector<5x8xi32>
    %172 = arith.addi %170, %171 : vector<5x8xi32>
    %173 = arith.cmpi eq, %168, %172 : vector<5x8xi32>
    %cst_84 = arith.constant 1.000000e+00 : f32
    %cst_85 = arith.constant 0.000000e+00 : f32
    %174 = vector.broadcast %cst_84 : f32 to vector<5x8xf32>
    %175 = vector.broadcast %cst_85 : f32 to vector<5x8xf32>
    %176 = arith.select %173, %174, %175 : vector<5x8xi1>, vector<5x8xf32>
    %177 = arith.truncf %176 : vector<5x8xf32> to vector<5x8xbf16>
    %cst_86 = arith.constant dense<0.000000e+00> : vector<32x8xf32>
    %178 = tpu.matmul %147, %177, %cst_86 {dimension_numbers = #tpu.dot_dimension_numbers<[1], [0], [0], [1], [0, 0, 1, 1], [], []>} : vector<32x5xbf16>, vector<5x8xbf16>, vector<32x8xf32> -> vector<32x8xf32>
    %179 = arith.truncf %178 : vector<32x8xf32> to vector<32x8xbf16>
    %c1_87 = arith.constant 1 : index
    %c0_88 = arith.constant 0 : index
    %c0_89 = arith.constant 0 : index
    %180 = vector.load %arg6[%c1_87, %c0_88, %c0_89] : memref<4x32x32xbf16, #tpu.memory_space<vmem>>, vector<1x32x32xbf16>
    %181 = vector.shape_cast %180 : vector<1x32x32xbf16> to vector<32x32xbf16>
    %cst_90 = arith.constant dense<0.000000e+00> : vector<32x8xf32>
    %182 = tpu.matmul %181, %179, %cst_90 {dimension_numbers = #tpu.dot_dimension_numbers<[1], [0], [0], [1], [0, 0, 1, 1], [], []>} : vector<32x32xbf16>, vector<32x8xbf16>, vector<32x8xf32> -> vector<32x8xf32>
    %183 = arith.addf %166, %182 : vector<32x8xf32>
    %184 = tpu.iota {dimensions = array<i32: 0>} : vector<5x8xi32>
    %185 = tpu.iota {dimensions = array<i32: 1>} : vector<5x8xi32>
    %c2_i32_91 = arith.constant 2 : i32
    %186 = vector.broadcast %c2_i32_91 : i32 to vector<5x8xi32>
    %187 = arith.muli %186, %184 : vector<5x8xi32>
    %c0_i32_92 = arith.constant 0 : i32
    %188 = vector.broadcast %c0_i32_92 : i32 to vector<5x8xi32>
    %189 = arith.addi %187, %188 : vector<5x8xi32>
    %190 = arith.cmpi eq, %185, %189 : vector<5x8xi32>
    %cst_93 = arith.constant 1.000000e+00 : f32
    %cst_94 = arith.constant 0.000000e+00 : f32
    %191 = vector.broadcast %cst_93 : f32 to vector<5x8xf32>
    %192 = vector.broadcast %cst_94 : f32 to vector<5x8xf32>
    %193 = arith.select %190, %191, %192 : vector<5x8xi1>, vector<5x8xf32>
    %194 = arith.truncf %193 : vector<5x8xf32> to vector<5x8xbf16>
    %cst_95 = arith.constant dense<0.000000e+00> : vector<32x8xf32>
    %195 = tpu.matmul %147, %194, %cst_95 {dimension_numbers = #tpu.dot_dimension_numbers<[1], [0], [0], [1], [0, 0, 1, 1], [], []>} : vector<32x5xbf16>, vector<5x8xbf16>, vector<32x8xf32> -> vector<32x8xf32>
    %196 = arith.truncf %195 : vector<32x8xf32> to vector<32x8xbf16>
    %c2_96 = arith.constant 2 : index
    %c0_97 = arith.constant 0 : index
    %c0_98 = arith.constant 0 : index
    %197 = vector.load %arg6[%c2_96, %c0_97, %c0_98] : memref<4x32x32xbf16, #tpu.memory_space<vmem>>, vector<1x32x32xbf16>
    %198 = vector.shape_cast %197 : vector<1x32x32xbf16> to vector<32x32xbf16>
    %cst_99 = arith.constant dense<0.000000e+00> : vector<32x8xf32>
    %199 = tpu.matmul %198, %196, %cst_99 {dimension_numbers = #tpu.dot_dimension_numbers<[1], [0], [0], [1], [0, 0, 1, 1], [], []>} : vector<32x32xbf16>, vector<32x8xbf16>, vector<32x8xf32> -> vector<32x8xf32>
    %200 = arith.addf %183, %199 : vector<32x8xf32>
    %201 = tpu.iota {dimensions = array<i32: 0>} : vector<5x8xi32>
    %202 = tpu.iota {dimensions = array<i32: 1>} : vector<5x8xi32>
    %c2_i32_100 = arith.constant 2 : i32
    %203 = vector.broadcast %c2_i32_100 : i32 to vector<5x8xi32>
    %204 = arith.muli %203, %201 : vector<5x8xi32>
    %c1_i32_101 = arith.constant 1 : i32
    %205 = vector.broadcast %c1_i32_101 : i32 to vector<5x8xi32>
    %206 = arith.addi %204, %205 : vector<5x8xi32>
    %207 = arith.cmpi eq, %202, %206 : vector<5x8xi32>
    %cst_102 = arith.constant 1.000000e+00 : f32
    %cst_103 = arith.constant 0.000000e+00 : f32
    %208 = vector.broadcast %cst_102 : f32 to vector<5x8xf32>
    %209 = vector.broadcast %cst_103 : f32 to vector<5x8xf32>
    %210 = arith.select %207, %208, %209 : vector<5x8xi1>, vector<5x8xf32>
    %211 = arith.truncf %210 : vector<5x8xf32> to vector<5x8xbf16>
    %cst_104 = arith.constant dense<0.000000e+00> : vector<32x8xf32>
    %212 = tpu.matmul %147, %211, %cst_104 {dimension_numbers = #tpu.dot_dimension_numbers<[1], [0], [0], [1], [0, 0, 1, 1], [], []>} : vector<32x5xbf16>, vector<5x8xbf16>, vector<32x8xf32> -> vector<32x8xf32>
    %213 = arith.truncf %212 : vector<32x8xf32> to vector<32x8xbf16>
    %c3_105 = arith.constant 3 : index
    %c0_106 = arith.constant 0 : index
    %c0_107 = arith.constant 0 : index
    %214 = vector.load %arg6[%c3_105, %c0_106, %c0_107] : memref<4x32x32xbf16, #tpu.memory_space<vmem>>, vector<1x32x32xbf16>
    %215 = vector.shape_cast %214 : vector<1x32x32xbf16> to vector<32x32xbf16>
    %cst_108 = arith.constant dense<0.000000e+00> : vector<32x8xf32>
    %216 = tpu.matmul %215, %213, %cst_108 {dimension_numbers = #tpu.dot_dimension_numbers<[1], [0], [0], [1], [0, 0, 1, 1], [], []>} : vector<32x32xbf16>, vector<32x8xbf16>, vector<32x8xf32> -> vector<32x8xf32>
    %217 = arith.addf %200, %216 : vector<32x8xf32>
    %cst_109 = arith.constant 0.000000e+00 : f32
    %218 = vector.broadcast %cst_109 : f32 to vector<32x8xf32>
    %219 = arith.maximumf %217, %218 : vector<32x8xf32>
    %220 = arith.truncf %219 : vector<32x8xf32> to vector<32x8xbf16>
    %c0_110 = arith.constant 0 : index
    %c0_111 = arith.constant 0 : index
    %221 = vector.load %arg9[%c0_110, %c0_111] : memref<64x1xf32, #tpu.memory_space<vmem>>, vector<64x1xf32>
    %222 = tpu.iota {dimensions = array<i32: 0>} : vector<8x14xi32>
    %223 = tpu.iota {dimensions = array<i32: 1>} : vector<8x14xi32>
    %c2_i32_112 = arith.constant 2 : i32
    %224 = vector.broadcast %c2_i32_112 : i32 to vector<8x14xi32>
    %225 = arith.muli %224, %222 : vector<8x14xi32>
    %c-2_i32_113 = arith.constant -2 : i32
    %226 = vector.broadcast %c-2_i32_113 : i32 to vector<8x14xi32>
    %227 = arith.addi %225, %226 : vector<8x14xi32>
    %228 = arith.cmpi eq, %223, %227 : vector<8x14xi32>
    %cst_114 = arith.constant 1.000000e+00 : f32
    %cst_115 = arith.constant 0.000000e+00 : f32
    %229 = vector.broadcast %cst_114 : f32 to vector<8x14xf32>
    %230 = vector.broadcast %cst_115 : f32 to vector<8x14xf32>
    %231 = arith.select %228, %229, %230 : vector<8x14xi1>, vector<8x14xf32>
    %232 = arith.truncf %231 : vector<8x14xf32> to vector<8x14xbf16>
    %cst_116 = arith.constant dense<0.000000e+00> : vector<32x14xf32>
    %233 = tpu.matmul %220, %232, %cst_116 {dimension_numbers = #tpu.dot_dimension_numbers<[1], [0], [0], [1], [0, 0, 1, 1], [], []>} : vector<32x8xbf16>, vector<8x14xbf16>, vector<32x14xf32> -> vector<32x14xf32>
    %234 = arith.truncf %233 : vector<32x14xf32> to vector<32x14xbf16>
    %c0_117 = arith.constant 0 : index
    %c0_118 = arith.constant 0 : index
    %c0_119 = arith.constant 0 : index
    %235 = vector.load %arg8[%c0_117, %c0_118, %c0_119] : memref<4x64x32xbf16, #tpu.memory_space<vmem>>, vector<1x64x32xbf16>
    %236 = vector.shape_cast %235 : vector<1x64x32xbf16> to vector<64x32xbf16>
    %cst_120 = arith.constant dense<0.000000e+00> : vector<64x14xf32>
    %237 = tpu.matmul %236, %234, %cst_120 {dimension_numbers = #tpu.dot_dimension_numbers<[1], [0], [0], [1], [0, 0, 1, 1], [], []>} : vector<64x32xbf16>, vector<32x14xbf16>, vector<64x14xf32> -> vector<64x14xf32>
    %238 = vector.broadcast %221 : vector<64x1xf32> to vector<64x14xf32>
    %239 = arith.addf %238, %237 : vector<64x14xf32>
    %240 = tpu.iota {dimensions = array<i32: 0>} : vector<8x14xi32>
    %241 = tpu.iota {dimensions = array<i32: 1>} : vector<8x14xi32>
    %c2_i32_121 = arith.constant 2 : i32
    %242 = vector.broadcast %c2_i32_121 : i32 to vector<8x14xi32>
    %243 = arith.muli %242, %240 : vector<8x14xi32>
    %c-1_i32_122 = arith.constant -1 : i32
    %244 = vector.broadcast %c-1_i32_122 : i32 to vector<8x14xi32>
    %245 = arith.addi %243, %244 : vector<8x14xi32>
    %246 = arith.cmpi eq, %241, %245 : vector<8x14xi32>
    %cst_123 = arith.constant 1.000000e+00 : f32
    %cst_124 = arith.constant 0.000000e+00 : f32
    %247 = vector.broadcast %cst_123 : f32 to vector<8x14xf32>
    %248 = vector.broadcast %cst_124 : f32 to vector<8x14xf32>
    %249 = arith.select %246, %247, %248 : vector<8x14xi1>, vector<8x14xf32>
    %250 = arith.truncf %249 : vector<8x14xf32> to vector<8x14xbf16>
    %cst_125 = arith.constant dense<0.000000e+00> : vector<32x14xf32>
    %251 = tpu.matmul %220, %250, %cst_125 {dimension_numbers = #tpu.dot_dimension_numbers<[1], [0], [0], [1], [0, 0, 1, 1], [], []>} : vector<32x8xbf16>, vector<8x14xbf16>, vector<32x14xf32> -> vector<32x14xf32>
    %252 = arith.truncf %251 : vector<32x14xf32> to vector<32x14xbf16>
    %c1_126 = arith.constant 1 : index
    %c0_127 = arith.constant 0 : index
    %c0_128 = arith.constant 0 : index
    %253 = vector.load %arg8[%c1_126, %c0_127, %c0_128] : memref<4x64x32xbf16, #tpu.memory_space<vmem>>, vector<1x64x32xbf16>
    %254 = vector.shape_cast %253 : vector<1x64x32xbf16> to vector<64x32xbf16>
    %cst_129 = arith.constant dense<0.000000e+00> : vector<64x14xf32>
    %255 = tpu.matmul %254, %252, %cst_129 {dimension_numbers = #tpu.dot_dimension_numbers<[1], [0], [0], [1], [0, 0, 1, 1], [], []>} : vector<64x32xbf16>, vector<32x14xbf16>, vector<64x14xf32> -> vector<64x14xf32>
    %256 = arith.addf %239, %255 : vector<64x14xf32>
    %257 = tpu.iota {dimensions = array<i32: 0>} : vector<8x14xi32>
    %258 = tpu.iota {dimensions = array<i32: 1>} : vector<8x14xi32>
    %c2_i32_130 = arith.constant 2 : i32
    %259 = vector.broadcast %c2_i32_130 : i32 to vector<8x14xi32>
    %260 = arith.muli %259, %257 : vector<8x14xi32>
    %c0_i32_131 = arith.constant 0 : i32
    %261 = vector.broadcast %c0_i32_131 : i32 to vector<8x14xi32>
    %262 = arith.addi %260, %261 : vector<8x14xi32>
    %263 = arith.cmpi eq, %258, %262 : vector<8x14xi32>
    %cst_132 = arith.constant 1.000000e+00 : f32
    %cst_133 = arith.constant 0.000000e+00 : f32
    %264 = vector.broadcast %cst_132 : f32 to vector<8x14xf32>
    %265 = vector.broadcast %cst_133 : f32 to vector<8x14xf32>
    %266 = arith.select %263, %264, %265 : vector<8x14xi1>, vector<8x14xf32>
    %267 = arith.truncf %266 : vector<8x14xf32> to vector<8x14xbf16>
    %cst_134 = arith.constant dense<0.000000e+00> : vector<32x14xf32>
    %268 = tpu.matmul %220, %267, %cst_134 {dimension_numbers = #tpu.dot_dimension_numbers<[1], [0], [0], [1], [0, 0, 1, 1], [], []>} : vector<32x8xbf16>, vector<8x14xbf16>, vector<32x14xf32> -> vector<32x14xf32>
    %269 = arith.truncf %268 : vector<32x14xf32> to vector<32x14xbf16>
    %c2_135 = arith.constant 2 : index
    %c0_136 = arith.constant 0 : index
    %c0_137 = arith.constant 0 : index
    %270 = vector.load %arg8[%c2_135, %c0_136, %c0_137] : memref<4x64x32xbf16, #tpu.memory_space<vmem>>, vector<1x64x32xbf16>
    %271 = vector.shape_cast %270 : vector<1x64x32xbf16> to vector<64x32xbf16>
    %cst_138 = arith.constant dense<0.000000e+00> : vector<64x14xf32>
    %272 = tpu.matmul %271, %269, %cst_138 {dimension_numbers = #tpu.dot_dimension_numbers<[1], [0], [0], [1], [0, 0, 1, 1], [], []>} : vector<64x32xbf16>, vector<32x14xbf16>, vector<64x14xf32> -> vector<64x14xf32>
    %273 = arith.addf %256, %272 : vector<64x14xf32>
    %274 = tpu.iota {dimensions = array<i32: 0>} : vector<8x14xi32>
    %275 = tpu.iota {dimensions = array<i32: 1>} : vector<8x14xi32>
    %c2_i32_139 = arith.constant 2 : i32
    %276 = vector.broadcast %c2_i32_139 : i32 to vector<8x14xi32>
    %277 = arith.muli %276, %274 : vector<8x14xi32>
    %c1_i32_140 = arith.constant 1 : i32
    %278 = vector.broadcast %c1_i32_140 : i32 to vector<8x14xi32>
    %279 = arith.addi %277, %278 : vector<8x14xi32>
    %280 = arith.cmpi eq, %275, %279 : vector<8x14xi32>
    %cst_141 = arith.constant 1.000000e+00 : f32
    %cst_142 = arith.constant 0.000000e+00 : f32
    %281 = vector.broadcast %cst_141 : f32 to vector<8x14xf32>
    %282 = vector.broadcast %cst_142 : f32 to vector<8x14xf32>
    %283 = arith.select %280, %281, %282 : vector<8x14xi1>, vector<8x14xf32>
    %284 = arith.truncf %283 : vector<8x14xf32> to vector<8x14xbf16>
    %cst_143 = arith.constant dense<0.000000e+00> : vector<32x14xf32>
    %285 = tpu.matmul %220, %284, %cst_143 {dimension_numbers = #tpu.dot_dimension_numbers<[1], [0], [0], [1], [0, 0, 1, 1], [], []>} : vector<32x8xbf16>, vector<8x14xbf16>, vector<32x14xf32> -> vector<32x14xf32>
    %286 = arith.truncf %285 : vector<32x14xf32> to vector<32x14xbf16>
    %c3_144 = arith.constant 3 : index
    %c0_145 = arith.constant 0 : index
    %c0_146 = arith.constant 0 : index
    %287 = vector.load %arg8[%c3_144, %c0_145, %c0_146] : memref<4x64x32xbf16, #tpu.memory_space<vmem>>, vector<1x64x32xbf16>
    %288 = vector.shape_cast %287 : vector<1x64x32xbf16> to vector<64x32xbf16>
    %cst_147 = arith.constant dense<0.000000e+00> : vector<64x14xf32>
    %289 = tpu.matmul %288, %286, %cst_147 {dimension_numbers = #tpu.dot_dimension_numbers<[1], [0], [0], [1], [0, 0, 1, 1], [], []>} : vector<64x32xbf16>, vector<32x14xbf16>, vector<64x14xf32> -> vector<64x14xf32>
    %290 = arith.addf %273, %289 : vector<64x14xf32>
    %c0_148 = arith.constant 0 : index
    %c0_149 = arith.constant 0 : index
    %c0_150 = arith.constant 0 : index
    %291 = vector.load %arg10[%c0_148, %c0_149, %c0_150] : memref<1x64x14xf32, #tpu.memory_space<vmem>>, vector<1x64x14xf32>
    %292 = vector.shape_cast %291 : vector<1x64x14xf32> to vector<64x14xf32>
    %293 = vector.shape_cast %290 : vector<64x14xf32> to vector<1x64x14xf32>
    tpu.vector_store %arg10[%c0_148, %c0_149, %c0_150], %293 {strides = array<i32>} : memref<1x64x14xf32, #tpu.memory_space<vmem>>, vector<1x64x14xf32>,
    return
  }
  func.func @transform_0(%arg0: i32) -> (i32, i32, i32) {
    %c0_i32 = arith.constant 0 : i32
    %c0_i32_0 = arith.constant 0 : i32
    %c0_i32_1 = arith.constant 0 : i32
    return %arg0, %c0_i32, %c0_i32_0 : i32, i32, i32
  }
  func.func @transform_1(%arg0: i32) -> (i32, i32, i32) {
    %c0_i32 = arith.constant 0 : i32
    %c0_i32_0 = arith.constant 0 : i32
    %c0_i32_1 = arith.constant 0 : i32
    %c0_i32_2 = arith.constant 0 : i32
    return %c0_i32, %c0_i32_0, %c0_i32_1 : i32, i32, i32
  }
  func.func @transform_2(%arg0: i32) -> (i32, i32) {
    %c0_i32 = arith.constant 0 : i32
    %c0_i32_0 = arith.constant 0 : i32
    %c0_i32_1 = arith.constant 0 : i32
    return %c0_i32, %c0_i32_0 : i32, i32
  }
  func.func @transform_3(%arg0: i32) -> (i32, i32, i32) {
    %c0_i32 = arith.constant 0 : i32
    %c0_i32_0 = arith.constant 0 : i32
    %c0_i32_1 = arith.constant 0 : i32
    %c0_i32_2 = arith.constant 0 : i32
    return %c0_i32, %c0_i32_0, %c0_i32_1 : i32, i32, i32
  }
  func.func @transform_4(%arg0: i32) -> (i32, i32) {
    %c0_i32 = arith.constant 0 : i32
    %c0_i32_0 = arith.constant 0 : i32
    %c0_i32_1 = arith.constant 0 : i32
    return %c0_i32, %c0_i32_0 : i32, i32
  }
  func.func @transform_5(%arg0: i32) -> (i32, i32, i32) {
    %c0_i32 = arith.constant 0 : i32
    %c0_i32_0 = arith.constant 0 : i32
    %c0_i32_1 = arith.constant 0 : i32
    %c0_i32_2 = arith.constant 0 : i32
    return %c0_i32, %c0_i32_0, %c0_i32_1 : i32, i32, i32
  }
  func.func @transform_6(%arg0: i32) -> (i32, i32) {
    %c0_i32 = arith.constant 0 : i32
    %c0_i32_0 = arith.constant 0 : i32
    %c0_i32_1 = arith.constant 0 : i32
    return %c0_i32, %c0_i32_0 : i32, i32
  }
  func.func @transform_7(%arg0: i32) -> (i32, i32, i32) {
    %c0_i32 = arith.constant 0 : i32
    %c0_i32_0 = arith.constant 0 : i32
    %c0_i32_1 = arith.constant 0 : i32
    %c0_i32_2 = arith.constant 0 : i32
    return %c0_i32, %c0_i32_0, %c0_i32_1 : i32, i32, i32
  }
  func.func @transform_8(%arg0: i32) -> (i32, i32) {
    %c0_i32 = arith.constant 0 : i32
    %c0_i32_0 = arith.constant 0 : i32
    %c0_i32_1 = arith.constant 0 : i32
    return %c0_i32, %c0_i32_0 : i32, i32
  }
  func.func @transform_9(%arg0: i32) -> (i32, i32, i32) {
    %c0_i32 = arith.constant 0 : i32
    %c0_i32_0 = arith.constant 0 : i32
    %c0_i32_1 = arith.constant 0 : i32
    return %arg0, %c0_i32, %c0_i32_0 : i32, i32, i32
  }
}

</mosaic_0001>

<llo_original>
// kernel: lis2img_forward.1
$region0: #{lis2img_forward.1}
  #allocation0 [shape = 'u32[]', space=smem, size = 0x4, offset = 0x4, fixed_abs, tag = 'smem constant byte address 0x4 - core index']
  #allocation1 [shape = 'u32[144,128]{1,0:T(1,128)}', space=vmem, size = 0x12000, scoped, tag = 'internal scratch']
  %s0 = inlined_call_operand.vmem [shape: bf16[2,64,16], index: 0, kind: input, shape index: {}]
  %s1 = inlined_call_operand.vmem [shape: bf16[4,32,64], index: 1, kind: input, shape index: {}]
  %s2 = inlined_call_operand.vmem [shape: f32[32,1], index: 2, kind: input, shape index: {}]
  %s3 = inlined_call_operand.vmem [shape: bf16[4,32,32], index: 3, kind: input, shape index: {}]
  %s4 = inlined_call_operand.vmem [shape: f32[32,1], index: 4, kind: input, shape index: {}]
  %s5 = inlined_call_operand.vmem [shape: bf16[4,32,32], index: 5, kind: input, shape index: {}]
  %s6 = inlined_call_operand.vmem [shape: f32[32,1], index: 6, kind: input, shape index: {}]
  %s7 = inlined_call_operand.vmem [shape: bf16[4,64,32], index: 7, kind: input, shape index: {}]
  %s8 = inlined_call_operand.vmem [shape: f32[64,1], index: 8, kind: input, shape index: {}]
  %s9 = inlined_call_operand.vmem [shape: f32[2,64,14], index: 9, kind: output, shape index: {}]
  %s10 = sld [smem:[#allocation0]]
  $region69: #{lis2img_forward.1} parent=0
    _
  %s12 = ssub.s32 1, %s10
  %s13 = scalar_select 0, %s12, %s10
  loop: start=0, step=1, limit=4
  $region2: #{lis2img_forward.1} parent=0 // loop_pre_header
    _
  $region3: #{lis2img_forward.1} parent=0 // loop_header
    %s15 = sphi 0, %s19
    %p16 = scmp.ge.s32.totalorder %s15, 4
    %s25 = sphi 0, %s27
    %s28 = sphi 0, %s25
    %s29 = sphi 0, %s28
    %s45 = sphi 0, %s29
    %s49 = sphi 0, %s49
    %s51 = sphi 0, %s49
    %s52 = sphi 0, %s51
    %s66 = sphi 0, %s52
    %s70 = sphi 0, %s70
    %s72 = sphi 0, %s70
    %s73 = sphi 0, %s72
    %s87 = sphi 0, %s73
    %s91 = sphi 0, %s91
    %s93 = sphi 0, %s91
    %s94 = sphi 0, %s93
    %s108 = sphi 0, %s94
    %s112 = sphi 0, %s112
    %s114 = sphi 0, %s112
    %s115 = sphi 0, %s114
    %s129 = sphi 0, %s115
    %s133 = sphi 0, %s133
    %s135 = sphi 0, %s133
    %s136 = sphi 0, %s135
    %s150 = sphi 0, %s136
    %s154 = sphi 0, %s154
    %s156 = sphi 0, %s154
    %s157 = sphi 0, %s156
    %s171 = sphi 0, %s157
    %s175 = sphi 0, %s175
    %s177 = sphi 0, %s175
    %s178 = sphi 0, %s177
    %s192 = sphi 0, %s178
    %s196 = sphi 0, %s196
    %s198 = sphi 0, %s196
    %s199 = sphi 0, %s198
    %s213 = sphi 0, %s199
    %s219 = sphi 0, %s221
    %s222 = sphi 0, %s219
    %s223 = sphi 0, %s222
    %s239 = sphi 0, %s223
  $region4: #{lis2img_forward.1} parent=0 // loop_header_branch
    %18 = sbr.rel (%p16) target = $region8
  $region5: #{lis2img_forward.1} parent=0 // loop_body
    %s20 = ssub.s32 %s15, 1
    %s21 = ssub.s32 %s15, 2
    %s22 = sadd.s32 %s15, 1
    %s23 = ssub.s32 %s15, %s22
    %p24 = scmp.eq.s32.totalorder %s23, 0
    %s26 = sadd.s32 %s25, 1
    %s27 = scalar_select %p24, %s25, %s26
    %p30 = pneg %p24
    %p31 = scmp.eq.s32.totalorder %s15, 1
    %p32 = por %p30, %p31
    %p33 = scmp.ne.s32.totalorder %s25, %s28
    %p34 = scmp.eq.s32.totalorder %s15, 0
    %p35 = por %p33, %p34
    %p36 = scmp.ne.s32.totalorder %s25, %s28
    %p37 = scmp.eq.s32.totalorder %s20, 1
    %p38 = por %p36, %p37
    %p39 = scmp.ne.s32.totalorder %s28, %s29
    %p40 = scmp.eq.s32.totalorder %s20, 0
    %p41 = por %p39, %p40
    %p42 = scmp.ne.s32.totalorder %s28, %s29
    %p43 = scmp.eq.s32.totalorder %s21, 1
    %p44 = por %p42, %p43
    %p46 = scmp.ne.s32.totalorder %s29, %s45
    %p47 = scmp.eq.s32.totalorder %s21, 0
    %p48 = por %p46, %p47
    %s50 = sadd.s32 %s49, 1
    %p53 = scmp.eq.s32.totalorder %s15, 1
    %p54 = scmp.ne.s32.totalorder %s49, %s51
    %p55 = scmp.eq.s32.totalorder %s15, 0
    %p56 = por %p54, %p55
    %p57 = scmp.ne.s32.totalorder %s49, %s51
    %p58 = scmp.eq.s32.totalorder %s20, 1
    %p59 = por %p57, %p58
    %p60 = scmp.ne.s32.totalorder %s51, %s52
    %p61 = scmp.eq.s32.totalorder %s20, 0
    %p62 = por %p60, %p61
    %p63 = scmp.ne.s32.totalorder %s51, %s52
    %p64 = scmp.eq.s32.totalorder %s21, 1
    %p65 = por %p63, %p64
    %p67 = scmp.ne.s32.totalorder %s52, %s66
    %p68 = scmp.eq.s32.totalorder %s21, 0
    %p69 = por %p67, %p68
    %s71 = sadd.s32 %s70, 1
    %p74 = scmp.eq.s32.totalorder %s15, 1
    %p75 = scmp.ne.s32.totalorder %s70, %s72
    %p76 = scmp.eq.s32.totalorder %s15, 0
    %p77 = por %p75, %p76
    %p78 = scmp.ne.s32.totalorder %s70, %s72
    %p79 = scmp.eq.s32.totalorder %s20, 1
    %p80 = por %p78, %p79
    %p81 = scmp.ne.s32.totalorder %s72, %s73
    %p82 = scmp.eq.s32.totalorder %s20, 0
    %p83 = por %p81, %p82
    %p84 = scmp.ne.s32.totalorder %s72, %s73
    %p85 = scmp.eq.s32.totalorder %s21, 1
    %p86 = por %p84, %p85
    %p88 = scmp.ne.s32.totalorder %s73, %s87
    %p89 = scmp.eq.s32.totalorder %s21, 0
    %p90 = por %p88, %p89
    %s92 = sadd.s32 %s91, 1
    %p95 = scmp.eq.s32.totalorder %s15, 1
    %p96 = scmp.ne.s32.totalorder %s91, %s93
    %p97 = scmp.eq.s32.totalorder %s15, 0
    %p98 = por %p96, %p97
    %p99 = scmp.ne.s32.totalorder %s91, %s93
    %p100 = scmp.eq.s32.totalorder %s20, 1
    %p101 = por %p99, %p100
    %p102 = scmp.ne.s32.totalorder %s93, %s94
    %p103 = scmp.eq.s32.totalorder %s20, 0
    %p104 = por %p102, %p103
    %p105 = scmp.ne.s32.totalorder %s93, %s94
    %p106 = scmp.eq.s32.totalorder %s21, 1
    %p107 = por %p105, %p106
    %p109 = scmp.ne.s32.totalorder %s94, %s108
    %p110 = scmp.eq.s32.totalorder %s21, 0
    %p111 = por %p109, %p110
    %s113 = sadd.s32 %s112, 1
    %p116 = scmp.eq.s32.totalorder %s15, 1
    %p117 = scmp.ne.s32.totalorder %s112, %s114
    %p118 = scmp.eq.s32.totalorder %s15, 0
    %p119 = por %p117, %p118
    %p120 = scmp.ne.s32.totalorder %s112, %s114
    %p121 = scmp.eq.s32.totalorder %s20, 1
    %p122 = por %p120, %p121
    %p123 = scmp.ne.s32.totalorder %s114, %s115
    %p124 = scmp.eq.s32.totalorder %s20, 0
    %p125 = por %p123, %p124
    %p126 = scmp.ne.s32.totalorder %s114, %s115
    %p127 = scmp.eq.s32.totalorder %s21, 1
    %p128 = por %p126, %p127
    %p130 = scmp.ne.s32.totalorder %s115, %s129
    %p131 = scmp.eq.s32.totalorder %s21, 0
    %p132 = por %p130, %p131
    %s134 = sadd.s32 %s133, 1
    %p137 = scmp.eq.s32.totalorder %s15, 1
    %p138 = scmp.ne.s32.totalorder %s133, %s135
    %p139 = scmp.eq.s32.totalorder %s15, 0
    %p140 = por %p138, %p139
    %p141 = scmp.ne.s32.totalorder %s133, %s135
    %p142 = scmp.eq.s32.totalorder %s20, 1
    %p143 = por %p141, %p142
    %p144 = scmp.ne.s32.totalorder %s135, %s136
    %p145 = scmp.eq.s32.totalorder %s20, 0
    %p146 = por %p144, %p145
    %p147 = scmp.ne.s32.totalorder %s135, %s136
    %p148 = scmp.eq.s32.totalorder %s21, 1
    %p149 = por %p147, %p148
    %p151 = scmp.ne.s32.totalorder %s136, %s150
    %p152 = scmp.eq.s32.totalorder %s21, 0
    %p153 = por %p151, %p152
    %s155 = sadd.s32 %s154, 1
    %p158 = scmp.eq.s32.totalorder %s15, 1
    %p159 = scmp.ne.s32.totalorder %s154, %s156
    %p160 = scmp.eq.s32.totalorder %s15, 0
    %p161 = por %p159, %p160
    %p162 = scmp.ne.s32.totalorder %s154, %s156
    %p163 = scmp.eq.s32.totalorder %s20, 1
    %p164 = por %p162, %p163
    %p165 = scmp.ne.s32.totalorder %s156, %s157
    %p166 = scmp.eq.s32.totalorder %s20, 0
    %p167 = por %p165, %p166
    %p168 = scmp.ne.s32.totalorder %s156, %s157
    %p169 = scmp.eq.s32.totalorder %s21, 1
    %p170 = por %p168, %p169
    %p172 = scmp.ne.s32.totalorder %s157, %s171
    %p173 = scmp.eq.s32.totalorder %s21, 0
    %p174 = por %p172, %p173
    %s176 = sadd.s32 %s175, 1
    %p179 = scmp.eq.s32.totalorder %s15, 1
    %p180 = scmp.ne.s32.totalorder %s175, %s177
    %p181 = scmp.eq.s32.totalorder %s15, 0
    %p182 = por %p180, %p181
    %p183 = scmp.ne.s32.totalorder %s175, %s177
    %p184 = scmp.eq.s32.totalorder %s20, 1
    %p185 = por %p183, %p184
    %p186 = scmp.ne.s32.totalorder %s177, %s178
    %p187 = scmp.eq.s32.totalorder %s20, 0
    %p188 = por %p186, %p187
    %p189 = scmp.ne.s32.totalorder %s177, %s178
    %p190 = scmp.eq.s32.totalorder %s21, 1
    %p191 = por %p189, %p190
    %p193 = scmp.ne.s32.totalorder %s178, %s192
    %p194 = scmp.eq.s32.totalorder %s21, 0
    %p195 = por %p193, %p194
    %s197 = sadd.s32 %s196, 1
    %p200 = scmp.eq.s32.totalorder %s15, 1
    %p201 = scmp.ne.s32.totalorder %s196, %s198
    %p202 = scmp.eq.s32.totalorder %s15, 0
    %p203 = por %p201, %p202
    %p204 = scmp.ne.s32.totalorder %s196, %s198
    %p205 = scmp.eq.s32.totalorder %s20, 1
    %p206 = por %p204, %p205
    %p207 = scmp.ne.s32.totalorder %s198, %s199
    %p208 = scmp.eq.s32.totalorder %s20, 0
    %p209 = por %p207, %p208
    %p210 = scmp.ne.s32.totalorder %s198, %s199
    %p211 = scmp.eq.s32.totalorder %s21, 1
    %p212 = por %p210, %p211
    %p214 = scmp.ne.s32.totalorder %s199, %s213
    %p215 = scmp.eq.s32.totalorder %s21, 0
    %p216 = por %p214, %p215
    %s217 = ssub.s32 %s15, %s22
    %p218 = scmp.eq.s32.totalorder %s217, 0
    %s220 = sadd.s32 %s219, 1
    %s221 = scalar_select %p218, %s219, %s220
    %p224 = pneg %p218
    %p225 = scmp.eq.s32.totalorder %s15, 1
    %p226 = por %p224, %p225
    %p227 = scmp.ne.s32.totalorder %s219, %s222
    %p228 = scmp.eq.s32.totalorder %s15, 0
    %p229 = por %p227, %p228
    %p230 = scmp.ne.s32.totalorder %s219, %s222
    %p231 = scmp.eq.s32.totalorder %s20, 1
    %p232 = por %p230, %p231
    %p233 = scmp.ne.s32.totalorder %s222, %s223
    %p234 = scmp.eq.s32.totalorder %s20, 0
    %p235 = por %p233, %p234
    %p236 = scmp.ne.s32.totalorder %s222, %s223
    %p237 = scmp.eq.s32.totalorder %s21, 1
    %p238 = por %p236, %p237
    %p240 = scmp.ne.s32.totalorder %s223, %s239
    %p241 = scmp.eq.s32.totalorder %s21, 0
    %p242 = por %p240, %p241
    %p243 = scmp.le.s32.totalorder 1, %s15
    %p244 = scmp.lt.s32.totalorder %s15, 3
    %p245 = pnand %p243, %p244
    %p246 = pneg %p245
    // Predicated region
    $region9: #{lis2img_forward.1} parent=5 // pred_check
      _
    $region10: #{lis2img_forward.1} parent=5 // pred_check_branch
      %248 = sbr.rel (%p245) target = $region12
    $region11: #{lis2img_forward.1} parent=5 // pred_region
      %s249 = ssub.s32 %s15, 1
      // Predicated region
      $region13: #{lis2img_forward.1} parent=11 // pred_check
        %p250 = pneg %p62
      $region14: #{lis2img_forward.1} parent=11 // pred_check_branch
        %252 = sbr.rel (%p250) target = $region16
      $region15: #{lis2img_forward.1} parent=11 // pred_region
        _
      $region16: #{lis2img_forward.1} parent=11 // pred_fallthru
        _
      // Predicated region
      $region17: #{lis2img_forward.1} parent=11 // pred_check
        %p253 = pneg %p83
      $region18: #{lis2img_forward.1} parent=11 // pred_check_branch
        %255 = sbr.rel (%p253) target = $region20
      $region19: #{lis2img_forward.1} parent=11 // pred_region
        _
      $region20: #{lis2img_forward.1} parent=11 // pred_fallthru
        _
      // Predicated region
      $region21: #{lis2img_forward.1} parent=11 // pred_check
        %p256 = pneg %p104
      $region22: #{lis2img_forward.1} parent=11 // pred_check_branch
        %258 = sbr.rel (%p256) target = $region24
      $region23: #{lis2img_forward.1} parent=11 // pred_region
        _
      $region24: #{lis2img_forward.1} parent=11 // pred_fallthru
        _
      // Predicated region
      $region25: #{lis2img_forward.1} parent=11 // pred_check
        %p259 = pneg %p125
      $region26: #{lis2img_forward.1} parent=11 // pred_check_branch
        %261 = sbr.rel (%p259) target = $region28
      $region27: #{lis2img_forward.1} parent=11 // pred_region
        _
      $region28: #{lis2img_forward.1} parent=11 // pred_fallthru
        _
      // Predicated region
      $region29: #{lis2img_forward.1} parent=11 // pred_check
        %p262 = pneg %p146
      $region30: #{lis2img_forward.1} parent=11 // pred_check_branch
        %264 = sbr.rel (%p262) target = $region32
      $region31: #{lis2img_forward.1} parent=11 // pred_region
        _
      $region32: #{lis2img_forward.1} parent=11 // pred_fallthru
        _
      // Predicated region
      $region33: #{lis2img_forward.1} parent=11 // pred_check
        %p265 = pneg %p167
      $region34: #{lis2img_forward.1} parent=11 // pred_check_branch
        %267 = sbr.rel (%p265) target = $region36
      $region35: #{lis2img_forward.1} parent=11 // pred_region
        _
      $region36: #{lis2img_forward.1} parent=11 // pred_fallthru
        _
      // Predicated region
      $region37: #{lis2img_forward.1} parent=11 // pred_check
        %p268 = pneg %p188
      $region38: #{lis2img_forward.1} parent=11 // pred_check_branch
        %270 = sbr.rel (%p268) target = $region40
      $region39: #{lis2img_forward.1} parent=11 // pred_region
        _
      $region40: #{lis2img_forward.1} parent=11 // pred_fallthru
        _
      // Predicated region
      $region41: #{lis2img_forward.1} parent=11 // pred_check
        %p271 = pneg %p209
      $region42: #{lis2img_forward.1} parent=11 // pred_check_branch
        %273 = sbr.rel (%p271) target = $region44
      $region43: #{lis2img_forward.1} parent=11 // pred_region
        _
      $region44: #{lis2img_forward.1} parent=11 // pred_fallthru
        _
    $region12: #{lis2img_forward.1} parent=5 // pred_fallthru
      _
    %p274 = scmp.lt.s32.totalorder %s15, 2
    // Predicated region
    $region45: #{lis2img_forward.1} parent=5 // pred_check
      %p275 = pneg %p274
    $region46: #{lis2img_forward.1} parent=5 // pred_check_branch
      %277 = sbr.rel (%p275) target = $region48
    $region47: #{lis2img_forward.1} parent=5 // pred_region
      // Predicated region
      $region49: #{lis2img_forward.1} parent=47 // pred_check
        %p278 = pneg %p35
      $region50: #{lis2img_forward.1} parent=47 // pred_check_branch
        %280 = sbr.rel (%p278) target = $region52
      $region51: #{lis2img_forward.1} parent=47 // pred_region
        %p281 = scmp.lt.s32.totalorder %s15, 1
        %s282 = scalar_select %p281, %s15, 1
        %s283 = smul.addr %s282, 8
        %s284 = smul.addr %s283, 4
        %s285 = scalar_lea.vmem %s0, %s284
      $region52: #{lis2img_forward.1} parent=47 // pred_fallthru
        _
    $region48: #{lis2img_forward.1} parent=5 // pred_fallthru
      _
    %p286 = scmp.le.s32.totalorder 1, %s15
    %p287 = scmp.lt.s32.totalorder %s15, 3
    %p288 = pnand %p286, %p287
    %p289 = pneg %p288
    // Predicated region
    $region53: #{lis2img_forward.1} parent=5 // pred_check
      _
    $region54: #{lis2img_forward.1} parent=5 // pred_check_branch
      %291 = sbr.rel (%p288) target = $region56
    $region55: #{lis2img_forward.1} parent=5 // pred_region
      %s292 = ssub.s32 %s15, 1
      %p293 = scmp.lt.s32.totalorder %s20, 1
      %s294 = scalar_select %p293, %s20, 1
      %s295 = smul.addr %s294, 8
      %s296 = smul.addr %s295, 4
      %s297 = scalar_lea.vmem %s0, %s296
      %p298 = pneg %p41
      %p299 = pneg %p38
      %p300 = pneg %p62
      %p301 = pneg %p59
      %p302 = pneg %p83
      %p303 = pneg %p80
      %p304 = pneg %p104
      %p305 = pneg %p101
      %p306 = pneg %p125
      %p307 = pneg %p122
      %p308 = pneg %p146
      %p309 = pneg %p143
      %p310 = pneg %p167
      %p311 = pneg %p164
      %p312 = pneg %p188
      %p313 = pneg %p185
      %p314 = pneg %p209
      %p315 = pneg %p206
      %p316 = pneg %p235
      %p317 = pneg %p232
      %p318 = scmp.lt.s32.totalorder %s20, 1
      %s319 = scalar_select %p318, %s20, 1
      %s320 = smul.addr %s319, 8
      %s321 = smul.addr %s320, 8
      %s322 = scalar_lea.vmem %s9, %s321
      %p323 = scmp.lt.s32.totalorder %s20, 1
      %s324 = scalar_select %p323, %s20, 1
      %s325 = smul.addr %s324, 8
      %s326 = smul.addr %s325, 4
      %s327 = scalar_lea.vmem %s0, %s326
      %p328 = scmp.lt.s32.totalorder %s20, 1
      %s329 = scalar_select %p328, %s20, 1
      %s330 = smul.addr %s329, 8
      %s331 = smul.addr %s330, 8
      %s332 = scalar_lea.vmem %s9, %s331
      %v334 = vld [vmem:[%s327] sm:$0xf]
      %v335 = vld [vmem:[%s327 + $0x4] sm:$0xf]
      %v336 = vld [vmem:[%s327 + $0x8] sm:$0xf]
      %v337 = vld [vmem:[%s327 + $0xc] sm:$0xf]
      %v338 = vld [vmem:[%s327 + $0x10] sm:$0xf]
      %v339 = vld [vmem:[%s327 + $0x14] sm:$0xf]
      %v340 = vld [vmem:[%s327 + $0x18] sm:$0xf]
      %v341 = vld [vmem:[%s327 + $0x1c] sm:$0xf]
      %v342 = vld [vmem:[%s2] sm:$0xff]
      %v343 = vld [vmem:[%s2 + $0x8] sm:$0xff]
      %v344 = vld [vmem:[%s2 + $0x10] sm:$0xff]
      %v345 = vld [vmem:[%s2 + $0x18] sm:$0xff]
      %v346 = vlaneseq
      %v347 = vshrl.u32 %v346, 7
      %v348 = vadd.s32 %v347, 8
      %v349 = vlaneseq
      %v350 = vand.u32 %v349, 127
      %v351 = vmul.u32 %v350, 2
      %v352 = vadd.s32 %v351, 4294967294
      %vm353 = vcmp.eq.s32.totalorder %v347, %v352
      %vm354 = vcmp.eq.s32.totalorder %v348, %v352
      %v355 = vsel %vm353, 1.0, 0.0
      %v356 = vsel %vm354, 1.0, 0.0
      %v357 = vpack.c.bf16 %v356, %v355
      %v366 = vunpack.c.l.b16 %v334
      %v367 = vunpack.c.l.b16 %v335
      %v368 = vunpack.c.l.b16 %v336
      %v369 = vunpack.c.l.b16 %v337
      %v370 = vunpack.c.l.b16 %v338
      %v371 = vunpack.c.l.b16 %v339
      %v372 = vunpack.c.l.b16 %v340
      %v373 = vunpack.c.l.b16 %v341
      %v374 = vpack.c.b16 %v367, %v366
      %v375 = vpack.c.b16 %v369, %v368
      %v376 = vpack.c.b16 %v371, %v370
      %v377 = vpack.c.b16 %v373, %v372
      %vm378 = vcmask 130048
      %v380 = vsel %vm378, %v374, 0
      %v383 = vsel %vm378, %v375, 0
      %v386 = vsel %vm378, %v376, 0
      %v389 = vsel %vm378, %v377, 0
      %391 = vmatprep.subr.bf16.mxu0 0
      %392 = vmatpush1.bf16.msra.mxu0 %v357
      %393 = vmatprep.subr.bf16.mxu0 0
      %394 = vmatpush1.bf16.msra.mxu0 0
      %395 = vmatprep.subr.bf16.mxu0 0
      %396 = vmatpush1.bf16.msra.mxu0 0
      %397 = vmatprep.subr.bf16.mxu0 0
      %398 = vmatpush1.bf16.msra.mxu0 0
      %399 = vmatprep.subr.bf16.mxu0 0
      %400 = vmatpush1.bf16.msra.mxu0 0
      %401 = vmatprep.subr.bf16.mxu0 0
      %402 = vmatpush1.bf16.msra.mxu0 0
      %403 = vmatprep.subr.bf16.mxu0 0
      %404 = vmatpush1.bf16.msra.mxu0 0
      %405 = vmatprep.subr.bf16.mxu0 0
      %406 = vmatpush1.bf16.msra.mxu0 0
      %407 = vmatprep.subr.bf16.mxu0 0
      %408 = vmatpush1.bf16.msra.mxu0 0
      %409 = vmatprep.subr.bf16.mxu0 0
      %410 = vmatpush1.bf16.msra.mxu0 0
      %411 = vmatprep.subr.bf16.mxu0 0
      %412 = vmatpush1.bf16.msra.mxu0 0
      %413 = vmatprep.subr.bf16.mxu0 0
      %414 = vmatpush1.bf16.msra.mxu0 0
      %415 = vmatprep.subr.bf16.mxu0 0
      %416 = vmatpush1.bf16.msra.mxu0 0
      %417 = vmatprep.subr.bf16.mxu0 0
      %418 = vmatpush1.bf16.msra.mxu0 0
      %419 = vmatprep.subr.bf16.mxu0 0
      %420 = vmatpush1.bf16.msra.mxu0 0
      %421 = vmatprep.subr.bf16.mxu0 0
      %422 = vmatpush1.bf16.msra.mxu0 0
      %423 = vmatprep.mubr.bf16.mxu0 0
      %424 = vmatmul.mubr.bf16.gmra.mrb[0].mxu0 %v380
      %v425 = vpop.f32.mrb[0].mxu0
      %v426 = vadd.f32 0.0, %v425
      %v427 = vpop.f32.mrb[0].mxu0
      %v428 = vpop.f32.mrb[0].mxu0
      %v429 = vadd.f32 0.0, %v428
      %v430 = vpop.f32.mrb[0].mxu0
      %431 = vmatprep.mubr.bf16.mxu0 0
      %432 = vmatmul.mubr.bf16.gmra.mrb[0].mxu0 %v383
      %v433 = vpop.f32.mrb[0].mxu0
      %v434 = vadd.f32 0.0, %v433
      %v435 = vpop.f32.mrb[0].mxu0
      %v436 = vpop.f32.mrb[0].mxu0
      %v437 = vadd.f32 0.0, %v436
      %v438 = vpop.f32.mrb[0].mxu0
      %439 = vmatprep.mubr.bf16.mxu0 0
      %440 = vmatmul.mubr.bf16.gmra.mrb[0].mxu0 %v386
      %v441 = vpop.f32.mrb[0].mxu0
      %v442 = vadd.f32 0.0, %v441
      %v443 = vpop.f32.mrb[0].mxu0
      %v444 = vpop.f32.mrb[0].mxu0
      %v445 = vadd.f32 0.0, %v444
      %v446 = vpop.f32.mrb[0].mxu0
      %447 = vmatprep.mubr.bf16.mxu0 0
      %448 = vmatmul.mubr.bf16.gmra.mrb[0].mxu0 %v389
      %v449 = vpop.f32.mrb[0].mxu0
      %v450 = vadd.f32 0.0, %v449
      %v451 = vpop.f32.mrb[0].mxu0
      %v452 = vpop.f32.mrb[0].mxu0
      %v453 = vadd.f32 0.0, %v452
      %v454 = vpop.f32.mrb[0].mxu0
      %455 = vdwg.mxu0
      %v456 = vpack.c.bf16 %v429, %v426
      %v457 = vpack.c.bf16 %v437, %v434
      %v458 = vpack.c.bf16 %v445, %v442
      %v459 = vpack.c.bf16 %v453, %v450
      %v460 = vld [vmem:[%s1] sm:$0xf]
      %v461 = vld [vmem:[%s1 + $0x4] sm:$0xf]
      %v462 = vld [vmem:[%s1 + $0x8] sm:$0xf]
      %v463 = vld [vmem:[%s1 + $0xc] sm:$0xf]
      %v468 = vunpack.c.l.b16 %v460
      %v469 = vunpack.c.l.b16 %v461
      %v470 = vunpack.c.l.b16 %v462
      %v471 = vunpack.c.l.b16 %v463
      %v472 = vpack.c.b16 %v469, %v468
      %v473 = vpack.c.b16 %v471, %v470
      %vm474 = vcmask 523264
      %v476 = vsel %vm474, %v472, 0
      %v479 = vsel %vm474, %v473, 0
      %481 = vmatprep.subr.bf16.mxu0 0
      %482 = vmatpush1.bf16.msra.mxu0 %v456
      %483 = vmatprep.subr.bf16.mxu0 0
      %484 = vmatpush1.bf16.msra.mxu0 %v457
      %485 = vmatprep.subr.bf16.mxu0 0
      %486 = vmatpush1.bf16.msra.mxu0 %v458
      %487 = vmatprep.subr.bf16.mxu0 0
      %488 = vmatpush1.bf16.msra.mxu0 %v459
      %489 = vmatprep.subr.bf16.mxu0 0
      %490 = vmatpush1.bf16.msra.mxu0 0
      %491 = vmatprep.subr.bf16.mxu0 0
      %492 = vmatpush1.bf16.msra.mxu0 0
      %493 = vmatprep.subr.bf16.mxu0 0
      %494 = vmatpush1.bf16.msra.mxu0 0
      %495 = vmatprep.subr.bf16.mxu0 0
      %496 = vmatpush1.bf16.msra.mxu0 0
      %497 = vmatprep.subr.bf16.mxu0 0
      %498 = vmatpush1.bf16.msra.mxu0 0
      %499 = vmatprep.subr.bf16.mxu0 0
      %500 = vmatpush1.bf16.msra.mxu0 0
      %501 = vmatprep.subr.bf16.mxu0 0
      %502 = vmatpush1.bf16.msra.mxu0 0
      %503 = vmatprep.subr.bf16.mxu0 0
      %504 = vmatpush1.bf16.msra.mxu0 0
      %505 = vmatprep.subr.bf16.mxu0 0
      %506 = vmatpush1.bf16.msra.mxu0 0
      %507 = vmatprep.subr.bf16.mxu0 0
      %508 = vmatpush1.bf16.msra.mxu0 0
      %509 = vmatprep.subr.bf16.mxu0 0
      %510 = vmatpush1.bf16.msra.mxu0 0
      %511 = vmatprep.subr.bf16.mxu0 0
      %512 = vmatpush1.bf16.msra.mxu0 0
      %513 = vmatprep.mubr.bf16.mxu0 0
      %514 = vmatmul.mubr.bf16.gmra.mrb[0].mxu0 %v476
      %v515 = vpop.f32.mrb[0].mxu0
      %v516 = vadd.f32 0.0, %v515
      %v517 = vpop.f32.mrb[0].mxu0
      %v518 = vpop.f32.mrb[0].mxu0
      %v519 = vadd.f32 0.0, %v518
      %v520 = vpop.f32.mrb[0].mxu0
      %521 = vmatprep.mubr.bf16.mxu0 0
      %522 = vmatmul.mubr.bf16.gmra.mrb[0].mxu0 %v479
      %v523 = vpop.f32.mrb[0].mxu0
      %v524 = vadd.f32 0.0, %v523
      %v525 = vpop.f32.mrb[0].mxu0
      %v526 = vpop.f32.mrb[0].mxu0
      %v527 = vadd.f32 0.0, %v526
      %v528 = vpop.f32.mrb[0].mxu0
      %529 = vdwg.mxu0
      %531 = vset.pattern.permute.xlu0 0
      %532 = vperm.xlu0 %531, %v342
      %v533 = vpop.permute.xlu0 %532
      %536 = vset.pattern.permute.xlu0 0
      %537 = vperm.xlu0 %536, %v343
      %v538 = vpop.permute.xlu0 %537
      %541 = vset.pattern.permute.xlu0 0
      %542 = vperm.xlu0 %541, %v344
      %v543 = vpop.permute.xlu0 %542
      %546 = vset.pattern.permute.xlu0 0
      %547 = vperm.xlu0 %546, %v345
      %v548 = vpop.permute.xlu0 %547
      %v550 = vadd.f32 %v533, %v516
      %v551 = vadd.f32 %v538, %v519
      %v552 = vadd.f32 %v543, %v524
      %v553 = vadd.f32 %v548, %v527
      %v554 = vadd.s32 %v351, 4294967295
      %vm555 = vcmp.eq.s32.totalorder %v347, %v554
      %vm556 = vcmp.eq.s32.totalorder %v348, %v554
      %v557 = vsel %vm555, 1.0, 0.0
      %v558 = vsel %vm556, 1.0, 0.0
      %v559 = vpack.c.bf16 %v558, %v557
      %560 = vmatprep.subr.bf16.mxu0 0
      %561 = vmatpush1.bf16.msra.mxu0 %v559
      %562 = vmatprep.subr.bf16.mxu0 0
      %563 = vmatpush1.bf16.msra.mxu0 0
      %564 = vmatprep.subr.bf16.mxu0 0
      %565 = vmatpush1.bf16.msra.mxu0 0
      %566 = vmatprep.subr.bf16.mxu0 0
      %567 = vmatpush1.bf16.msra.mxu0 0
      %568 = vmatprep.subr.bf16.mxu0 0
      %569 = vmatpush1.bf16.msra.mxu0 0
      %570 = vmatprep.subr.bf16.mxu0 0
      %571 = vmatpush1.bf16.msra.mxu0 0
      %572 = vmatprep.subr.bf16.mxu0 0
      %573 = vmatpush1.bf16.msra.mxu0 0
      %574 = vmatprep.subr.bf16.mxu0 0
      %575 = vmatpush1.bf16.msra.mxu0 0
      %576 = vmatprep.subr.bf16.mxu0 0
      %577 = vmatpush1.bf16.msra.mxu0 0
      %578 = vmatprep.subr.bf16.mxu0 0
      %579 = vmatpush1.bf16.msra.mxu0 0
      %580 = vmatprep.subr.bf16.mxu0 0
      %581 = vmatpush1.bf16.msra.mxu0 0
      %582 = vmatprep.subr.bf16.mxu0 0
      %583 = vmatpush1.bf16.msra.mxu0 0
      %584 = vmatprep.subr.bf16.mxu0 0
      %585 = vmatpush1.bf16.msra.mxu0 0
      %586 = vmatprep.subr.bf16.mxu0 0
      %587 = vmatpush1.bf16.msra.mxu0 0
      %588 = vmatprep.subr.bf16.mxu0 0
      %589 = vmatpush1.bf16.msra.mxu0 0
      %590 = vmatprep.subr.bf16.mxu0 0
      %591 = vmatpush1.bf16.msra.mxu0 0
      %592 = vmatprep.mubr.bf16.mxu0 0
      %593 = vmatmul.mubr.bf16.gmra.mrb[0].mxu0 %v380
      %v594 = vpop.f32.mrb[0].mxu0
      %v595 = vadd.f32 0.0, %v594
      %v596 = vpop.f32.mrb[0].mxu0
      %v597 = vpop.f32.mrb[0].mxu0
      %v598 = vadd.f32 0.0, %v597
      %v599 = vpop.f32.mrb[0].mxu0
      %600 = vmatprep.mubr.bf16.mxu0 0
      %601 = vmatmul.mubr.bf16.gmra.mrb[0].mxu0 %v383
      %v602 = vpop.f32.mrb[0].mxu0
      %v603 = vadd.f32 0.0, %v602
      %v604 = vpop.f32.mrb[0].mxu0
      %v605 = vpop.f32.mrb[0].mxu0
      %v606 = vadd.f32 0.0, %v605
      %v607 = vpop.f32.mrb[0].mxu0
      %608 = vmatprep.mubr.bf16.mxu0 0
      %609 = vmatmul.mubr.bf16.gmra.mrb[0].mxu0 %v386
      %v610 = vpop.f32.mrb[0].mxu0
      %v611 = vadd.f32 0.0, %v610
      %v612 = vpop.f32.mrb[0].mxu0
      %v613 = vpop.f32.mrb[0].mxu0
      %v614 = vadd.f32 0.0, %v613
      %v615 = vpop.f32.mrb[0].mxu0
      %616 = vmatprep.mubr.bf16.mxu0 0
      %617 = vmatmul.mubr.bf16.gmra.mrb[0].mxu0 %v389
      %v618 = vpop.f32.mrb[0].mxu0
      %v619 = vadd.f32 0.0, %v618
      %v620 = vpop.f32.mrb[0].mxu0
      %v621 = vpop.f32.mrb[0].mxu0
      %v622 = vadd.f32 0.0, %v621
      %v623 = vpop.f32.mrb[0].mxu0
      %624 = vdwg.mxu0
      %v625 = vpack.c.bf16 %v598, %v595
      %v626 = vpack.c.bf16 %v606, %v603
      %v627 = vpack.c.bf16 %v614, %v611
      %v628 = vpack.c.bf16 %v622, %v619
      %s629 = scalar_lea.vmem %s1, 16
      %v630 = vld [vmem:[%s629] sm:$0xf]
      %v631 = vld [vmem:[%s629 + $0x4] sm:$0xf]
      %v632 = vld [vmem:[%s629 + $0x8] sm:$0xf]
      %v633 = vld [vmem:[%s629 + $0xc] sm:$0xf]
      %v638 = vunpack.c.l.b16 %v630
      %v639 = vunpack.c.l.b16 %v631
      %v640 = vunpack.c.l.b16 %v632
      %v641 = vunpack.c.l.b16 %v633
      %v642 = vpack.c.b16 %v639, %v638
      %v643 = vpack.c.b16 %v641, %v640
      %v645 = vsel %vm474, %v642, 0
      %v648 = vsel %vm474, %v643, 0
      %650 = vmatprep.subr.bf16.mxu0 0
      %651 = vmatpush1.bf16.msra.mxu0 %v625
      %652 = vmatprep.subr.bf16.mxu0 0
      %653 = vmatpush1.bf16.msra.mxu0 %v626
      %654 = vmatprep.subr.bf16.mxu0 0
      %655 = vmatpush1.bf16.msra.mxu0 %v627
      %656 = vmatprep.subr.bf16.mxu0 0
      %657 = vmatpush1.bf16.msra.mxu0 %v628
      %658 = vmatprep.subr.bf16.mxu0 0
      %659 = vmatpush1.bf16.msra.mxu0 0
      %660 = vmatprep.subr.bf16.mxu0 0
      %661 = vmatpush1.bf16.msra.mxu0 0
      %662 = vmatprep.subr.bf16.mxu0 0
      %663 = vmatpush1.bf16.msra.mxu0 0
      %664 = vmatprep.subr.bf16.mxu0 0
      %665 = vmatpush1.bf16.msra.mxu0 0
      %666 = vmatprep.subr.bf16.mxu0 0
      %667 = vmatpush1.bf16.msra.mxu0 0
      %668 = vmatprep.subr.bf16.mxu0 0
      %669 = vmatpush1.bf16.msra.mxu0 0
      %670 = vmatprep.subr.bf16.mxu0 0
      %671 = vmatpush1.bf16.msra.mxu0 0
      %672 = vmatprep.subr.bf16.mxu0 0
      %673 = vmatpush1.bf16.msra.mxu0 0
      %674 = vmatprep.subr.bf16.mxu0 0
      %675 = vmatpush1.bf16.msra.mxu0 0
      %676 = vmatprep.subr.bf16.mxu0 0
      %677 = vmatpush1.bf16.msra.mxu0 0
      %678 = vmatprep.subr.bf16.mxu0 0
      %679 = vmatpush1.bf16.msra.mxu0 0
      %680 = vmatprep.subr.bf16.mxu0 0
      %681 = vmatpush1.bf16.msra.mxu0 0
      %682 = vmatprep.mubr.bf16.mxu0 0
      %683 = vmatmul.mubr.bf16.gmra.mrb[0].mxu0 %v645
      %v684 = vpop.f32.mrb[0].mxu0
      %v685 = vadd.f32 0.0, %v684
      %v686 = vpop.f32.mrb[0].mxu0
      %v687 = vpop.f32.mrb[0].mxu0
      %v688 = vadd.f32 0.0, %v687
      %v689 = vpop.f32.mrb[0].mxu0
      %690 = vmatprep.mubr.bf16.mxu0 0
      %691 = vmatmul.mubr.bf16.gmra.mrb[0].mxu0 %v648
      %v692 = vpop.f32.mrb[0].mxu0
      %v693 = vadd.f32 0.0, %v692
      %v694 = vpop.f32.mrb[0].mxu0
      %v695 = vpop.f32.mrb[0].mxu0
      %v696 = vadd.f32 0.0, %v695
      %v697 = vpop.f32.mrb[0].mxu0
      %698 = vdwg.mxu0
      %v699 = vadd.f32 %v550, %v685
      %v700 = vadd.f32 %v551, %v688
      %v701 = vadd.f32 %v552, %v693
      %v702 = vadd.f32 %v553, %v696
      %vm703 = vcmp.eq.s32.totalorder %v347, %v351
      %vm704 = vcmp.eq.s32.totalorder %v348, %v351
      %v705 = vsel %vm703, 1.0, 0.0
      %v706 = vsel %vm704, 1.0, 0.0
      %v707 = vpack.c.bf16 %v706, %v705
      %708 = vmatprep.subr.bf16.mxu0 0
      %709 = vmatpush1.bf16.msra.mxu0 %v707
      %710 = vmatprep.subr.bf16.mxu0 0
      %711 = vmatpush1.bf16.msra.mxu0 0
      %712 = vmatprep.subr.bf16.mxu0 0
      %713 = vmatpush1.bf16.msra.mxu0 0
      %714 = vmatprep.subr.bf16.mxu0 0
      %715 = vmatpush1.bf16.msra.mxu0 0
      %716 = vmatprep.subr.bf16.mxu0 0
      %717 = vmatpush1.bf16.msra.mxu0 0
      %718 = vmatprep.subr.bf16.mxu0 0
      %719 = vmatpush1.bf16.msra.mxu0 0
      %720 = vmatprep.subr.bf16.mxu0 0
      %721 = vmatpush1.bf16.msra.mxu0 0
      %722 = vmatprep.subr.bf16.mxu0 0
      %723 = vmatpush1.bf16.msra.mxu0 0
      %724 = vmatprep.subr.bf16.mxu0 0
      %725 = vmatpush1.bf16.msra.mxu0 0
      %726 = vmatprep.subr.bf16.mxu0 0
      %727 = vmatpush1.bf16.msra.mxu0 0
      %728 = vmatprep.subr.bf16.mxu0 0
      %729 = vmatpush1.bf16.msra.mxu0 0
      %730 = vmatprep.subr.bf16.mxu0 0
      %731 = vmatpush1.bf16.msra.mxu0 0
      %732 = vmatprep.subr.bf16.mxu0 0
      %733 = vmatpush1.bf16.msra.mxu0 0
      %734 = vmatprep.subr.bf16.mxu0 0
      %735 = vmatpush1.bf16.msra.mxu0 0
      %736 = vmatprep.subr.bf16.mxu0 0
      %737 = vmatpush1.bf16.msra.mxu0 0
      %738 = vmatprep.subr.bf16.mxu0 0
      %739 = vmatpush1.bf16.msra.mxu0 0
      %740 = vmatprep.mubr.bf16.mxu0 0
      %741 = vmatmul.mubr.bf16.gmra.mrb[0].mxu0 %v380
      %v742 = vpop.f32.mrb[0].mxu0
      %v743 = vadd.f32 0.0, %v742
      %v744 = vpop.f32.mrb[0].mxu0
      %v745 = vpop.f32.mrb[0].mxu0
      %v746 = vadd.f32 0.0, %v745
      %v747 = vpop.f32.mrb[0].mxu0
      %748 = vmatprep.mubr.bf16.mxu0 0
      %749 = vmatmul.mubr.bf16.gmra.mrb[0].mxu0 %v383
      %v750 = vpop.f32.mrb[0].mxu0
      %v751 = vadd.f32 0.0, %v750
      %v752 = vpop.f32.mrb[0].mxu0
      %v753 = vpop.f32.mrb[0].mxu0
      %v754 = vadd.f32 0.0, %v753
      %v755 = vpop.f32.mrb[0].mxu0
      %756 = vmatprep.mubr.bf16.mxu0 0
      %757 = vmatmul.mubr.bf16.gmra.mrb[0].mxu0 %v386
      %v758 = vpop.f32.mrb[0].mxu0
      %v759 = vadd.f32 0.0, %v758
      %v760 = vpop.f32.mrb[0].mxu0
      %v761 = vpop.f32.mrb[0].mxu0
      %v762 = vadd.f32 0.0, %v761
      %v763 = vpop.f32.mrb[0].mxu0
      %764 = vmatprep.mubr.bf16.mxu0 0
      %765 = vmatmul.mubr.bf16.gmra.mrb[0].mxu0 %v389
      %v766 = vpop.f32.mrb[0].mxu0
      %v767 = vadd.f32 0.0, %v766
      %v768 = vpop.f32.mrb[0].mxu0
      %v769 = vpop.f32.mrb[0].mxu0
      %v770 = vadd.f32 0.0, %v769
      %v771 = vpop.f32.mrb[0].mxu0
      %772 = vdwg.mxu0
      %v773 = vpack.c.bf16 %v746, %v743
      %v774 = vpack.c.bf16 %v754, %v751
      %v775 = vpack.c.bf16 %v762, %v759
      %v776 = vpack.c.bf16 %v770, %v767
      %s777 = scalar_lea.vmem %s1, 32
      %v778 = vld [vmem:[%s777] sm:$0xf]
      %v779 = vld [vmem:[%s777 + $0x4] sm:$0xf]
      %v780 = vld [vmem:[%s777 + $0x8] sm:$0xf]
      %v781 = vld [vmem:[%s777 + $0xc] sm:$0xf]
      %v786 = vunpack.c.l.b16 %v778
      %v787 = vunpack.c.l.b16 %v779
      %v788 = vunpack.c.l.b16 %v780
      %v789 = vunpack.c.l.b16 %v781
      %v790 = vpack.c.b16 %v787, %v786
      %v791 = vpack.c.b16 %v789, %v788
      %v793 = vsel %vm474, %v790, 0
      %v796 = vsel %vm474, %v791, 0
      %798 = vmatprep.subr.bf16.mxu0 0
      %799 = vmatpush1.bf16.msra.mxu0 %v773
      %800 = vmatprep.subr.bf16.mxu0 0
      %801 = vmatpush1.bf16.msra.mxu0 %v774
      %802 = vmatprep.subr.bf16.mxu0 0
      %803 = vmatpush1.bf16.msra.mxu0 %v775
      %804 = vmatprep.subr.bf16.mxu0 0
      %805 = vmatpush1.bf16.msra.mxu0 %v776
      %806 = vmatprep.subr.bf16.mxu0 0
      %807 = vmatpush1.bf16.msra.mxu0 0
      %808 = vmatprep.subr.bf16.mxu0 0
      %809 = vmatpush1.bf16.msra.mxu0 0
      %810 = vmatprep.subr.bf16.mxu0 0
      %811 = vmatpush1.bf16.msra.mxu0 0
      %812 = vmatprep.subr.bf16.mxu0 0
      %813 = vmatpush1.bf16.msra.mxu0 0
      %814 = vmatprep.subr.bf16.mxu0 0
      %815 = vmatpush1.bf16.msra.mxu0 0
      %816 = vmatprep.subr.bf16.mxu0 0
      %817 = vmatpush1.bf16.msra.mxu0 0
      %818 = vmatprep.subr.bf16.mxu0 0
      %819 = vmatpush1.bf16.msra.mxu0 0
      %820 = vmatprep.subr.bf16.mxu0 0
      %821 = vmatpush1.bf16.msra.mxu0 0
      %822 = vmatprep.subr.bf16.mxu0 0
      %823 = vmatpush1.bf16.msra.mxu0 0
      %824 = vmatprep.subr.bf16.mxu0 0
      %825 = vmatpush1.bf16.msra.mxu0 0
      %826 = vmatprep.subr.bf16.mxu0 0
      %827 = vmatpush1.bf16.msra.mxu0 0
      %828 = vmatprep.subr.bf16.mxu0 0
      %829 = vmatpush1.bf16.msra.mxu0 0
      %830 = vmatprep.mubr.bf16.mxu0 0
      %831 = vmatmul.mubr.bf16.gmra.mrb[0].mxu0 %v793
      %v832 = vpop.f32.mrb[0].mxu0
      %v833 = vadd.f32 0.0, %v832
      %v834 = vpop.f32.mrb[0].mxu0
      %v835 = vpop.f32.mrb[0].mxu0
      %v836 = vadd.f32 0.0, %v835
      %v837 = vpop.f32.mrb[0].mxu0
      %838 = vmatprep.mubr.bf16.mxu0 0
      %839 = vmatmul.mubr.bf16.gmra.mrb[0].mxu0 %v796
      %v840 = vpop.f32.mrb[0].mxu0
      %v841 = vadd.f32 0.0, %v840
      %v842 = vpop.f32.mrb[0].mxu0
      %v843 = vpop.f32.mrb[0].mxu0
      %v844 = vadd.f32 0.0, %v843
      %v845 = vpop.f32.mrb[0].mxu0
      %846 = vdwg.mxu0
      %v847 = vadd.f32 %v699, %v833
      %v848 = vadd.f32 %v700, %v836
      %v849 = vadd.f32 %v701, %v841
      %v850 = vadd.f32 %v702, %v844
      %v851 = vadd.s32 %v351, 1
      %vm852 = vcmp.eq.s32.totalorder %v347, %v851
      %vm853 = vcmp.eq.s32.totalorder %v348, %v851
      %v854 = vsel %vm852, 1.0, 0.0
      %v855 = vsel %vm853, 1.0, 0.0
      %v856 = vpack.c.bf16 %v855, %v854
      %857 = vmatprep.subr.bf16.mxu0 0
      %858 = vmatpush1.bf16.msra.mxu0 %v856
      %859 = vmatprep.subr.bf16.mxu0 0
      %860 = vmatpush1.bf16.msra.mxu0 0
      %861 = vmatprep.subr.bf16.mxu0 0
      %862 = vmatpush1.bf16.msra.mxu0 0
      %863 = vmatprep.subr.bf16.mxu0 0
      %864 = vmatpush1.bf16.msra.mxu0 0
      %865 = vmatprep.subr.bf16.mxu0 0
      %866 = vmatpush1.bf16.msra.mxu0 0
      %867 = vmatprep.subr.bf16.mxu0 0
      %868 = vmatpush1.bf16.msra.mxu0 0
      %869 = vmatprep.subr.bf16.mxu0 0
      %870 = vmatpush1.bf16.msra.mxu0 0
      %871 = vmatprep.subr.bf16.mxu0 0
      %872 = vmatpush1.bf16.msra.mxu0 0
      %873 = vmatprep.subr.bf16.mxu0 0
      %874 = vmatpush1.bf16.msra.mxu0 0
      %875 = vmatprep.subr.bf16.mxu0 0
      %876 = vmatpush1.bf16.msra.mxu0 0
      %877 = vmatprep.subr.bf16.mxu0 0
      %878 = vmatpush1.bf16.msra.mxu0 0
      %879 = vmatprep.subr.bf16.mxu0 0
      %880 = vmatpush1.bf16.msra.mxu0 0
      %881 = vmatprep.subr.bf16.mxu0 0
      %882 = vmatpush1.bf16.msra.mxu0 0
      %883 = vmatprep.subr.bf16.mxu0 0
      %884 = vmatpush1.bf16.msra.mxu0 0
      %885 = vmatprep.subr.bf16.mxu0 0
      %886 = vmatpush1.bf16.msra.mxu0 0
      %887 = vmatprep.subr.bf16.mxu0 0
      %888 = vmatpush1.bf16.msra.mxu0 0
      %889 = vmatprep.mubr.bf16.mxu0 0
      %890 = vmatmul.mubr.bf16.gmra.mrb[0].mxu0 %v380
      %v891 = vpop.f32.mrb[0].mxu0
      %v892 = vadd.f32 0.0, %v891
      %v893 = vpop.f32.mrb[0].mxu0
      %v894 = vpop.f32.mrb[0].mxu0
      %v895 = vadd.f32 0.0, %v894
      %v896 = vpop.f32.mrb[0].mxu0
      %897 = vmatprep.mubr.bf16.mxu0 0
      %898 = vmatmul.mubr.bf16.gmra.mrb[0].mxu0 %v383
      %v899 = vpop.f32.mrb[0].mxu0
      %v900 = vadd.f32 0.0, %v899
      %v901 = vpop.f32.mrb[0].mxu0
      %v902 = vpop.f32.mrb[0].mxu0
      %v903 = vadd.f32 0.0, %v902
      %v904 = vpop.f32.mrb[0].mxu0
      %905 = vmatprep.mubr.bf16.mxu0 0
      %906 = vmatmul.mubr.bf16.gmra.mrb[0].mxu0 %v386
      %v907 = vpop.f32.mrb[0].mxu0
      %v908 = vadd.f32 0.0, %v907
      %v909 = vpop.f32.mrb[0].mxu0
      %v910 = vpop.f32.mrb[0].mxu0
      %v911 = vadd.f32 0.0, %v910
      %v912 = vpop.f32.mrb[0].mxu0
      %913 = vmatprep.mubr.bf16.mxu0 0
      %914 = vmatmul.mubr.bf16.gmra.mrb[0].mxu0 %v389
      %v915 = vpop.f32.mrb[0].mxu0
      %v916 = vadd.f32 0.0, %v915
      %v917 = vpop.f32.mrb[0].mxu0
      %v918 = vpop.f32.mrb[0].mxu0
      %v919 = vadd.f32 0.0, %v918
      %v920 = vpop.f32.mrb[0].mxu0
      %921 = vdwg.mxu0
      %v922 = vpack.c.bf16 %v895, %v892
      %v923 = vpack.c.bf16 %v903, %v900
      %v924 = vpack.c.bf16 %v911, %v908
      %v925 = vpack.c.bf16 %v919, %v916
      %s926 = scalar_lea.vmem %s1, 48
      %v927 = vld [vmem:[%s926] sm:$0xf]
      %v928 = vld [vmem:[%s926 + $0x4] sm:$0xf]
      %v929 = vld [vmem:[%s926 + $0x8] sm:$0xf]
      %v930 = vld [vmem:[%s926 + $0xc] sm:$0xf]
      %v935 = vunpack.c.l.b16 %v927
      %v936 = vunpack.c.l.b16 %v928
      %v937 = vunpack.c.l.b16 %v929
      %v938 = vunpack.c.l.b16 %v930
      %v939 = vpack.c.b16 %v936, %v935
      %v940 = vpack.c.b16 %v938, %v937
      %v942 = vsel %vm474, %v939, 0
      %v945 = vsel %vm474, %v940, 0
      %947 = vmatprep.subr.bf16.mxu0 0
      %948 = vmatpush1.bf16.msra.mxu0 %v922
      %949 = vmatprep.subr.bf16.mxu0 0
      %950 = vmatpush1.bf16.msra.mxu0 %v923
      %951 = vmatprep.subr.bf16.mxu0 0
      %952 = vmatpush1.bf16.msra.mxu0 %v924
      %953 = vmatprep.subr.bf16.mxu0 0
      %954 = vmatpush1.bf16.msra.mxu0 %v925
      %955 = vmatprep.subr.bf16.mxu0 0
      %956 = vmatpush1.bf16.msra.mxu0 0
      %957 = vmatprep.subr.bf16.mxu0 0
      %958 = vmatpush1.bf16.msra.mxu0 0
      %959 = vmatprep.subr.bf16.mxu0 0
      %960 = vmatpush1.bf16.msra.mxu0 0
      %961 = vmatprep.subr.bf16.mxu0 0
      %962 = vmatpush1.bf16.msra.mxu0 0
      %963 = vmatprep.subr.bf16.mxu0 0
      %964 = vmatpush1.bf16.msra.mxu0 0
      %965 = vmatprep.subr.bf16.mxu0 0
      %966 = vmatpush1.bf16.msra.mxu0 0
      %967 = vmatprep.subr.bf16.mxu0 0
      %968 = vmatpush1.bf16.msra.mxu0 0
      %969 = vmatprep.subr.bf16.mxu0 0
      %970 = vmatpush1.bf16.msra.mxu0 0
      %971 = vmatprep.subr.bf16.mxu0 0
      %972 = vmatpush1.bf16.msra.mxu0 0
      %973 = vmatprep.subr.bf16.mxu0 0
      %974 = vmatpush1.bf16.msra.mxu0 0
      %975 = vmatprep.subr.bf16.mxu0 0
      %976 = vmatpush1.bf16.msra.mxu0 0
      %977 = vmatprep.subr.bf16.mxu0 0
      %978 = vmatpush1.bf16.msra.mxu0 0
      %979 = vmatprep.mubr.bf16.mxu0 0
      %980 = vmatmul.mubr.bf16.gmra.mrb[0].mxu0 %v942
      %v981 = vpop.f32.mrb[0].mxu0
      %v982 = vadd.f32 0.0, %v981
      %v983 = vpop.f32.mrb[0].mxu0
      %v984 = vpop.f32.mrb[0].mxu0
      %v985 = vadd.f32 0.0, %v984
      %v986 = vpop.f32.mrb[0].mxu0
      %987 = vmatprep.mubr.bf16.mxu0 0
      %988 = vmatmul.mubr.bf16.gmra.mrb[0].mxu0 %v945
      %v989 = vpop.f32.mrb[0].mxu0
      %v990 = vadd.f32 0.0, %v989
      %v991 = vpop.f32.mrb[0].mxu0
      %v992 = vpop.f32.mrb[0].mxu0
      %v993 = vadd.f32 0.0, %v992
      %v994 = vpop.f32.mrb[0].mxu0
      %995 = vdwg.mxu0
      %v996 = vadd.f32 %v847, %v982
      %v997 = vadd.f32 %v848, %v985
      %v998 = vadd.f32 %v849, %v990
      %v999 = vadd.f32 %v850, %v993
      %v1000 = vmax.f32 %v996, 0.0
      %v1001 = vmax.f32 %v997, 0.0
      %v1002 = vmax.f32 %v998, 0.0
      %v1003 = vmax.f32 %v999, 0.0
      %v1004 = vpack.c.bf16 %v1001, %v1000
      %v1005 = vpack.c.bf16 %v1003, %v1002
      %v1006 = vld [vmem:[%s4] sm:$0xff]
      %v1007 = vld [vmem:[%s4 + $0x8] sm:$0xff]
      %v1008 = vld [vmem:[%s4 + $0x10] sm:$0xff]
      %v1009 = vld [vmem:[%s4 + $0x18] sm:$0xff]
      %vm1010 = vcmask 72704
      %v1012 = vsel %vm1010, %v1004, 0
      %v1015 = vsel %vm1010, %v1005, 0
      %vm1017 = vcmask 1043456
      %vm1018 = vcmask 1044480
      %v1019 = vsel %vm1017, 4294967295, 65535
      %v1020 = vsel %vm1018, %v1019, 0
      %v1022 = vand.u32 %v357, %v1020
      %1024 = vmatprep.subr.bf16.mxu0 0
      %1025 = vmatpush1.bf16.msra.mxu0 %v1022
      %1026 = vmatprep.subr.bf16.mxu0 0
      %1027 = vmatpush1.bf16.msra.mxu0 0
      %1028 = vmatprep.subr.bf16.mxu0 0
      %1029 = vmatpush1.bf16.msra.mxu0 0
      %1030 = vmatprep.subr.bf16.mxu0 0
      %1031 = vmatpush1.bf16.msra.mxu0 0
      %1032 = vmatprep.subr.bf16.mxu0 0
      %1033 = vmatpush1.bf16.msra.mxu0 0
      %1034 = vmatprep.subr.bf16.mxu0 0
      %1035 = vmatpush1.bf16.msra.mxu0 0
      %1036 = vmatprep.subr.bf16.mxu0 0
      %1037 = vmatpush1.bf16.msra.mxu0 0
      %1038 = vmatprep.subr.bf16.mxu0 0
      %1039 = vmatpush1.bf16.msra.mxu0 0
      %1040 = vmatprep.subr.bf16.mxu0 0
      %1041 = vmatpush1.bf16.msra.mxu0 0
      %1042 = vmatprep.subr.bf16.mxu0 0
      %1043 = vmatpush1.bf16.msra.mxu0 0
      %1044 = vmatprep.subr.bf16.mxu0 0
      %1045 = vmatpush1.bf16.msra.mxu0 0
      %1046 = vmatprep.subr.bf16.mxu0 0
      %1047 = vmatpush1.bf16.msra.mxu0 0
      %1048 = vmatprep.subr.bf16.mxu0 0
      %1049 = vmatpush1.bf16.msra.mxu0 0
      %1050 = vmatprep.subr.bf16.mxu0 0
      %1051 = vmatpush1.bf16.msra.mxu0 0
      %1052 = vmatprep.subr.bf16.mxu0 0
      %1053 = vmatpush1.bf16.msra.mxu0 0
      %1054 = vmatprep.subr.bf16.mxu0 0
      %1055 = vmatpush1.bf16.msra.mxu0 0
      %1056 = vmatprep.mubr.bf16.mxu0 0
      %1057 = vmatmul.mubr.bf16.gmra.mrb[0].mxu0 %v1012
      %v1058 = vpop.f32.mrb[0].mxu0
      %v1059 = vadd.f32 0.0, %v1058
      %v1060 = vpop.f32.mrb[0].mxu0
      %v1061 = vpop.f32.mrb[0].mxu0
      %v1062 = vadd.f32 0.0, %v1061
      %v1063 = vpop.f32.mrb[0].mxu0
      %1064 = vmatprep.mubr.bf16.mxu0 0
      %1065 = vmatmul.mubr.bf16.gmra.mrb[0].mxu0 %v1015
      %v1066 = vpop.f32.mrb[0].mxu0
      %v1067 = vadd.f32 0.0, %v1066
      %v1068 = vpop.f32.mrb[0].mxu0
      %v1069 = vpop.f32.mrb[0].mxu0
      %v1070 = vadd.f32 0.0, %v1069
      %v1071 = vpop.f32.mrb[0].mxu0
      %1072 = vdwg.mxu0
      %v1073 = vpack.c.bf16 %v1062, %v1059
      %v1074 = vpack.c.bf16 %v1070, %v1067
      %v1075 = vld [vmem:[%s3] sm:$0xf]
      %v1076 = vld [vmem:[%s3 + $0x4] sm:$0xf]
      %v1077 = vld [vmem:[%s3 + $0x8] sm:$0xf]
      %v1078 = vld [vmem:[%s3 + $0xc] sm:$0xf]
      %v1083 = vunpack.c.l.b16 %v1075
      %v1084 = vunpack.c.l.b16 %v1076
      %v1085 = vunpack.c.l.b16 %v1077
      %v1086 = vunpack.c.l.b16 %v1078
      %v1087 = vpack.c.b16 %v1084, %v1083
      %v1088 = vpack.c.b16 %v1086, %v1085
      %vm1089 = vcmask 261120
      %v1091 = vsel %vm1089, %v1087, 0
      %v1094 = vsel %vm1089, %v1088, 0
      %1096 = vmatprep.subr.bf16.mxu0 0
      %1097 = vmatpush1.bf16.msra.mxu0 %v1073
      %1098 = vmatprep.subr.bf16.mxu0 0
      %1099 = vmatpush1.bf16.msra.mxu0 %v1074
      %1100 = vmatprep.subr.bf16.mxu0 0
      %1101 = vmatpush1.bf16.msra.mxu0 0
      %1102 = vmatprep.subr.bf16.mxu0 0
      %1103 = vmatpush1.bf16.msra.mxu0 0
      %1104 = vmatprep.subr.bf16.mxu0 0
      %1105 = vmatpush1.bf16.msra.mxu0 0
      %1106 = vmatprep.subr.bf16.mxu0 0
      %1107 = vmatpush1.bf16.msra.mxu0 0
      %1108 = vmatprep.subr.bf16.mxu0 0
      %1109 = vmatpush1.bf16.msra.mxu0 0
      %1110 = vmatprep.subr.bf16.mxu0 0
      %1111 = vmatpush1.bf16.msra.mxu0 0
      %1112 = vmatprep.subr.bf16.mxu0 0
      %1113 = vmatpush1.bf16.msra.mxu0 0
      %1114 = vmatprep.subr.bf16.mxu0 0
      %1115 = vmatpush1.bf16.msra.mxu0 0
      %1116 = vmatprep.subr.bf16.mxu0 0
      %1117 = vmatpush1.bf16.msra.mxu0 0
      %1118 = vmatprep.subr.bf16.mxu0 0
      %1119 = vmatpush1.bf16.msra.mxu0 0
      %1120 = vmatprep.subr.bf16.mxu0 0
      %1121 = vmatpush1.bf16.msra.mxu0 0
      %1122 = vmatprep.subr.bf16.mxu0 0
      %1123 = vmatpush1.bf16.msra.mxu0 0
      %1124 = vmatprep.subr.bf16.mxu0 0
      %1125 = vmatpush1.bf16.msra.mxu0 0
      %1126 = vmatprep.subr.bf16.mxu0 0
      %1127 = vmatpush1.bf16.msra.mxu0 0
      %1128 = vmatprep.mubr.bf16.mxu0 0
      %1129 = vmatmul.mubr.bf16.gmra.mrb[0].mxu0 %v1091
      %v1130 = vpop.f32.mrb[0].mxu0
      %v1131 = vadd.f32 0.0, %v1130
      %v1132 = vpop.f32.mrb[0].mxu0
      %v1133 = vpop.f32.mrb[0].mxu0
      %v1134 = vadd.f32 0.0, %v1133
      %v1135 = vpop.f32.mrb[0].mxu0
      %1136 = vmatprep.mubr.bf16.mxu0 0
      %1137 = vmatmul.mubr.bf16.gmra.mrb[0].mxu0 %v1094
      %v1138 = vpop.f32.mrb[0].mxu0
      %v1139 = vadd.f32 0.0, %v1138
      %v1140 = vpop.f32.mrb[0].mxu0
      %v1141 = vpop.f32.mrb[0].mxu0
      %v1142 = vadd.f32 0.0, %v1141
      %v1143 = vpop.f32.mrb[0].mxu0
      %1144 = vdwg.mxu0
      %1146 = vset.pattern.permute.xlu0 0
      %1147 = vperm.xlu0 %1146, %v1006
      %v1148 = vpop.permute.xlu0 %1147
      %1151 = vset.pattern.permute.xlu0 0
      %1152 = vperm.xlu0 %1151, %v1007
      %v1153 = vpop.permute.xlu0 %1152
      %1156 = vset.pattern.permute.xlu0 0
      %1157 = vperm.xlu0 %1156, %v1008
      %v1158 = vpop.permute.xlu0 %1157
      %1161 = vset.pattern.permute.xlu0 0
      %1162 = vperm.xlu0 %1161, %v1009
      %v1163 = vpop.permute.xlu0 %1162
      %v1165 = vadd.f32 %v1148, %v1131
      %v1166 = vadd.f32 %v1153, %v1134
      %v1167 = vadd.f32 %v1158, %v1139
      %v1168 = vadd.f32 %v1163, %v1142
      %v1170 = vand.u32 %v559, %v1020
      %1172 = vmatprep.subr.bf16.mxu0 0
      %1173 = vmatpush1.bf16.msra.mxu0 %v1170
      %1174 = vmatprep.subr.bf16.mxu0 0
      %1175 = vmatpush1.bf16.msra.mxu0 0
      %1176 = vmatprep.subr.bf16.mxu0 0
      %1177 = vmatpush1.bf16.msra.mxu0 0
      %1178 = vmatprep.subr.bf16.mxu0 0
      %1179 = vmatpush1.bf16.msra.mxu0 0
      %1180 = vmatprep.subr.bf16.mxu0 0
      %1181 = vmatpush1.bf16.msra.mxu0 0
      %1182 = vmatprep.subr.bf16.mxu0 0
      %1183 = vmatpush1.bf16.msra.mxu0 0
      %1184 = vmatprep.subr.bf16.mxu0 0
      %1185 = vmatpush1.bf16.msra.mxu0 0
      %1186 = vmatprep.subr.bf16.mxu0 0
      %1187 = vmatpush1.bf16.msra.mxu0 0
      %1188 = vmatprep.subr.bf16.mxu0 0
      %1189 = vmatpush1.bf16.msra.mxu0 0
      %1190 = vmatprep.subr.bf16.mxu0 0
      %1191 = vmatpush1.bf16.msra.mxu0 0
      %1192 = vmatprep.subr.bf16.mxu0 0
      %1193 = vmatpush1.bf16.msra.mxu0 0
      %1194 = vmatprep.subr.bf16.mxu0 0
      %1195 = vmatpush1.bf16.msra.mxu0 0
      %1196 = vmatprep.subr.bf16.mxu0 0
      %1197 = vmatpush1.bf16.msra.mxu0 0
      %1198 = vmatprep.subr.bf16.mxu0 0
      %1199 = vmatpush1.bf16.msra.mxu0 0
      %1200 = vmatprep.subr.bf16.mxu0 0
      %1201 = vmatpush1.bf16.msra.mxu0 0
      %1202 = vmatprep.subr.bf16.mxu0 0
      %1203 = vmatpush1.bf16.msra.mxu0 0
      %1204 = vmatprep.mubr.bf16.mxu0 0
      %1205 = vmatmul.mubr.bf16.gmra.mrb[0].mxu0 %v1012
      %v1206 = vpop.f32.mrb[0].mxu0
      %v1207 = vadd.f32 0.0, %v1206
      %v1208 = vpop.f32.mrb[0].mxu0
      %v1209 = vpop.f32.mrb[0].mxu0
      %v1210 = vadd.f32 0.0, %v1209
      %v1211 = vpop.f32.mrb[0].mxu0
      %1212 = vmatprep.mubr.bf16.mxu0 0
      %1213 = vmatmul.mubr.bf16.gmra.mrb[0].mxu0 %v1015
      %v1214 = vpop.f32.mrb[0].mxu0
      %v1215 = vadd.f32 0.0, %v1214
      %v1216 = vpop.f32.mrb[0].mxu0
      %v1217 = vpop.f32.mrb[0].mxu0
      %v1218 = vadd.f32 0.0, %v1217
      %v1219 = vpop.f32.mrb[0].mxu0
      %1220 = vdwg.mxu0
      %v1221 = vpack.c.bf16 %v1210, %v1207
      %v1222 = vpack.c.bf16 %v1218, %v1215
      %s1223 = scalar_lea.vmem %s3, 16
      %v1224 = vld [vmem:[%s1223] sm:$0xf]
      %v1225 = vld [vmem:[%s1223 + $0x4] sm:$0xf]
      %v1226 = vld [vmem:[%s1223 + $0x8] sm:$0xf]
      %v1227 = vld [vmem:[%s1223 + $0xc] sm:$0xf]
      %v1232 = vunpack.c.l.b16 %v1224
      %v1233 = vunpack.c.l.b16 %v1225
      %v1234 = vunpack.c.l.b16 %v1226
      %v1235 = vunpack.c.l.b16 %v1227
      %v1236 = vpack.c.b16 %v1233, %v1232
      %v1237 = vpack.c.b16 %v1235, %v1234
      %v1239 = vsel %vm1089, %v1236, 0
      %v1242 = vsel %vm1089, %v1237, 0
      %1244 = vmatprep.subr.bf16.mxu0 0
      %1245 = vmatpush1.bf16.msra.mxu0 %v1221
      %1246 = vmatprep.subr.bf16.mxu0 0
      %1247 = vmatpush1.bf16.msra.mxu0 %v1222
      %1248 = vmatprep.subr.bf16.mxu0 0
      %1249 = vmatpush1.bf16.msra.mxu0 0
      %1250 = vmatprep.subr.bf16.mxu0 0
      %1251 = vmatpush1.bf16.msra.mxu0 0
      %1252 = vmatprep.subr.bf16.mxu0 0
      %1253 = vmatpush1.bf16.msra.mxu0 0
      %1254 = vmatprep.subr.bf16.mxu0 0
      %1255 = vmatpush1.bf16.msra.mxu0 0
      %1256 = vmatprep.subr.bf16.mxu0 0
      %1257 = vmatpush1.bf16.msra.mxu0 0
      %1258 = vmatprep.subr.bf16.mxu0 0
      %1259 = vmatpush1.bf16.msra.mxu0 0
      %1260 = vmatprep.subr.bf16.mxu0 0
      %1261 = vmatpush1.bf16.msra.mxu0 0
      %1262 = vmatprep.subr.bf16.mxu0 0
      %1263 = vmatpush1.bf16.msra.mxu0 0
      %1264 = vmatprep.subr.bf16.mxu0 0
      %1265 = vmatpush1.bf16.msra.mxu0 0
      %1266 = vmatprep.subr.bf16.mxu0 0
      %1267 = vmatpush1.bf16.msra.mxu0 0
      %1268 = vmatprep.subr.bf16.mxu0 0
      %1269 = vmatpush1.bf16.msra.mxu0 0
      %1270 = vmatprep.subr.bf16.mxu0 0
      %1271 = vmatpush1.bf16.msra.mxu0 0
      %1272 = vmatprep.subr.bf16.mxu0 0
      %1273 = vmatpush1.bf16.msra.mxu0 0
      %1274 = vmatprep.subr.bf16.mxu0 0
      %1275 = vmatpush1.bf16.msra.mxu0 0
      %1276 = vmatprep.mubr.bf16.mxu0 0
      %1277 = vmatmul.mubr.bf16.gmra.mrb[0].mxu0 %v1239
      %v1278 = vpop.f32.mrb[0].mxu0
      %v1279 = vadd.f32 0.0, %v1278
      %v1280 = vpop.f32.mrb[0].mxu0
      %v1281 = vpop.f32.mrb[0].mxu0
      %v1282 = vadd.f32 0.0, %v1281
      %v1283 = vpop.f32.mrb[0].mxu0
      %1284 = vmatprep.mubr.bf16.mxu0 0
      %1285 = vmatmul.mubr.bf16.gmra.mrb[0].mxu0 %v1242
      %v1286 = vpop.f32.mrb[0].mxu0
      %v1287 = vadd.f32 0.0, %v1286
      %v1288 = vpop.f32.mrb[0].mxu0
      %v1289 = vpop.f32.mrb[0].mxu0
      %v1290 = vadd.f32 0.0, %v1289
      %v1291 = vpop.f32.mrb[0].mxu0
      %1292 = vdwg.mxu0
      %v1293 = vadd.f32 %v1165, %v1279
      %v1294 = vadd.f32 %v1166, %v1282
      %v1295 = vadd.f32 %v1167, %v1287
      %v1296 = vadd.f32 %v1168, %v1290
      %v1298 = vand.u32 %v707, %v1020
      %1300 = vmatprep.subr.bf16.mxu0 0
      %1301 = vmatpush1.bf16.msra.mxu0 %v1298
      %1302 = vmatprep.subr.bf16.mxu0 0
      %1303 = vmatpush1.bf16.msra.mxu0 0
      %1304 = vmatprep.subr.bf16.mxu0 0
      %1305 = vmatpush1.bf16.msra.mxu0 0
      %1306 = vmatprep.subr.bf16.mxu0 0
      %1307 = vmatpush1.bf16.msra.mxu0 0
      %1308 = vmatprep.subr.bf16.mxu0 0
      %1309 = vmatpush1.bf16.msra.mxu0 0
      %1310 = vmatprep.subr.bf16.mxu0 0
      %1311 = vmatpush1.bf16.msra.mxu0 0
      %1312 = vmatprep.subr.bf16.mxu0 0
      %1313 = vmatpush1.bf16.msra.mxu0 0
      %1314 = vmatprep.subr.bf16.mxu0 0
      %1315 = vmatpush1.bf16.msra.mxu0 0
      %1316 = vmatprep.subr.bf16.mxu0 0
      %1317 = vmatpush1.bf16.msra.mxu0 0
      %1318 = vmatprep.subr.bf16.mxu0 0
      %1319 = vmatpush1.bf16.msra.mxu0 0
      %1320 = vmatprep.subr.bf16.mxu0 0
      %1321 = vmatpush1.bf16.msra.mxu0 0
      %1322 = vmatprep.subr.bf16.mxu0 0
      %1323 = vmatpush1.bf16.msra.mxu0 0
      %1324 = vmatprep.subr.bf16.mxu0 0
      %1325 = vmatpush1.bf16.msra.mxu0 0
      %1326 = vmatprep.subr.bf16.mxu0 0
      %1327 = vmatpush1.bf16.msra.mxu0 0
      %1328 = vmatprep.subr.bf16.mxu0 0
      %1329 = vmatpush1.bf16.msra.mxu0 0
      %1330 = vmatprep.subr.bf16.mxu0 0
      %1331 = vmatpush1.bf16.msra.mxu0 0
      %1332 = vmatprep.mubr.bf16.mxu0 0
      %1333 = vmatmul.mubr.bf16.gmra.mrb[0].mxu0 %v1012
      %v1334 = vpop.f32.mrb[0].mxu0
      %v1335 = vadd.f32 0.0, %v1334
      %v1336 = vpop.f32.mrb[0].mxu0
      %v1337 = vpop.f32.mrb[0].mxu0
      %v1338 = vadd.f32 0.0, %v1337
      %v1339 = vpop.f32.mrb[0].mxu0
      %1340 = vmatprep.mubr.bf16.mxu0 0
      %1341 = vmatmul.mubr.bf16.gmra.mrb[0].mxu0 %v1015
      %v1342 = vpop.f32.mrb[0].mxu0
      %v1343 = vadd.f32 0.0, %v1342
      %v1344 = vpop.f32.mrb[0].mxu0
      %v1345 = vpop.f32.mrb[0].mxu0
      %v1346 = vadd.f32 0.0, %v1345
      %v1347 = vpop.f32.mrb[0].mxu0
      %1348 = vdwg.mxu0
      %v1349 = vpack.c.bf16 %v1338, %v1335
      %v1350 = vpack.c.bf16 %v1346, %v1343
      %s1351 = scalar_lea.vmem %s3, 32
      %v1352 = vld [vmem:[%s1351] sm:$0xf]
      %v1353 = vld [vmem:[%s1351 + $0x4] sm:$0xf]
      %v1354 = vld [vmem:[%s1351 + $0x8] sm:$0xf]
      %v1355 = vld [vmem:[%s1351 + $0xc] sm:$0xf]
      %v1360 = vunpack.c.l.b16 %v1352
      %v1361 = vunpack.c.l.b16 %v1353
      %v1362 = vunpack.c.l.b16 %v1354
      %v1363 = vunpack.c.l.b16 %v1355
      %v1364 = vpack.c.b16 %v1361, %v1360
      %v1365 = vpack.c.b16 %v1363, %v1362
      %v1367 = vsel %vm1089, %v1364, 0
      %v1370 = vsel %vm1089, %v1365, 0
      %1372 = vmatprep.subr.bf16.mxu0 0
      %1373 = vmatpush1.bf16.msra.mxu0 %v1349
      %1374 = vmatprep.subr.bf16.mxu0 0
      %1375 = vmatpush1.bf16.msra.mxu0 %v1350
      %1376 = vmatprep.subr.bf16.mxu0 0
      %1377 = vmatpush1.bf16.msra.mxu0 0
      %1378 = vmatprep.subr.bf16.mxu0 0
      %1379 = vmatpush1.bf16.msra.mxu0 0
      %1380 = vmatprep.subr.bf16.mxu0 0
      %1381 = vmatpush1.bf16.msra.mxu0 0
      %1382 = vmatprep.subr.bf16.mxu0 0
      %1383 = vmatpush1.bf16.msra.mxu0 0
      %1384 = vmatprep.subr.bf16.mxu0 0
      %1385 = vmatpush1.bf16.msra.mxu0 0
      %1386 = vmatprep.subr.bf16.mxu0 0
      %1387 = vmatpush1.bf16.msra.mxu0 0
      %1388 = vmatprep.subr.bf16.mxu0 0
      %1389 = vmatpush1.bf16.msra.mxu0 0
      %1390 = vmatprep.subr.bf16.mxu0 0
      %1391 = vmatpush1.bf16.msra.mxu0 0
      %1392 = vmatprep.subr.bf16.mxu0 0
      %1393 = vmatpush1.bf16.msra.mxu0 0
      %1394 = vmatprep.subr.bf16.mxu0 0
      %1395 = vmatpush1.bf16.msra.mxu0 0
      %1396 = vmatprep.subr.bf16.mxu0 0
      %1397 = vmatpush1.bf16.msra.mxu0 0
      %1398 = vmatprep.subr.bf16.mxu0 0
      %1399 = vmatpush1.bf16.msra.mxu0 0
      %1400 = vmatprep.subr.bf16.mxu0 0
      %1401 = vmatpush1.bf16.msra.mxu0 0
      %1402 = vmatprep.subr.bf16.mxu0 0
      %1403 = vmatpush1.bf16.msra.mxu0 0
      %1404 = vmatprep.mubr.bf16.mxu0 0
      %1405 = vmatmul.mubr.bf16.gmra.mrb[0].mxu0 %v1367
      %v1406 = vpop.f32.mrb[0].mxu0
      %v1407 = vadd.f32 0.0, %v1406
      %v1408 = vpop.f32.mrb[0].mxu0
      %v1409 = vpop.f32.mrb[0].mxu0
      %v1410 = vadd.f32 0.0, %v1409
      %v1411 = vpop.f32.mrb[0].mxu0
      %1412 = vmatprep.mubr.bf16.mxu0 0
      %1413 = vmatmul.mubr.bf16.gmra.mrb[0].mxu0 %v1370
      %v1414 = vpop.f32.mrb[0].mxu0
      %v1415 = vadd.f32 0.0, %v1414
      %v1416 = vpop.f32.mrb[0].mxu0
      %v1417 = vpop.f32.mrb[0].mxu0
      %v1418 = vadd.f32 0.0, %v1417
      %v1419 = vpop.f32.mrb[0].mxu0
      %1420 = vdwg.mxu0
      %v1421 = vadd.f32 %v1293, %v1407
      %v1422 = vadd.f32 %v1294, %v1410
      %v1423 = vadd.f32 %v1295, %v1415
      %v1424 = vadd.f32 %v1296, %v1418
      %v1426 = vand.u32 %v856, %v1020
      %1428 = vmatprep.subr.bf16.mxu0 0
      %1429 = vmatpush1.bf16.msra.mxu0 %v1426
      %1430 = vmatprep.subr.bf16.mxu0 0
      %1431 = vmatpush1.bf16.msra.mxu0 0
      %1432 = vmatprep.subr.bf16.mxu0 0
      %1433 = vmatpush1.bf16.msra.mxu0 0
      %1434 = vmatprep.subr.bf16.mxu0 0
      %1435 = vmatpush1.bf16.msra.mxu0 0
      %1436 = vmatprep.subr.bf16.mxu0 0
      %1437 = vmatpush1.bf16.msra.mxu0 0
      %1438 = vmatprep.subr.bf16.mxu0 0
      %1439 = vmatpush1.bf16.msra.mxu0 0
      %1440 = vmatprep.subr.bf16.mxu0 0
      %1441 = vmatpush1.bf16.msra.mxu0 0
      %1442 = vmatprep.subr.bf16.mxu0 0
      %1443 = vmatpush1.bf16.msra.mxu0 0
      %1444 = vmatprep.subr.bf16.mxu0 0
      %1445 = vmatpush1.bf16.msra.mxu0 0
      %1446 = vmatprep.subr.bf16.mxu0 0
      %1447 = vmatpush1.bf16.msra.mxu0 0
      %1448 = vmatprep.subr.bf16.mxu0 0
      %1449 = vmatpush1.bf16.msra.mxu0 0
      %1450 = vmatprep.subr.bf16.mxu0 0
      %1451 = vmatpush1.bf16.msra.mxu0 0
      %1452 = vmatprep.subr.bf16.mxu0 0
      %1453 = vmatpush1.bf16.msra.mxu0 0
      %1454 = vmatprep.subr.bf16.mxu0 0
      %1455 = vmatpush1.bf16.msra.mxu0 0
      %1456 = vmatprep.subr.bf16.mxu0 0
      %1457 = vmatpush1.bf16.msra.mxu0 0
      %1458 = vmatprep.subr.bf16.mxu0 0
      %1459 = vmatpush1.bf16.msra.mxu0 0
      %1460 = vmatprep.mubr.bf16.mxu0 0
      %1461 = vmatmul.mubr.bf16.gmra.mrb[0].mxu0 %v1012
      %v1462 = vpop.f32.mrb[0].mxu0
      %v1463 = vadd.f32 0.0, %v1462
      %v1464 = vpop.f32.mrb[0].mxu0
      %v1465 = vpop.f32.mrb[0].mxu0
      %v1466 = vadd.f32 0.0, %v1465
      %v1467 = vpop.f32.mrb[0].mxu0
      %1468 = vmatprep.mubr.bf16.mxu0 0
      %1469 = vmatmul.mubr.bf16.gmra.mrb[0].mxu0 %v1015
      %v1470 = vpop.f32.mrb[0].mxu0
      %v1471 = vadd.f32 0.0, %v1470
      %v1472 = vpop.f32.mrb[0].mxu0
      %v1473 = vpop.f32.mrb[0].mxu0
      %v1474 = vadd.f32 0.0, %v1473
      %v1475 = vpop.f32.mrb[0].mxu0
      %1476 = vdwg.mxu0
      %v1477 = vpack.c.bf16 %v1466, %v1463
      %v1478 = vpack.c.bf16 %v1474, %v1471
      %s1479 = scalar_lea.vmem %s3, 48
      %v1480 = vld [vmem:[%s1479] sm:$0xf]
      %v1481 = vld [vmem:[%s1479 + $0x4] sm:$0xf]
      %v1482 = vld [vmem:[%s1479 + $0x8] sm:$0xf]
      %v1483 = vld [vmem:[%s1479 + $0xc] sm:$0xf]
      %v1488 = vunpack.c.l.b16 %v1480
      %v1489 = vunpack.c.l.b16 %v1481
      %v1490 = vunpack.c.l.b16 %v1482
      %v1491 = vunpack.c.l.b16 %v1483
      %v1492 = vpack.c.b16 %v1489, %v1488
      %v1493 = vpack.c.b16 %v1491, %v1490
      %v1495 = vsel %vm1089, %v1492, 0
      %v1498 = vsel %vm1089, %v1493, 0
      %1500 = vmatprep.subr.bf16.mxu0 0
      %1501 = vmatpush1.bf16.msra.mxu0 %v1477
      %1502 = vmatprep.subr.bf16.mxu0 0
      %1503 = vmatpush1.bf16.msra.mxu0 %v1478
      %1504 = vmatprep.subr.bf16.mxu0 0
      %1505 = vmatpush1.bf16.msra.mxu0 0
      %1506 = vmatprep.subr.bf16.mxu0 0
      %1507 = vmatpush1.bf16.msra.mxu0 0
      %1508 = vmatprep.subr.bf16.mxu0 0
      %1509 = vmatpush1.bf16.msra.mxu0 0
      %1510 = vmatprep.subr.bf16.mxu0 0
      %1511 = vmatpush1.bf16.msra.mxu0 0
      %1512 = vmatprep.subr.bf16.mxu0 0
      %1513 = vmatpush1.bf16.msra.mxu0 0
      %1514 = vmatprep.subr.bf16.mxu0 0
      %1515 = vmatpush1.bf16.msra.mxu0 0
      %1516 = vmatprep.subr.bf16.mxu0 0
      %1517 = vmatpush1.bf16.msra.mxu0 0
      %1518 = vmatprep.subr.bf16.mxu0 0
      %1519 = vmatpush1.bf16.msra.mxu0 0
      %1520 = vmatprep.subr.bf16.mxu0 0
      %1521 = vmatpush1.bf16.msra.mxu0 0
      %1522 = vmatprep.subr.bf16.mxu0 0
      %1523 = vmatpush1.bf16.msra.mxu0 0
      %1524 = vmatprep.subr.bf16.mxu0 0
      %1525 = vmatpush1.bf16.msra.mxu0 0
      %1526 = vmatprep.subr.bf16.mxu0 0
      %1527 = vmatpush1.bf16.msra.mxu0 0
      %1528 = vmatprep.subr.bf16.mxu0 0
      %1529 = vmatpush1.bf16.msra.mxu0 0
      %1530 = vmatprep.subr.bf16.mxu0 0
      %1531 = vmatpush1.bf16.msra.mxu0 0
      %1532 = vmatprep.mubr.bf16.mxu0 0
      %1533 = vmatmul.mubr.bf16.gmra.mrb[0].mxu0 %v1495
      %v1534 = vpop.f32.mrb[0].mxu0
      %v1535 = vadd.f32 0.0, %v1534
      %v1536 = vpop.f32.mrb[0].mxu0
      %v1537 = vpop.f32.mrb[0].mxu0
      %v1538 = vadd.f32 0.0, %v1537
      %v1539 = vpop.f32.mrb[0].mxu0
      %1540 = vmatprep.mubr.bf16.mxu0 0
      %1541 = vmatmul.mubr.bf16.gmra.mrb[0].mxu0 %v1498
      %v1542 = vpop.f32.mrb[0].mxu0
      %v1543 = vadd.f32 0.0, %v1542
      %v1544 = vpop.f32.mrb[0].mxu0
      %v1545 = vpop.f32.mrb[0].mxu0
      %v1546 = vadd.f32 0.0, %v1545
      %v1547 = vpop.f32.mrb[0].mxu0
      %1548 = vdwg.mxu0
      %v1549 = vadd.f32 %v1421, %v1535
      %v1550 = vadd.f32 %v1422, %v1538
      %v1551 = vadd.f32 %v1423, %v1543
      %v1552 = vadd.f32 %v1424, %v1546
      %v1553 = vmax.f32 %v1549, 0.0
      %v1554 = vmax.f32 %v1550, 0.0
      %v1555 = vmax.f32 %v1551, 0.0
      %v1556 = vmax.f32 %v1552, 0.0
      %v1557 = vpack.c.bf16 %v1554, %v1553
      %v1558 = vpack.c.bf16 %v1556, %v1555
      %v1559 = vld [vmem:[%s6] sm:$0xff]
      %v1560 = vld [vmem:[%s6 + $0x8] sm:$0xff]
      %v1561 = vld [vmem:[%s6 + $0x10] sm:$0xff]
      %v1562 = vld [vmem:[%s6 + $0x18] sm:$0xff]
      %v1563 = vmul.u32 %v347, 2
      %v1564 = vadd.s32 %v1563, 4294967294
      %vm1565 = vcmp.eq.s32.totalorder %v350, %v1564
      %v1566 = vsel %vm1565, 1.0, 0.0
      %v1567 = vpack.c.bf16 %v1566, %v1566
      %vm1568 = vcmask 39936
      %v1570 = vsel %vm1568, %v1557, 0
      %v1573 = vsel %vm1568, %v1558, 0
      %vm1575 = vcmask 1041408
      %vm1576 = vcmask 1042432
      %v1577 = vsel %vm1575, 4294967295, 65535
      %v1578 = vsel %vm1576, %v1577, 0
      %v1580 = vand.u32 %v1567, %v1578
      %1582 = vmatprep.subr.bf16.mxu0 0
      %1583 = vmatpush1.bf16.msra.mxu0 %v1580
      %1584 = vmatprep.subr.bf16.mxu0 0
      %1585 = vmatpush1.bf16.msra.mxu0 0
      %1586 = vmatprep.subr.bf16.mxu0 0
      %1587 = vmatpush1.bf16.msra.mxu0 0
      %1588 = vmatprep.subr.bf16.mxu0 0
      %1589 = vmatpush1.bf16.msra.mxu0 0
      %1590 = vmatprep.subr.bf16.mxu0 0
      %1591 = vmatpush1.bf16.msra.mxu0 0
      %1592 = vmatprep.subr.bf16.mxu0 0
      %1593 = vmatpush1.bf16.msra.mxu0 0
      %1594 = vmatprep.subr.bf16.mxu0 0
      %1595 = vmatpush1.bf16.msra.mxu0 0
      %1596 = vmatprep.subr.bf16.mxu0 0
      %1597 = vmatpush1.bf16.msra.mxu0 0
      %1598 = vmatprep.subr.bf16.mxu0 0
      %1599 = vmatpush1.bf16.msra.mxu0 0
      %1600 = vmatprep.subr.bf16.mxu0 0
      %1601 = vmatpush1.bf16.msra.mxu0 0
      %1602 = vmatprep.subr.bf16.mxu0 0
      %1603 = vmatpush1.bf16.msra.mxu0 0
      %1604 = vmatprep.subr.bf16.mxu0 0
      %1605 = vmatpush1.bf16.msra.mxu0 0
      %1606 = vmatprep.subr.bf16.mxu0 0
      %1607 = vmatpush1.bf16.msra.mxu0 0
      %1608 = vmatprep.subr.bf16.mxu0 0
      %1609 = vmatpush1.bf16.msra.mxu0 0
      %1610 = vmatprep.subr.bf16.mxu0 0
      %1611 = vmatpush1.bf16.msra.mxu0 0
      %1612 = vmatprep.subr.bf16.mxu0 0
      %1613 = vmatpush1.bf16.msra.mxu0 0
      %1614 = vmatprep.mubr.bf16.mxu0 0
      %1615 = vmatmul.mubr.bf16.gmra.mrb[0].mxu0 %v1570
      %v1616 = vpop.f32.mrb[0].mxu0
      %v1617 = vadd.f32 0.0, %v1616
      %v1618 = vpop.f32.mrb[0].mxu0
      %v1619 = vpop.f32.mrb[0].mxu0
      %v1620 = vadd.f32 0.0, %v1619
      %v1621 = vpop.f32.mrb[0].mxu0
      %1622 = vmatprep.mubr.bf16.mxu0 0
      %1623 = vmatmul.mubr.bf16.gmra.mrb[0].mxu0 %v1573
      %v1624 = vpop.f32.mrb[0].mxu0
      %v1625 = vadd.f32 0.0, %v1624
      %v1626 = vpop.f32.mrb[0].mxu0
      %v1627 = vpop.f32.mrb[0].mxu0
      %v1628 = vadd.f32 0.0, %v1627
      %v1629 = vpop.f32.mrb[0].mxu0
      %1630 = vdwg.mxu0
      %v1631 = vpack.c.bf16 %v1620, %v1617
      %v1632 = vpack.c.bf16 %v1628, %v1625
      %v1633 = vld [vmem:[%s5] sm:$0xf]
      %v1634 = vld [vmem:[%s5 + $0x4] sm:$0xf]
      %v1635 = vld [vmem:[%s5 + $0x8] sm:$0xf]
      %v1636 = vld [vmem:[%s5 + $0xc] sm:$0xf]
      %v1641 = vunpack.c.l.b16 %v1633
      %v1642 = vunpack.c.l.b16 %v1634
      %v1643 = vunpack.c.l.b16 %v1635
      %v1644 = vunpack.c.l.b16 %v1636
      %v1645 = vpack.c.b16 %v1642, %v1641
      %v1646 = vpack.c.b16 %v1644, %v1643
      %v1648 = vsel %vm1089, %v1645, 0
      %v1651 = vsel %vm1089, %v1646, 0
      %1653 = vmatprep.subr.bf16.mxu0 0
      %1654 = vmatpush1.bf16.msra.mxu0 %v1631
      %1655 = vmatprep.subr.bf16.mxu0 0
      %1656 = vmatpush1.bf16.msra.mxu0 %v1632
      %1657 = vmatprep.subr.bf16.mxu0 0
      %1658 = vmatpush1.bf16.msra.mxu0 0
      %1659 = vmatprep.subr.bf16.mxu0 0
      %1660 = vmatpush1.bf16.msra.mxu0 0
      %1661 = vmatprep.subr.bf16.mxu0 0
      %1662 = vmatpush1.bf16.msra.mxu0 0
      %1663 = vmatprep.subr.bf16.mxu0 0
      %1664 = vmatpush1.bf16.msra.mxu0 0
      %1665 = vmatprep.subr.bf16.mxu0 0
      %1666 = vmatpush1.bf16.msra.mxu0 0
      %1667 = vmatprep.subr.bf16.mxu0 0
      %1668 = vmatpush1.bf16.msra.mxu0 0
      %1669 = vmatprep.subr.bf16.mxu0 0
      %1670 = vmatpush1.bf16.msra.mxu0 0
      %1671 = vmatprep.subr.bf16.mxu0 0
      %1672 = vmatpush1.bf16.msra.mxu0 0
      %1673 = vmatprep.subr.bf16.mxu0 0
      %1674 = vmatpush1.bf16.msra.mxu0 0
      %1675 = vmatprep.subr.bf16.mxu0 0
      %1676 = vmatpush1.bf16.msra.mxu0 0
      %1677 = vmatprep.subr.bf16.mxu0 0
      %1678 = vmatpush1.bf16.msra.mxu0 0
      %1679 = vmatprep.subr.bf16.mxu0 0
      %1680 = vmatpush1.bf16.msra.mxu0 0
      %1681 = vmatprep.subr.bf16.mxu0 0
      %1682 = vmatpush1.bf16.msra.mxu0 0
      %1683 = vmatprep.subr.bf16.mxu0 0
      %1684 = vmatpush1.bf16.msra.mxu0 0
      %1685 = vmatprep.mubr.bf16.mxu0 0
      %1686 = vmatmul.mubr.bf16.gmra.mrb[0].mxu0 %v1648
      %v1687 = vpop.f32.mrb[0].mxu0
      %v1688 = vadd.f32 0.0, %v1687
      %v1689 = vpop.f32.mrb[0].mxu0
      %v1690 = vpop.f32.mrb[0].mxu0
      %v1691 = vadd.f32 0.0, %v1690
      %v1692 = vpop.f32.mrb[0].mxu0
      %1693 = vmatprep.mubr.bf16.mxu0 0
      %1694 = vmatmul.mubr.bf16.gmra.mrb[0].mxu0 %v1651
      %v1695 = vpop.f32.mrb[0].mxu0
      %v1696 = vadd.f32 0.0, %v1695
      %v1697 = vpop.f32.mrb[0].mxu0
      %v1698 = vpop.f32.mrb[0].mxu0
      %v1699 = vadd.f32 0.0, %v1698
      %v1700 = vpop.f32.mrb[0].mxu0
      %1701 = vdwg.mxu0
      %1703 = vset.pattern.permute.xlu0 0
      %1704 = vperm.xlu0 %1703, %v1559
      %v1705 = vpop.permute.xlu0 %1704
      %1708 = vset.pattern.permute.xlu0 0
      %1709 = vperm.xlu0 %1708, %v1560
      %v1710 = vpop.permute.xlu0 %1709
      %1713 = vset.pattern.permute.xlu0 0
      %1714 = vperm.xlu0 %1713, %v1561
      %v1715 = vpop.permute.xlu0 %1714
      %1718 = vset.pattern.permute.xlu0 0
      %1719 = vperm.xlu0 %1718, %v1562
      %v1720 = vpop.permute.xlu0 %1719
      %v1722 = vadd.f32 %v1705, %v1688
      %v1723 = vadd.f32 %v1710, %v1691
      %v1724 = vadd.f32 %v1715, %v1696
      %v1725 = vadd.f32 %v1720, %v1699
      %v1726 = vadd.s32 %v1563, 4294967295
      %vm1727 = vcmp.eq.s32.totalorder %v350, %v1726
      %v1728 = vsel %vm1727, 1.0, 0.0
      %v1729 = vpack.c.bf16 %v1728, %v1728
      %v1731 = vand.u32 %v1729, %v1578
      %1733 = vmatprep.subr.bf16.mxu0 0
      %1734 = vmatpush1.bf16.msra.mxu0 %v1731
      %1735 = vmatprep.subr.bf16.mxu0 0
      %1736 = vmatpush1.bf16.msra.mxu0 0
      %1737 = vmatprep.subr.bf16.mxu0 0
      %1738 = vmatpush1.bf16.msra.mxu0 0
      %1739 = vmatprep.subr.bf16.mxu0 0
      %1740 = vmatpush1.bf16.msra.mxu0 0
      %1741 = vmatprep.subr.bf16.mxu0 0
      %1742 = vmatpush1.bf16.msra.mxu0 0
      %1743 = vmatprep.subr.bf16.mxu0 0
      %1744 = vmatpush1.bf16.msra.mxu0 0
      %1745 = vmatprep.subr.bf16.mxu0 0
      %1746 = vmatpush1.bf16.msra.mxu0 0
      %1747 = vmatprep.subr.bf16.mxu0 0
      %1748 = vmatpush1.bf16.msra.mxu0 0
      %1749 = vmatprep.subr.bf16.mxu0 0
      %1750 = vmatpush1.bf16.msra.mxu0 0
      %1751 = vmatprep.subr.bf16.mxu0 0
      %1752 = vmatpush1.bf16.msra.mxu0 0
      %1753 = vmatprep.subr.bf16.mxu0 0
      %1754 = vmatpush1.bf16.msra.mxu0 0
      %1755 = vmatprep.subr.bf16.mxu0 0
      %1756 = vmatpush1.bf16.msra.mxu0 0
      %1757 = vmatprep.subr.bf16.mxu0 0
      %1758 = vmatpush1.bf16.msra.mxu0 0
      %1759 = vmatprep.subr.bf16.mxu0 0
      %1760 = vmatpush1.bf16.msra.mxu0 0
      %1761 = vmatprep.subr.bf16.mxu0 0
      %1762 = vmatpush1.bf16.msra.mxu0 0
      %1763 = vmatprep.subr.bf16.mxu0 0
      %1764 = vmatpush1.bf16.msra.mxu0 0
      %1765 = vmatprep.mubr.bf16.mxu0 0
      %1766 = vmatmul.mubr.bf16.gmra.mrb[0].mxu0 %v1570
      %v1767 = vpop.f32.mrb[0].mxu0
      %v1768 = vadd.f32 0.0, %v1767
      %v1769 = vpop.f32.mrb[0].mxu0
      %v1770 = vpop.f32.mrb[0].mxu0
      %v1771 = vadd.f32 0.0, %v1770
      %v1772 = vpop.f32.mrb[0].mxu0
      %1773 = vmatprep.mubr.bf16.mxu0 0
      %1774 = vmatmul.mubr.bf16.gmra.mrb[0].mxu0 %v1573
      %v1775 = vpop.f32.mrb[0].mxu0
      %v1776 = vadd.f32 0.0, %v1775
      %v1777 = vpop.f32.mrb[0].mxu0
      %v1778 = vpop.f32.mrb[0].mxu0
      %v1779 = vadd.f32 0.0, %v1778
      %v1780 = vpop.f32.mrb[0].mxu0
      %1781 = vdwg.mxu0
      %v1782 = vpack.c.bf16 %v1771, %v1768
      %v1783 = vpack.c.bf16 %v1779, %v1776
      %s1784 = scalar_lea.vmem %s5, 16
      %v1785 = vld [vmem:[%s1784] sm:$0xf]
      %v1786 = vld [vmem:[%s1784 + $0x4] sm:$0xf]
      %v1787 = vld [vmem:[%s1784 + $0x8] sm:$0xf]
      %v1788 = vld [vmem:[%s1784 + $0xc] sm:$0xf]
      %v1793 = vunpack.c.l.b16 %v1785
      %v1794 = vunpack.c.l.b16 %v1786
      %v1795 = vunpack.c.l.b16 %v1787
      %v1796 = vunpack.c.l.b16 %v1788
      %v1797 = vpack.c.b16 %v1794, %v1793
      %v1798 = vpack.c.b16 %v1796, %v1795
      %v1800 = vsel %vm1089, %v1797, 0
      %v1803 = vsel %vm1089, %v1798, 0
      %1805 = vmatprep.subr.bf16.mxu0 0
      %1806 = vmatpush1.bf16.msra.mxu0 %v1782
      %1807 = vmatprep.subr.bf16.mxu0 0
      %1808 = vmatpush1.bf16.msra.mxu0 %v1783
      %1809 = vmatprep.subr.bf16.mxu0 0
      %1810 = vmatpush1.bf16.msra.mxu0 0
      %1811 = vmatprep.subr.bf16.mxu0 0
      %1812 = vmatpush1.bf16.msra.mxu0 0
      %1813 = vmatprep.subr.bf16.mxu0 0
      %1814 = vmatpush1.bf16.msra.mxu0 0
      %1815 = vmatprep.subr.bf16.mxu0 0
      %1816 = vmatpush1.bf16.msra.mxu0 0
      %1817 = vmatprep.subr.bf16.mxu0 0
      %1818 = vmatpush1.bf16.msra.mxu0 0
      %1819 = vmatprep.subr.bf16.mxu0 0
      %1820 = vmatpush1.bf16.msra.mxu0 0
      %1821 = vmatprep.subr.bf16.mxu0 0
      %1822 = vmatpush1.bf16.msra.mxu0 0
      %1823 = vmatprep.subr.bf16.mxu0 0
      %1824 = vmatpush1.bf16.msra.mxu0 0
      %1825 = vmatprep.subr.bf16.mxu0 0
      %1826 = vmatpush1.bf16.msra.mxu0 0
      %1827 = vmatprep.subr.bf16.mxu0 0
      %1828 = vmatpush1.bf16.msra.mxu0 0
      %1829 = vmatprep.subr.bf16.mxu0 0
      %1830 = vmatpush1.bf16.msra.mxu0 0
      %1831 = vmatprep.subr.bf16.mxu0 0
      %1832 = vmatpush1.bf16.msra.mxu0 0
      %1833 = vmatprep.subr.bf16.mxu0 0
      %1834 = vmatpush1.bf16.msra.mxu0 0
      %1835 = vmatprep.subr.bf16.mxu0 0
      %1836 = vmatpush1.bf16.msra.mxu0 0
      %1837 = vmatprep.mubr.bf16.mxu0 0
      %1838 = vmatmul.mubr.bf16.gmra.mrb[0].mxu0 %v1800
      %v1839 = vpop.f32.mrb[0].mxu0
      %v1840 = vadd.f32 0.0, %v1839
      %v1841 = vpop.f32.mrb[0].mxu0
      %v1842 = vpop.f32.mrb[0].mxu0
      %v1843 = vadd.f32 0.0, %v1842
      %v1844 = vpop.f32.mrb[0].mxu0
      %1845 = vmatprep.mubr.bf16.mxu0 0
      %1846 = vmatmul.mubr.bf16.gmra.mrb[0].mxu0 %v1803
      %v1847 = vpop.f32.mrb[0].mxu0
      %v1848 = vadd.f32 0.0, %v1847
      %v1849 = vpop.f32.mrb[0].mxu0
      %v1850 = vpop.f32.mrb[0].mxu0
      %v1851 = vadd.f32 0.0, %v1850
      %v1852 = vpop.f32.mrb[0].mxu0
      %1853 = vdwg.mxu0
      %v1854 = vadd.f32 %v1722, %v1840
      %v1855 = vadd.f32 %v1723, %v1843
      %v1856 = vadd.f32 %v1724, %v1848
      %v1857 = vadd.f32 %v1725, %v1851
      %vm1858 = vcmp.eq.s32.totalorder %v350, %v1563
      %v1859 = vsel %vm1858, 1.0, 0.0
      %v1860 = vpack.c.bf16 %v1859, %v1859
      %v1862 = vand.u32 %v1860, %v1578
      %1864 = vmatprep.subr.bf16.mxu0 0
      %1865 = vmatpush1.bf16.msra.mxu0 %v1862
      %1866 = vmatprep.subr.bf16.mxu0 0
      %1867 = vmatpush1.bf16.msra.mxu0 0
      %1868 = vmatprep.subr.bf16.mxu0 0
      %1869 = vmatpush1.bf16.msra.mxu0 0
      %1870 = vmatprep.subr.bf16.mxu0 0
      %1871 = vmatpush1.bf16.msra.mxu0 0
      %1872 = vmatprep.subr.bf16.mxu0 0
      %1873 = vmatpush1.bf16.msra.mxu0 0
      %1874 = vmatprep.subr.bf16.mxu0 0
      %1875 = vmatpush1.bf16.msra.mxu0 0
      %1876 = vmatprep.subr.bf16.mxu0 0
      %1877 = vmatpush1.bf16.msra.mxu0 0
      %1878 = vmatprep.subr.bf16.mxu0 0
      %1879 = vmatpush1.bf16.msra.mxu0 0
      %1880 = vmatprep.subr.bf16.mxu0 0
      %1881 = vmatpush1.bf16.msra.mxu0 0
      %1882 = vmatprep.subr.bf16.mxu0 0
      %1883 = vmatpush1.bf16.msra.mxu0 0
      %1884 = vmatprep.subr.bf16.mxu0 0
      %1885 = vmatpush1.bf16.msra.mxu0 0
      %1886 = vmatprep.subr.bf16.mxu0 0
      %1887 = vmatpush1.bf16.msra.mxu0 0
      %1888 = vmatprep.subr.bf16.mxu0 0
      %1889 = vmatpush1.bf16.msra.mxu0 0
      %1890 = vmatprep.subr.bf16.mxu0 0
      %1891 = vmatpush1.bf16.msra.mxu0 0
      %1892 = vmatprep.subr.bf16.mxu0 0
      %1893 = vmatpush1.bf16.msra.mxu0 0
      %1894 = vmatprep.subr.bf16.mxu0 0
      %1895 = vmatpush1.bf16.msra.mxu0 0
      %1896 = vmatprep.mubr.bf16.mxu0 0
      %1897 = vmatmul.mubr.bf16.gmra.mrb[0].mxu0 %v1570
      %v1898 = vpop.f32.mrb[0].mxu0
      %v1899 = vadd.f32 0.0, %v1898
      %v1900 = vpop.f32.mrb[0].mxu0
      %v1901 = vpop.f32.mrb[0].mxu0
      %v1902 = vadd.f32 0.0, %v1901
      %v1903 = vpop.f32.mrb[0].mxu0
      %1904 = vmatprep.mubr.bf16.mxu0 0
      %1905 = vmatmul.mubr.bf16.gmra.mrb[0].mxu0 %v1573
      %v1906 = vpop.f32.mrb[0].mxu0
      %v1907 = vadd.f32 0.0, %v1906
      %v1908 = vpop.f32.mrb[0].mxu0
      %v1909 = vpop.f32.mrb[0].mxu0
      %v1910 = vadd.f32 0.0, %v1909
      %v1911 = vpop.f32.mrb[0].mxu0
      %1912 = vdwg.mxu0
      %v1913 = vpack.c.bf16 %v1902, %v1899
      %v1914 = vpack.c.bf16 %v1910, %v1907
      %s1915 = scalar_lea.vmem %s5, 32
      %v1916 = vld [vmem:[%s1915] sm:$0xf]
      %v1917 = vld [vmem:[%s1915 + $0x4] sm:$0xf]
      %v1918 = vld [vmem:[%s1915 + $0x8] sm:$0xf]
      %v1919 = vld [vmem:[%s1915 + $0xc] sm:$0xf]
      %v1924 = vunpack.c.l.b16 %v1916
      %v1925 = vunpack.c.l.b16 %v1917
      %v1926 = vunpack.c.l.b16 %v1918
      %v1927 = vunpack.c.l.b16 %v1919
      %v1928 = vpack.c.b16 %v1925, %v1924
      %v1929 = vpack.c.b16 %v1927, %v1926
      %v1931 = vsel %vm1089, %v1928, 0
      %v1934 = vsel %vm1089, %v1929, 0
      %1936 = vmatprep.subr.bf16.mxu0 0
      %1937 = vmatpush1.bf16.msra.mxu0 %v1913
      %1938 = vmatprep.subr.bf16.mxu0 0
      %1939 = vmatpush1.bf16.msra.mxu0 %v1914
      %1940 = vmatprep.subr.bf16.mxu0 0
      %1941 = vmatpush1.bf16.msra.mxu0 0
      %1942 = vmatprep.subr.bf16.mxu0 0
      %1943 = vmatpush1.bf16.msra.mxu0 0
      %1944 = vmatprep.subr.bf16.mxu0 0
      %1945 = vmatpush1.bf16.msra.mxu0 0
      %1946 = vmatprep.subr.bf16.mxu0 0
      %1947 = vmatpush1.bf16.msra.mxu0 0
      %1948 = vmatprep.subr.bf16.mxu0 0
      %1949 = vmatpush1.bf16.msra.mxu0 0
      %1950 = vmatprep.subr.bf16.mxu0 0
      %1951 = vmatpush1.bf16.msra.mxu0 0
      %1952 = vmatprep.subr.bf16.mxu0 0
      %1953 = vmatpush1.bf16.msra.mxu0 0
      %1954 = vmatprep.subr.bf16.mxu0 0
      %1955 = vmatpush1.bf16.msra.mxu0 0
      %1956 = vmatprep.subr.bf16.mxu0 0
      %1957 = vmatpush1.bf16.msra.mxu0 0
      %1958 = vmatprep.subr.bf16.mxu0 0
      %1959 = vmatpush1.bf16.msra.mxu0 0
      %1960 = vmatprep.subr.bf16.mxu0 0
      %1961 = vmatpush1.bf16.msra.mxu0 0
      %1962 = vmatprep.subr.bf16.mxu0 0
      %1963 = vmatpush1.bf16.msra.mxu0 0
      %1964 = vmatprep.subr.bf16.mxu0 0
      %1965 = vmatpush1.bf16.msra.mxu0 0
      %1966 = vmatprep.subr.bf16.mxu0 0
      %1967 = vmatpush1.bf16.msra.mxu0 0
      %1968 = vmatprep.mubr.bf16.mxu0 0
      %1969 = vmatmul.mubr.bf16.gmra.mrb[0].mxu0 %v1931
      %v1970 = vpop.f32.mrb[0].mxu0
      %v1971 = vadd.f32 0.0, %v1970
      %v1972 = vpop.f32.mrb[0].mxu0
      %v1973 = vpop.f32.mrb[0].mxu0
      %v1974 = vadd.f32 0.0, %v1973
      %v1975 = vpop.f32.mrb[0].mxu0
      %1976 = vmatprep.mubr.bf16.mxu0 0
      %1977 = vmatmul.mubr.bf16.gmra.mrb[0].mxu0 %v1934
      %v1978 = vpop.f32.mrb[0].mxu0
      %v1979 = vadd.f32 0.0, %v1978
      %v1980 = vpop.f32.mrb[0].mxu0
      %v1981 = vpop.f32.mrb[0].mxu0
      %v1982 = vadd.f32 0.0, %v1981
      %v1983 = vpop.f32.mrb[0].mxu0
      %1984 = vdwg.mxu0
      %v1985 = vadd.f32 %v1854, %v1971
      %v1986 = vadd.f32 %v1855, %v1974
      %v1987 = vadd.f32 %v1856, %v1979
      %v1988 = vadd.f32 %v1857, %v1982
      %v1989 = vadd.s32 %v1563, 1
      %vm1990 = vcmp.eq.s32.totalorder %v350, %v1989
      %v1991 = vsel %vm1990, 1.0, 0.0
      %v1992 = vpack.c.bf16 %v1991, %v1991
      %v1994 = vand.u32 %v1992, %v1578
      %1996 = vmatprep.subr.bf16.mxu0 0
      %1997 = vmatpush1.bf16.msra.mxu0 %v1994
      %1998 = vmatprep.subr.bf16.mxu0 0
      %1999 = vmatpush1.bf16.msra.mxu0 0
      %2000 = vmatprep.subr.bf16.mxu0 0
      %2001 = vmatpush1.bf16.msra.mxu0 0
      %2002 = vmatprep.subr.bf16.mxu0 0
      %2003 = vmatpush1.bf16.msra.mxu0 0
      %2004 = vmatprep.subr.bf16.mxu0 0
      %2005 = vmatpush1.bf16.msra.mxu0 0
      %2006 = vmatprep.subr.bf16.mxu0 0
      %2007 = vmatpush1.bf16.msra.mxu0 0
      %2008 = vmatprep.subr.bf16.mxu0 0
      %2009 = vmatpush1.bf16.msra.mxu0 0
      %2010 = vmatprep.subr.bf16.mxu0 0
      %2011 = vmatpush1.bf16.msra.mxu0 0
      %2012 = vmatprep.subr.bf16.mxu0 0
      %2013 = vmatpush1.bf16.msra.mxu0 0
      %2014 = vmatprep.subr.bf16.mxu0 0
      %2015 = vmatpush1.bf16.msra.mxu0 0
      %2016 = vmatprep.subr.bf16.mxu0 0
      %2017 = vmatpush1.bf16.msra.mxu0 0
      %2018 = vmatprep.subr.bf16.mxu0 0
      %2019 = vmatpush1.bf16.msra.mxu0 0
      %2020 = vmatprep.subr.bf16.mxu0 0
      %2021 = vmatpush1.bf16.msra.mxu0 0
      %2022 = vmatprep.subr.bf16.mxu0 0
      %2023 = vmatpush1.bf16.msra.mxu0 0
      %2024 = vmatprep.subr.bf16.mxu0 0
      %2025 = vmatpush1.bf16.msra.mxu0 0
      %2026 = vmatprep.subr.bf16.mxu0 0
      %2027 = vmatpush1.bf16.msra.mxu0 0
      %2028 = vmatprep.mubr.bf16.mxu0 0
      %2029 = vmatmul.mubr.bf16.gmra.mrb[0].mxu0 %v1570
      %v2030 = vpop.f32.mrb[0].mxu0
      %v2031 = vadd.f32 0.0, %v2030
      %v2032 = vpop.f32.mrb[0].mxu0
      %v2033 = vpop.f32.mrb[0].mxu0
      %v2034 = vadd.f32 0.0, %v2033
      %v2035 = vpop.f32.mrb[0].mxu0
      %2036 = vmatprep.mubr.bf16.mxu0 0
      %2037 = vmatmul.mubr.bf16.gmra.mrb[0].mxu0 %v1573
      %v2038 = vpop.f32.mrb[0].mxu0
      %v2039 = vadd.f32 0.0, %v2038
      %v2040 = vpop.f32.mrb[0].mxu0
      %v2041 = vpop.f32.mrb[0].mxu0
      %v2042 = vadd.f32 0.0, %v2041
      %v2043 = vpop.f32.mrb[0].mxu0
      %2044 = vdwg.mxu0
      %v2045 = vpack.c.bf16 %v2034, %v2031
      %v2046 = vpack.c.bf16 %v2042, %v2039
      %s2047 = scalar_lea.vmem %s5, 48
      %v2048 = vld [vmem:[%s2047] sm:$0xf]
      %v2049 = vld [vmem:[%s2047 + $0x4] sm:$0xf]
      %v2050 = vld [vmem:[%s2047 + $0x8] sm:$0xf]
      %v2051 = vld [vmem:[%s2047 + $0xc] sm:$0xf]
      %v2056 = vunpack.c.l.b16 %v2048
      %v2057 = vunpack.c.l.b16 %v2049
      %v2058 = vunpack.c.l.b16 %v2050
      %v2059 = vunpack.c.l.b16 %v2051
      %v2060 = vpack.c.b16 %v2057, %v2056
      %v2061 = vpack.c.b16 %v2059, %v2058
      %v2063 = vsel %vm1089, %v2060, 0
      %v2066 = vsel %vm1089, %v2061, 0
      %2068 = vmatprep.subr.bf16.mxu0 0
      %2069 = vmatpush1.bf16.msra.mxu0 %v2045
      %2070 = vmatprep.subr.bf16.mxu0 0
      %2071 = vmatpush1.bf16.msra.mxu0 %v2046
      %2072 = vmatprep.subr.bf16.mxu0 0
      %2073 = vmatpush1.bf16.msra.mxu0 0
      %2074 = vmatprep.subr.bf16.mxu0 0
      %2075 = vmatpush1.bf16.msra.mxu0 0
      %2076 = vmatprep.subr.bf16.mxu0 0
      %2077 = vmatpush1.bf16.msra.mxu0 0
      %2078 = vmatprep.subr.bf16.mxu0 0
      %2079 = vmatpush1.bf16.msra.mxu0 0
      %2080 = vmatprep.subr.bf16.mxu0 0
      %2081 = vmatpush1.bf16.msra.mxu0 0
      %2082 = vmatprep.subr.bf16.mxu0 0
      %2083 = vmatpush1.bf16.msra.mxu0 0
      %2084 = vmatprep.subr.bf16.mxu0 0
      %2085 = vmatpush1.bf16.msra.mxu0 0
      %2086 = vmatprep.subr.bf16.mxu0 0
      %2087 = vmatpush1.bf16.msra.mxu0 0
      %2088 = vmatprep.subr.bf16.mxu0 0
      %2089 = vmatpush1.bf16.msra.mxu0 0
      %2090 = vmatprep.subr.bf16.mxu0 0
      %2091 = vmatpush1.bf16.msra.mxu0 0
      %2092 = vmatprep.subr.bf16.mxu0 0
      %2093 = vmatpush1.bf16.msra.mxu0 0
      %2094 = vmatprep.subr.bf16.mxu0 0
      %2095 = vmatpush1.bf16.msra.mxu0 0
      %2096 = vmatprep.subr.bf16.mxu0 0
      %2097 = vmatpush1.bf16.msra.mxu0 0
      %2098 = vmatprep.subr.bf16.mxu0 0
      %2099 = vmatpush1.bf16.msra.mxu0 0
      %2100 = vmatprep.mubr.bf16.mxu0 0
      %2101 = vmatmul.mubr.bf16.gmra.mrb[0].mxu0 %v2063
      %v2102 = vpop.f32.mrb[0].mxu0
      %v2103 = vadd.f32 0.0, %v2102
      %v2104 = vpop.f32.mrb[0].mxu0
      %v2105 = vpop.f32.mrb[0].mxu0
      %v2106 = vadd.f32 0.0, %v2105
      %v2107 = vpop.f32.mrb[0].mxu0
      %2108 = vmatprep.mubr.bf16.mxu0 0
      %2109 = vmatmul.mubr.bf16.gmra.mrb[0].mxu0 %v2066
      %v2110 = vpop.f32.mrb[0].mxu0
      %v2111 = vadd.f32 0.0, %v2110
      %v2112 = vpop.f32.mrb[0].mxu0
      %v2113 = vpop.f32.mrb[0].mxu0
      %v2114 = vadd.f32 0.0, %v2113
      %v2115 = vpop.f32.mrb[0].mxu0
      %2116 = vdwg.mxu0
      %v2117 = vadd.f32 %v1985, %v2103
      %v2118 = vadd.f32 %v1986, %v2106
      %v2119 = vadd.f32 %v1987, %v2111
      %v2120 = vadd.f32 %v1988, %v2114
      %v2121 = vmax.f32 %v2117, 0.0
      %v2122 = vmax.f32 %v2118, 0.0
      %v2123 = vmax.f32 %v2119, 0.0
      %v2124 = vmax.f32 %v2120, 0.0
      %v2125 = vpack.c.bf16 %v2122, %v2121
      %v2126 = vpack.c.bf16 %v2124, %v2123
      %v2127 = vld [vmem:[%s8] sm:$0xff]
      %v2128 = vld [vmem:[%s8 + $0x8] sm:$0xff]
      %v2129 = vld [vmem:[%s8 + $0x10] sm:$0xff]
      %v2130 = vld [vmem:[%s8 + $0x18] sm:$0xff]
      %v2131 = vld [vmem:[%s8 + $0x20] sm:$0xff]
      %v2132 = vld [vmem:[%s8 + $0x28] sm:$0xff]
      %v2133 = vld [vmem:[%s8 + $0x30] sm:$0xff]
      %v2134 = vld [vmem:[%s8 + $0x38] sm:$0xff]
      %vm2135 = vcmask 64512
      %v2137 = vsel %vm2135, %v2125, 0
      %v2140 = vsel %vm2135, %v2126, 0
      %v2142 = vsel %vm1017, %v1567, 0
      %2144 = vmatprep.subr.bf16.mxu0 0
      %2145 = vmatpush1.bf16.msra.mxu0 %v2142
      %2146 = vmatprep.subr.bf16.mxu0 0
      %2147 = vmatpush1.bf16.msra.mxu0 0
      %2148 = vmatprep.subr.bf16.mxu0 0
      %2149 = vmatpush1.bf16.msra.mxu0 0
      %2150 = vmatprep.subr.bf16.mxu0 0
      %2151 = vmatpush1.bf16.msra.mxu0 0
      %2152 = vmatprep.subr.bf16.mxu0 0
      %2153 = vmatpush1.bf16.msra.mxu0 0
      %2154 = vmatprep.subr.bf16.mxu0 0
      %2155 = vmatpush1.bf16.msra.mxu0 0
      %2156 = vmatprep.subr.bf16.mxu0 0
      %2157 = vmatpush1.bf16.msra.mxu0 0
      %2158 = vmatprep.subr.bf16.mxu0 0
      %2159 = vmatpush1.bf16.msra.mxu0 0
      %2160 = vmatprep.subr.bf16.mxu0 0
      %2161 = vmatpush1.bf16.msra.mxu0 0
      %2162 = vmatprep.subr.bf16.mxu0 0
      %2163 = vmatpush1.bf16.msra.mxu0 0
      %2164 = vmatprep.subr.bf16.mxu0 0
      %2165 = vmatpush1.bf16.msra.mxu0 0
      %2166 = vmatprep.subr.bf16.mxu0 0
      %2167 = vmatpush1.bf16.msra.mxu0 0
      %2168 = vmatprep.subr.bf16.mxu0 0
      %2169 = vmatpush1.bf16.msra.mxu0 0
      %2170 = vmatprep.subr.bf16.mxu0 0
      %2171 = vmatpush1.bf16.msra.mxu0 0
      %2172 = vmatprep.subr.bf16.mxu0 0
      %2173 = vmatpush1.bf16.msra.mxu0 0
      %2174 = vmatprep.subr.bf16.mxu0 0
      %2175 = vmatpush1.bf16.msra.mxu0 0
      %2176 = vmatprep.mubr.bf16.mxu0 0
      %2177 = vmatmul.mubr.bf16.gmra.mrb[0].mxu0 %v2137
      %v2178 = vpop.f32.mrb[0].mxu0
      %v2179 = vadd.f32 0.0, %v2178
      %v2180 = vpop.f32.mrb[0].mxu0
      %v2181 = vpop.f32.mrb[0].mxu0
      %v2182 = vadd.f32 0.0, %v2181
      %v2183 = vpop.f32.mrb[0].mxu0
      %2184 = vmatprep.mubr.bf16.mxu0 0
      %2185 = vmatmul.mubr.bf16.gmra.mrb[0].mxu0 %v2140
      %v2186 = vpop.f32.mrb[0].mxu0
      %v2187 = vadd.f32 0.0, %v2186
      %v2188 = vpop.f32.mrb[0].mxu0
      %v2189 = vpop.f32.mrb[0].mxu0
      %v2190 = vadd.f32 0.0, %v2189
      %v2191 = vpop.f32.mrb[0].mxu0
      %2192 = vdwg.mxu0
      %v2193 = vpack.c.bf16 %v2182, %v2179
      %v2194 = vpack.c.bf16 %v2190, %v2187
      %v2195 = vld [vmem:[%s7] sm:$0xf]
      %v2196 = vld [vmem:[%s7 + $0x4] sm:$0xf]
      %v2197 = vld [vmem:[%s7 + $0x8] sm:$0xf]
      %v2198 = vld [vmem:[%s7 + $0xc] sm:$0xf]
      %v2199 = vld [vmem:[%s7 + $0x10] sm:$0xf]
      %v2200 = vld [vmem:[%s7 + $0x14] sm:$0xf]
      %v2201 = vld [vmem:[%s7 + $0x18] sm:$0xf]
      %v2202 = vld [vmem:[%s7 + $0x1c] sm:$0xf]
      %v2211 = vunpack.c.l.b16 %v2195
      %v2212 = vunpack.c.l.b16 %v2196
      %v2213 = vunpack.c.l.b16 %v2197
      %v2214 = vunpack.c.l.b16 %v2198
      %v2215 = vunpack.c.l.b16 %v2199
      %v2216 = vunpack.c.l.b16 %v2200
      %v2217 = vunpack.c.l.b16 %v2201
      %v2218 = vunpack.c.l.b16 %v2202
      %v2219 = vpack.c.b16 %v2212, %v2211
      %v2220 = vpack.c.b16 %v2214, %v2213
      %v2221 = vpack.c.b16 %v2216, %v2215
      %v2222 = vpack.c.b16 %v2218, %v2217
      %v2224 = vsel %vm1089, %v2219, 0
      %v2227 = vsel %vm1089, %v2220, 0
      %v2230 = vsel %vm1089, %v2221, 0
      %v2233 = vsel %vm1089, %v2222, 0
      %2235 = vmatprep.subr.bf16.mxu0 0
      %2236 = vmatpush1.bf16.msra.mxu0 %v2193
      %2237 = vmatprep.subr.bf16.mxu0 0
      %2238 = vmatpush1.bf16.msra.mxu0 %v2194
      %2239 = vmatprep.subr.bf16.mxu0 0
      %2240 = vmatpush1.bf16.msra.mxu0 0
      %2241 = vmatprep.subr.bf16.mxu0 0
      %2242 = vmatpush1.bf16.msra.mxu0 0
      %2243 = vmatprep.subr.bf16.mxu0 0
      %2244 = vmatpush1.bf16.msra.mxu0 0
      %2245 = vmatprep.subr.bf16.mxu0 0
      %2246 = vmatpush1.bf16.msra.mxu0 0
      %2247 = vmatprep.subr.bf16.mxu0 0
      %2248 = vmatpush1.bf16.msra.mxu0 0
      %2249 = vmatprep.subr.bf16.mxu0 0
      %2250 = vmatpush1.bf16.msra.mxu0 0
      %2251 = vmatprep.subr.bf16.mxu0 0
      %2252 = vmatpush1.bf16.msra.mxu0 0
      %2253 = vmatprep.subr.bf16.mxu0 0
      %2254 = vmatpush1.bf16.msra.mxu0 0
      %2255 = vmatprep.subr.bf16.mxu0 0
      %2256 = vmatpush1.bf16.msra.mxu0 0
      %2257 = vmatprep.subr.bf16.mxu0 0
      %2258 = vmatpush1.bf16.msra.mxu0 0
      %2259 = vmatprep.subr.bf16.mxu0 0
      %2260 = vmatpush1.bf16.msra.mxu0 0
      %2261 = vmatprep.subr.bf16.mxu0 0
      %2262 = vmatpush1.bf16.msra.mxu0 0
      %2263 = vmatprep.subr.bf16.mxu0 0
      %2264 = vmatpush1.bf16.msra.mxu0 0
      %2265 = vmatprep.subr.bf16.mxu0 0
      %2266 = vmatpush1.bf16.msra.mxu0 0
      %2267 = vmatprep.mubr.bf16.mxu0 0
      %2268 = vmatmul.mubr.bf16.gmra.mrb[0].mxu0 %v2224
      %v2269 = vpop.f32.mrb[0].mxu0
      %v2270 = vadd.f32 0.0, %v2269
      %v2271 = vpop.f32.mrb[0].mxu0
      %v2272 = vpop.f32.mrb[0].mxu0
      %v2273 = vadd.f32 0.0, %v2272
      %v2274 = vpop.f32.mrb[0].mxu0
      %2275 = vmatprep.mubr.bf16.mxu0 0
      %2276 = vmatmul.mubr.bf16.gmra.mrb[0].mxu0 %v2227
      %v2277 = vpop.f32.mrb[0].mxu0
      %v2278 = vadd.f32 0.0, %v2277
      %v2279 = vpop.f32.mrb[0].mxu0
      %v2280 = vpop.f32.mrb[0].mxu0
      %v2281 = vadd.f32 0.0, %v2280
      %v2282 = vpop.f32.mrb[0].mxu0
      %2283 = vmatprep.mubr.bf16.mxu0 0
      %2284 = vmatmul.mubr.bf16.gmra.mrb[0].mxu0 %v2230
      %v2285 = vpop.f32.mrb[0].mxu0
      %v2286 = vadd.f32 0.0, %v2285
      %v2287 = vpop.f32.mrb[0].mxu0
      %v2288 = vpop.f32.mrb[0].mxu0
      %v2289 = vadd.f32 0.0, %v2288
      %v2290 = vpop.f32.mrb[0].mxu0
      %2291 = vmatprep.mubr.bf16.mxu0 0
      %2292 = vmatmul.mubr.bf16.gmra.mrb[0].mxu0 %v2233
      %v2293 = vpop.f32.mrb[0].mxu0
      %v2294 = vadd.f32 0.0, %v2293
      %v2295 = vpop.f32.mrb[0].mxu0
      %v2296 = vpop.f32.mrb[0].mxu0
      %v2297 = vadd.f32 0.0, %v2296
      %v2298 = vpop.f32.mrb[0].mxu0
      %2299 = vdwg.mxu0
      %2301 = vset.pattern.permute.xlu0 0
      %2302 = vperm.xlu0 %2301, %v2127
      %v2303 = vpop.permute.xlu0 %2302
      %2306 = vset.pattern.permute.xlu0 0
      %2307 = vperm.xlu0 %2306, %v2128
      %v2308 = vpop.permute.xlu0 %2307
      %2311 = vset.pattern.permute.xlu0 0
      %2312 = vperm.xlu0 %2311, %v2129
      %v2313 = vpop.permute.xlu0 %2312
      %2316 = vset.pattern.permute.xlu0 0
      %2317 = vperm.xlu0 %2316, %v2130
      %v2318 = vpop.permute.xlu0 %2317
      %2321 = vset.pattern.permute.xlu0 0
      %2322 = vperm.xlu0 %2321, %v2131
      %v2323 = vpop.permute.xlu0 %2322
      %2326 = vset.pattern.permute.xlu0 0
      %2327 = vperm.xlu0 %2326, %v2132
      %v2328 = vpop.permute.xlu0 %2327
      %2331 = vset.pattern.permute.xlu0 0
      %2332 = vperm.xlu0 %2331, %v2133
      %v2333 = vpop.permute.xlu0 %2332
      %2336 = vset.pattern.permute.xlu0 0
      %2337 = vperm.xlu0 %2336, %v2134
      %v2338 = vpop.permute.xlu0 %2337
      %v2340 = vadd.f32 %v2303, %v2270
      %v2341 = vadd.f32 %v2308, %v2273
      %v2342 = vadd.f32 %v2313, %v2278
      %v2343 = vadd.f32 %v2318, %v2281
      %v2344 = vadd.f32 %v2323, %v2286
      %v2345 = vadd.f32 %v2328, %v2289
      %v2346 = vadd.f32 %v2333, %v2294
      %v2347 = vadd.f32 %v2338, %v2297
      %v2348 = vsel %vm1017, %v1729, 0
      %2350 = vmatprep.subr.bf16.mxu0 0
      %2351 = vmatpush1.bf16.msra.mxu0 %v2348
      %2352 = vmatprep.subr.bf16.mxu0 0
      %2353 = vmatpush1.bf16.msra.mxu0 0
      %2354 = vmatprep.subr.bf16.mxu0 0
      %2355 = vmatpush1.bf16.msra.mxu0 0
      %2356 = vmatprep.subr.bf16.mxu0 0
      %2357 = vmatpush1.bf16.msra.mxu0 0
      %2358 = vmatprep.subr.bf16.mxu0 0
      %2359 = vmatpush1.bf16.msra.mxu0 0
      %2360 = vmatprep.subr.bf16.mxu0 0
      %2361 = vmatpush1.bf16.msra.mxu0 0
      %2362 = vmatprep.subr.bf16.mxu0 0
      %2363 = vmatpush1.bf16.msra.mxu0 0
      %2364 = vmatprep.subr.bf16.mxu0 0
      %2365 = vmatpush1.bf16.msra.mxu0 0
      %2366 = vmatprep.subr.bf16.mxu0 0
      %2367 = vmatpush1.bf16.msra.mxu0 0
      %2368 = vmatprep.subr.bf16.mxu0 0
      %2369 = vmatpush1.bf16.msra.mxu0 0
      %2370 = vmatprep.subr.bf16.mxu0 0
      %2371 = vmatpush1.bf16.msra.mxu0 0
      %2372 = vmatprep.subr.bf16.mxu0 0
      %2373 = vmatpush1.bf16.msra.mxu0 0
      %2374 = vmatprep.subr.bf16.mxu0 0
      %2375 = vmatpush1.bf16.msra.mxu0 0
      %2376 = vmatprep.subr.bf16.mxu0 0
      %2377 = vmatpush1.bf16.msra.mxu0 0
      %2378 = vmatprep.subr.bf16.mxu0 0
      %2379 = vmatpush1.bf16.msra.mxu0 0
      %2380 = vmatprep.subr.bf16.mxu0 0
      %2381 = vmatpush1.bf16.msra.mxu0 0
      %2382 = vmatprep.mubr.bf16.mxu0 0
      %2383 = vmatmul.mubr.bf16.gmra.mrb[0].mxu0 %v2137
      %v2384 = vpop.f32.mrb[0].mxu0
      %v2385 = vadd.f32 0.0, %v2384
      %v2386 = vpop.f32.mrb[0].mxu0
      %v2387 = vpop.f32.mrb[0].mxu0
      %v2388 = vadd.f32 0.0, %v2387
      %v2389 = vpop.f32.mrb[0].mxu0
      %2390 = vmatprep.mubr.bf16.mxu0 0
      %2391 = vmatmul.mubr.bf16.gmra.mrb[0].mxu0 %v2140
      %v2392 = vpop.f32.mrb[0].mxu0
      %v2393 = vadd.f32 0.0, %v2392
      %v2394 = vpop.f32.mrb[0].mxu0
      %v2395 = vpop.f32.mrb[0].mxu0
      %v2396 = vadd.f32 0.0, %v2395
      %v2397 = vpop.f32.mrb[0].mxu0
      %2398 = vdwg.mxu0
      %v2399 = vpack.c.bf16 %v2388, %v2385
      %v2400 = vpack.c.bf16 %v2396, %v2393
      %s2401 = scalar_lea.vmem %s7, 32
      %v2402 = vld [vmem:[%s2401] sm:$0xf]
      %v2403 = vld [vmem:[%s2401 + $0x4] sm:$0xf]
      %v2404 = vld [vmem:[%s2401 + $0x8] sm:$0xf]
      %v2405 = vld [vmem:[%s2401 + $0xc] sm:$0xf]
      %v2406 = vld [vmem:[%s2401 + $0x10] sm:$0xf]
      %v2407 = vld [vmem:[%s2401 + $0x14] sm:$0xf]
      %v2408 = vld [vmem:[%s2401 + $0x18] sm:$0xf]
      %v2409 = vld [vmem:[%s2401 + $0x1c] sm:$0xf]
      %v2418 = vunpack.c.l.b16 %v2402
      %v2419 = vunpack.c.l.b16 %v2403
      %v2420 = vunpack.c.l.b16 %v2404
      %v2421 = vunpack.c.l.b16 %v2405
      %v2422 = vunpack.c.l.b16 %v2406
      %v2423 = vunpack.c.l.b16 %v2407
      %v2424 = vunpack.c.l.b16 %v2408
      %v2425 = vunpack.c.l.b16 %v2409
      %v2426 = vpack.c.b16 %v2419, %v2418
      %v2427 = vpack.c.b16 %v2421, %v2420
      %v2428 = vpack.c.b16 %v2423, %v2422
      %v2429 = vpack.c.b16 %v2425, %v2424
      %v2431 = vsel %vm1089, %v2426, 0
      %v2434 = vsel %vm1089, %v2427, 0
      %v2437 = vsel %vm1089, %v2428, 0
      %v2440 = vsel %vm1089, %v2429, 0
      %2442 = vmatprep.subr.bf16.mxu0 0
      %2443 = vmatpush1.bf16.msra.mxu0 %v2399
      %2444 = vmatprep.subr.bf16.mxu0 0
      %2445 = vmatpush1.bf16.msra.mxu0 %v2400
      %2446 = vmatprep.subr.bf16.mxu0 0
      %2447 = vmatpush1.bf16.msra.mxu0 0
      %2448 = vmatprep.subr.bf16.mxu0 0
      %2449 = vmatpush1.bf16.msra.mxu0 0
      %2450 = vmatprep.subr.bf16.mxu0 0
      %2451 = vmatpush1.bf16.msra.mxu0 0
      %2452 = vmatprep.subr.bf16.mxu0 0
      %2453 = vmatpush1.bf16.msra.mxu0 0
      %2454 = vmatprep.subr.bf16.mxu0 0
      %2455 = vmatpush1.bf16.msra.mxu0 0
      %2456 = vmatprep.subr.bf16.mxu0 0
      %2457 = vmatpush1.bf16.msra.mxu0 0
      %2458 = vmatprep.subr.bf16.mxu0 0
      %2459 = vmatpush1.bf16.msra.mxu0 0
      %2460 = vmatprep.subr.bf16.mxu0 0
      %2461 = vmatpush1.bf16.msra.mxu0 0
      %2462 = vmatprep.subr.bf16.mxu0 0
      %2463 = vmatpush1.bf16.msra.mxu0 0
      %2464 = vmatprep.subr.bf16.mxu0 0
      %2465 = vmatpush1.bf16.msra.mxu0 0
      %2466 = vmatprep.subr.bf16.mxu0 0
      %2467 = vmatpush1.bf16.msra.mxu0 0
      %2468 = vmatprep.subr.bf16.mxu0 0
      %2469 = vmatpush1.bf16.msra.mxu0 0
      %2470 = vmatprep.subr.bf16.mxu0 0
      %2471 = vmatpush1.bf16.msra.mxu0 0
      %2472 = vmatprep.subr.bf16.mxu0 0
      %2473 = vmatpush1.bf16.msra.mxu0 0
      %2474 = vmatprep.mubr.bf16.mxu0 0
      %2475 = vmatmul.mubr.bf16.gmra.mrb[0].mxu0 %v2431
      %v2476 = vpop.f32.mrb[0].mxu0
      %v2477 = vadd.f32 0.0, %v2476
      %v2478 = vpop.f32.mrb[0].mxu0
      %v2479 = vpop.f32.mrb[0].mxu0
      %v2480 = vadd.f32 0.0, %v2479
      %v2481 = vpop.f32.mrb[0].mxu0
      %2482 = vmatprep.mubr.bf16.mxu0 0
      %2483 = vmatmul.mubr.bf16.gmra.mrb[0].mxu0 %v2434
      %v2484 = vpop.f32.mrb[0].mxu0
      %v2485 = vadd.f32 0.0, %v2484
      %v2486 = vpop.f32.mrb[0].mxu0
      %v2487 = vpop.f32.mrb[0].mxu0
      %v2488 = vadd.f32 0.0, %v2487
      %v2489 = vpop.f32.mrb[0].mxu0
      %2490 = vmatprep.mubr.bf16.mxu0 0
      %2491 = vmatmul.mubr.bf16.gmra.mrb[0].mxu0 %v2437
      %v2492 = vpop.f32.mrb[0].mxu0
      %v2493 = vadd.f32 0.0, %v2492
      %v2494 = vpop.f32.mrb[0].mxu0
      %v2495 = vpop.f32.mrb[0].mxu0
      %v2496 = vadd.f32 0.0, %v2495
      %v2497 = vpop.f32.mrb[0].mxu0
      %2498 = vmatprep.mubr.bf16.mxu0 0
      %2499 = vmatmul.mubr.bf16.gmra.mrb[0].mxu0 %v2440
      %v2500 = vpop.f32.mrb[0].mxu0
      %v2501 = vadd.f32 0.0, %v2500
      %v2502 = vpop.f32.mrb[0].mxu0
      %v2503 = vpop.f32.mrb[0].mxu0
      %v2504 = vadd.f32 0.0, %v2503
      %v2505 = vpop.f32.mrb[0].mxu0
      %2506 = vdwg.mxu0
      %v2507 = vadd.f32 %v2340, %v2477
      %v2508 = vadd.f32 %v2341, %v2480
      %v2509 = vadd.f32 %v2342, %v2485
      %v2510 = vadd.f32 %v2343, %v2488
      %v2511 = vadd.f32 %v2344, %v2493
      %v2512 = vadd.f32 %v2345, %v2496
      %v2513 = vadd.f32 %v2346, %v2501
      %v2514 = vadd.f32 %v2347, %v2504
      %v2515 = vsel %vm1017, %v1860, 0
      %2517 = vmatprep.subr.bf16.mxu0 0
      %2518 = vmatpush1.bf16.msra.mxu0 %v2515
      %2519 = vmatprep.subr.bf16.mxu0 0
      %2520 = vmatpush1.bf16.msra.mxu0 0
      %2521 = vmatprep.subr.bf16.mxu0 0
      %2522 = vmatpush1.bf16.msra.mxu0 0
      %2523 = vmatprep.subr.bf16.mxu0 0
      %2524 = vmatpush1.bf16.msra.mxu0 0
      %2525 = vmatprep.subr.bf16.mxu0 0
      %2526 = vmatpush1.bf16.msra.mxu0 0
      %2527 = vmatprep.subr.bf16.mxu0 0
      %2528 = vmatpush1.bf16.msra.mxu0 0
      %2529 = vmatprep.subr.bf16.mxu0 0
      %2530 = vmatpush1.bf16.msra.mxu0 0
      %2531 = vmatprep.subr.bf16.mxu0 0
      %2532 = vmatpush1.bf16.msra.mxu0 0
      %2533 = vmatprep.subr.bf16.mxu0 0
      %2534 = vmatpush1.bf16.msra.mxu0 0
      %2535 = vmatprep.subr.bf16.mxu0 0
      %2536 = vmatpush1.bf16.msra.mxu0 0
      %2537 = vmatprep.subr.bf16.mxu0 0
      %2538 = vmatpush1.bf16.msra.mxu0 0
      %2539 = vmatprep.subr.bf16.mxu0 0
      %2540 = vmatpush1.bf16.msra.mxu0 0
      %2541 = vmatprep.subr.bf16.mxu0 0
      %2542 = vmatpush1.bf16.msra.mxu0 0
      %2543 = vmatprep.subr.bf16.mxu0 0
      %2544 = vmatpush1.bf16.msra.mxu0 0
      %2545 = vmatprep.subr.bf16.mxu0 0
      %2546 = vmatpush1.bf16.msra.mxu0 0
      %2547 = vmatprep.subr.bf16.mxu0 0
      %2548 = vmatpush1.bf16.msra.mxu0 0
      %2549 = vmatprep.mubr.bf16.mxu0 0
      %2550 = vmatmul.mubr.bf16.gmra.mrb[0].mxu0 %v2137
      %v2551 = vpop.f32.mrb[0].mxu0
      %v2552 = vadd.f32 0.0, %v2551
      %v2553 = vpop.f32.mrb[0].mxu0
      %v2554 = vpop.f32.mrb[0].mxu0
      %v2555 = vadd.f32 0.0, %v2554
      %v2556 = vpop.f32.mrb[0].mxu0
      %2557 = vmatprep.mubr.bf16.mxu0 0
      %2558 = vmatmul.mubr.bf16.gmra.mrb[0].mxu0 %v2140
      %v2559 = vpop.f32.mrb[0].mxu0
      %v2560 = vadd.f32 0.0, %v2559
      %v2561 = vpop.f32.mrb[0].mxu0
      %v2562 = vpop.f32.mrb[0].mxu0
      %v2563 = vadd.f32 0.0, %v2562
      %v2564 = vpop.f32.mrb[0].mxu0
      %2565 = vdwg.mxu0
      %v2566 = vpack.c.bf16 %v2555, %v2552
      %v2567 = vpack.c.bf16 %v2563, %v2560
      %s2568 = scalar_lea.vmem %s7, 64
      %v2569 = vld [vmem:[%s2568] sm:$0xf]
      %v2570 = vld [vmem:[%s2568 + $0x4] sm:$0xf]
      %v2571 = vld [vmem:[%s2568 + $0x8] sm:$0xf]
      %v2572 = vld [vmem:[%s2568 + $0xc] sm:$0xf]
      %v2573 = vld [vmem:[%s2568 + $0x10] sm:$0xf]
      %v2574 = vld [vmem:[%s2568 + $0x14] sm:$0xf]
      %v2575 = vld [vmem:[%s2568 + $0x18] sm:$0xf]
      %v2576 = vld [vmem:[%s2568 + $0x1c] sm:$0xf]
      %v2585 = vunpack.c.l.b16 %v2569
      %v2586 = vunpack.c.l.b16 %v2570
      %v2587 = vunpack.c.l.b16 %v2571
      %v2588 = vunpack.c.l.b16 %v2572
      %v2589 = vunpack.c.l.b16 %v2573
      %v2590 = vunpack.c.l.b16 %v2574
      %v2591 = vunpack.c.l.b16 %v2575
      %v2592 = vunpack.c.l.b16 %v2576
      %v2593 = vpack.c.b16 %v2586, %v2585
      %v2594 = vpack.c.b16 %v2588, %v2587
      %v2595 = vpack.c.b16 %v2590, %v2589
      %v2596 = vpack.c.b16 %v2592, %v2591
      %v2598 = vsel %vm1089, %v2593, 0
      %v2601 = vsel %vm1089, %v2594, 0
      %v2604 = vsel %vm1089, %v2595, 0
      %v2607 = vsel %vm1089, %v2596, 0
      %2609 = vmatprep.subr.bf16.mxu0 0
      %2610 = vmatpush1.bf16.msra.mxu0 %v2566
      %2611 = vmatprep.subr.bf16.mxu0 0
      %2612 = vmatpush1.bf16.msra.mxu0 %v2567
      %2613 = vmatprep.subr.bf16.mxu0 0
      %2614 = vmatpush1.bf16.msra.mxu0 0
      %2615 = vmatprep.subr.bf16.mxu0 0
      %2616 = vmatpush1.bf16.msra.mxu0 0
      %2617 = vmatprep.subr.bf16.mxu0 0
      %2618 = vmatpush1.bf16.msra.mxu0 0
      %2619 = vmatprep.subr.bf16.mxu0 0
      %2620 = vmatpush1.bf16.msra.mxu0 0
      %2621 = vmatprep.subr.bf16.mxu0 0
      %2622 = vmatpush1.bf16.msra.mxu0 0
      %2623 = vmatprep.subr.bf16.mxu0 0
      %2624 = vmatpush1.bf16.msra.mxu0 0
      %2625 = vmatprep.subr.bf16.mxu0 0
      %2626 = vmatpush1.bf16.msra.mxu0 0
      %2627 = vmatprep.subr.bf16.mxu0 0
      %2628 = vmatpush1.bf16.msra.mxu0 0
      %2629 = vmatprep.subr.bf16.mxu0 0
      %2630 = vmatpush1.bf16.msra.mxu0 0
      %2631 = vmatprep.subr.bf16.mxu0 0
      %2632 = vmatpush1.bf16.msra.mxu0 0
      %2633 = vmatprep.subr.bf16.mxu0 0
      %2634 = vmatpush1.bf16.msra.mxu0 0
      %2635 = vmatprep.subr.bf16.mxu0 0
      %2636 = vmatpush1.bf16.msra.mxu0 0
      %2637 = vmatprep.subr.bf16.mxu0 0
      %2638 = vmatpush1.bf16.msra.mxu0 0
      %2639 = vmatprep.subr.bf16.mxu0 0
      %2640 = vmatpush1.bf16.msra.mxu0 0
      %2641 = vmatprep.mubr.bf16.mxu0 0
      %2642 = vmatmul.mubr.bf16.gmra.mrb[0].mxu0 %v2598
      %v2643 = vpop.f32.mrb[0].mxu0
      %v2644 = vadd.f32 0.0, %v2643
      %v2645 = vpop.f32.mrb[0].mxu0
      %v2646 = vpop.f32.mrb[0].mxu0
      %v2647 = vadd.f32 0.0, %v2646
      %v2648 = vpop.f32.mrb[0].mxu0
      %2649 = vmatprep.mubr.bf16.mxu0 0
      %2650 = vmatmul.mubr.bf16.gmra.mrb[0].mxu0 %v2601
      %v2651 = vpop.f32.mrb[0].mxu0
      %v2652 = vadd.f32 0.0, %v2651
      %v2653 = vpop.f32.mrb[0].mxu0
      %v2654 = vpop.f32.mrb[0].mxu0
      %v2655 = vadd.f32 0.0, %v2654
      %v2656 = vpop.f32.mrb[0].mxu0
      %2657 = vmatprep.mubr.bf16.mxu0 0
      %2658 = vmatmul.mubr.bf16.gmra.mrb[0].mxu0 %v2604
      %v2659 = vpop.f32.mrb[0].mxu0
      %v2660 = vadd.f32 0.0, %v2659
      %v2661 = vpop.f32.mrb[0].mxu0
      %v2662 = vpop.f32.mrb[0].mxu0
      %v2663 = vadd.f32 0.0, %v2662
      %v2664 = vpop.f32.mrb[0].mxu0
      %2665 = vmatprep.mubr.bf16.mxu0 0
      %2666 = vmatmul.mubr.bf16.gmra.mrb[0].mxu0 %v2607
      %v2667 = vpop.f32.mrb[0].mxu0
      %v2668 = vadd.f32 0.0, %v2667
      %v2669 = vpop.f32.mrb[0].mxu0
      %v2670 = vpop.f32.mrb[0].mxu0
      %v2671 = vadd.f32 0.0, %v2670
      %v2672 = vpop.f32.mrb[0].mxu0
      %2673 = vdwg.mxu0
      %v2674 = vadd.f32 %v2507, %v2644
      %v2675 = vadd.f32 %v2508, %v2647
      %v2676 = vadd.f32 %v2509, %v2652
      %v2677 = vadd.f32 %v2510, %v2655
      %v2678 = vadd.f32 %v2511, %v2660
      %v2679 = vadd.f32 %v2512, %v2663
      %v2680 = vadd.f32 %v2513, %v2668
      %v2681 = vadd.f32 %v2514, %v2671
      %v2682 = vsel %vm1017, %v1992, 0
      %2684 = vmatprep.subr.bf16.mxu0 0
      %2685 = vmatpush1.bf16.msra.mxu0 %v2682
      %2686 = vmatprep.subr.bf16.mxu0 0
      %2687 = vmatpush1.bf16.msra.mxu0 0
      %2688 = vmatprep.subr.bf16.mxu0 0
      %2689 = vmatpush1.bf16.msra.mxu0 0
      %2690 = vmatprep.subr.bf16.mxu0 0
      %2691 = vmatpush1.bf16.msra.mxu0 0
      %2692 = vmatprep.subr.bf16.mxu0 0
      %2693 = vmatpush1.bf16.msra.mxu0 0
      %2694 = vmatprep.subr.bf16.mxu0 0
      %2695 = vmatpush1.bf16.msra.mxu0 0
      %2696 = vmatprep.subr.bf16.mxu0 0
      %2697 = vmatpush1.bf16.msra.mxu0 0
      %2698 = vmatprep.subr.bf16.mxu0 0
      %2699 = vmatpush1.bf16.msra.mxu0 0
      %2700 = vmatprep.subr.bf16.mxu0 0
      %2701 = vmatpush1.bf16.msra.mxu0 0
      %2702 = vmatprep.subr.bf16.mxu0 0
      %2703 = vmatpush1.bf16.msra.mxu0 0
      %2704 = vmatprep.subr.bf16.mxu0 0
      %2705 = vmatpush1.bf16.msra.mxu0 0
      %2706 = vmatprep.subr.bf16.mxu0 0
      %2707 = vmatpush1.bf16.msra.mxu0 0
      %2708 = vmatprep.subr.bf16.mxu0 0
      %2709 = vmatpush1.bf16.msra.mxu0 0
      %2710 = vmatprep.subr.bf16.mxu0 0
      %2711 = vmatpush1.bf16.msra.mxu0 0
      %2712 = vmatprep.subr.bf16.mxu0 0
      %2713 = vmatpush1.bf16.msra.mxu0 0
      %2714 = vmatprep.subr.bf16.mxu0 0
      %2715 = vmatpush1.bf16.msra.mxu0 0
      %2716 = vmatprep.mubr.bf16.mxu0 0
      %2717 = vmatmul.mubr.bf16.gmra.mrb[0].mxu0 %v2137
      %v2718 = vpop.f32.mrb[0].mxu0
      %v2719 = vadd.f32 0.0, %v2718
      %v2720 = vpop.f32.mrb[0].mxu0
      %v2721 = vpop.f32.mrb[0].mxu0
      %v2722 = vadd.f32 0.0, %v2721
      %v2723 = vpop.f32.mrb[0].mxu0
      %2724 = vmatprep.mubr.bf16.mxu0 0
      %2725 = vmatmul.mubr.bf16.gmra.mrb[0].mxu0 %v2140
      %v2726 = vpop.f32.mrb[0].mxu0
      %v2727 = vadd.f32 0.0, %v2726
      %v2728 = vpop.f32.mrb[0].mxu0
      %v2729 = vpop.f32.mrb[0].mxu0
      %v2730 = vadd.f32 0.0, %v2729
      %v2731 = vpop.f32.mrb[0].mxu0
      %2732 = vdwg.mxu0
      %v2733 = vpack.c.bf16 %v2722, %v2719
      %v2734 = vpack.c.bf16 %v2730, %v2727
      %s2735 = scalar_lea.vmem %s7, 96
      %v2736 = vld [vmem:[%s2735] sm:$0xf]
      %v2737 = vld [vmem:[%s2735 + $0x4] sm:$0xf]
      %v2738 = vld [vmem:[%s2735 + $0x8] sm:$0xf]
      %v2739 = vld [vmem:[%s2735 + $0xc] sm:$0xf]
      %v2740 = vld [vmem:[%s2735 + $0x10] sm:$0xf]
      %v2741 = vld [vmem:[%s2735 + $0x14] sm:$0xf]
      %v2742 = vld [vmem:[%s2735 + $0x18] sm:$0xf]
      %v2743 = vld [vmem:[%s2735 + $0x1c] sm:$0xf]
      %v2752 = vunpack.c.l.b16 %v2736
      %v2753 = vunpack.c.l.b16 %v2737
      %v2754 = vunpack.c.l.b16 %v2738
      %v2755 = vunpack.c.l.b16 %v2739
      %v2756 = vunpack.c.l.b16 %v2740
      %v2757 = vunpack.c.l.b16 %v2741
      %v2758 = vunpack.c.l.b16 %v2742
      %v2759 = vunpack.c.l.b16 %v2743
      %v2760 = vpack.c.b16 %v2753, %v2752
      %v2761 = vpack.c.b16 %v2755, %v2754
      %v2762 = vpack.c.b16 %v2757, %v2756
      %v2763 = vpack.c.b16 %v2759, %v2758
      %v2765 = vsel %vm1089, %v2760, 0
      %v2768 = vsel %vm1089, %v2761, 0
      %v2771 = vsel %vm1089, %v2762, 0
      %v2774 = vsel %vm1089, %v2763, 0
      %2776 = vmatprep.subr.bf16.mxu0 0
      %2777 = vmatpush1.bf16.msra.mxu0 %v2733
      %2778 = vmatprep.subr.bf16.mxu0 0
      %2779 = vmatpush1.bf16.msra.mxu0 %v2734
      %2780 = vmatprep.subr.bf16.mxu0 0
      %2781 = vmatpush1.bf16.msra.mxu0 0
      %2782 = vmatprep.subr.bf16.mxu0 0
      %2783 = vmatpush1.bf16.msra.mxu0 0
      %2784 = vmatprep.subr.bf16.mxu0 0
      %2785 = vmatpush1.bf16.msra.mxu0 0
      %2786 = vmatprep.subr.bf16.mxu0 0
      %2787 = vmatpush1.bf16.msra.mxu0 0
      %2788 = vmatprep.subr.bf16.mxu0 0
      %2789 = vmatpush1.bf16.msra.mxu0 0
      %2790 = vmatprep.subr.bf16.mxu0 0
      %2791 = vmatpush1.bf16.msra.mxu0 0
      %2792 = vmatprep.subr.bf16.mxu0 0
      %2793 = vmatpush1.bf16.msra.mxu0 0
      %2794 = vmatprep.subr.bf16.mxu0 0
      %2795 = vmatpush1.bf16.msra.mxu0 0
      %2796 = vmatprep.subr.bf16.mxu0 0
      %2797 = vmatpush1.bf16.msra.mxu0 0
      %2798 = vmatprep.subr.bf16.mxu0 0
      %2799 = vmatpush1.bf16.msra.mxu0 0
      %2800 = vmatprep.subr.bf16.mxu0 0
      %2801 = vmatpush1.bf16.msra.mxu0 0
      %2802 = vmatprep.subr.bf16.mxu0 0
      %2803 = vmatpush1.bf16.msra.mxu0 0
      %2804 = vmatprep.subr.bf16.mxu0 0
      %2805 = vmatpush1.bf16.msra.mxu0 0
      %2806 = vmatprep.subr.bf16.mxu0 0
      %2807 = vmatpush1.bf16.msra.mxu0 0
      %2808 = vmatprep.mubr.bf16.mxu0 0
      %2809 = vmatmul.mubr.bf16.gmra.mrb[0].mxu0 %v2765
      %v2810 = vpop.f32.mrb[0].mxu0
      %v2811 = vadd.f32 0.0, %v2810
      %v2812 = vpop.f32.mrb[0].mxu0
      %v2813 = vpop.f32.mrb[0].mxu0
      %v2814 = vadd.f32 0.0, %v2813
      %v2815 = vpop.f32.mrb[0].mxu0
      %2816 = vmatprep.mubr.bf16.mxu0 0
      %2817 = vmatmul.mubr.bf16.gmra.mrb[0].mxu0 %v2768
      %v2818 = vpop.f32.mrb[0].mxu0
      %v2819 = vadd.f32 0.0, %v2818
      %v2820 = vpop.f32.mrb[0].mxu0
      %v2821 = vpop.f32.mrb[0].mxu0
      %v2822 = vadd.f32 0.0, %v2821
      %v2823 = vpop.f32.mrb[0].mxu0
      %2824 = vmatprep.mubr.bf16.mxu0 0
      %2825 = vmatmul.mubr.bf16.gmra.mrb[0].mxu0 %v2771
      %v2826 = vpop.f32.mrb[0].mxu0
      %v2827 = vadd.f32 0.0, %v2826
      %v2828 = vpop.f32.mrb[0].mxu0
      %v2829 = vpop.f32.mrb[0].mxu0
      %v2830 = vadd.f32 0.0, %v2829
      %v2831 = vpop.f32.mrb[0].mxu0
      %2832 = vmatprep.mubr.bf16.mxu0 0
      %2833 = vmatmul.mubr.bf16.gmra.mrb[0].mxu0 %v2774
      %v2834 = vpop.f32.mrb[0].mxu0
      %v2835 = vadd.f32 0.0, %v2834
      %v2836 = vpop.f32.mrb[0].mxu0
      %v2837 = vpop.f32.mrb[0].mxu0
      %v2838 = vadd.f32 0.0, %v2837
      %v2839 = vpop.f32.mrb[0].mxu0
      %2840 = vdwg.mxu0
      %v2841 = vadd.f32 %v2674, %v2811
      %v2842 = vadd.f32 %v2675, %v2814
      %v2843 = vadd.f32 %v2676, %v2819
      %v2844 = vadd.f32 %v2677, %v2822
      %v2845 = vadd.f32 %v2678, %v2827
      %v2846 = vadd.f32 %v2679, %v2830
      %v2847 = vadd.f32 %v2680, %v2835
      %v2848 = vadd.f32 %v2681, %v2838
      %vm2849 = vcmask 113664
      %2850 = vst.msk [vmem:[%s332] sm:$0xff] %vm2849, %v2841
      %2851 = vst.msk [vmem:[%s332 + $0x8] sm:$0xff] %vm2849, %v2842
      %2852 = vst.msk [vmem:[%s332 + $0x10] sm:$0xff] %vm2849, %v2843
      %2853 = vst.msk [vmem:[%s332 + $0x18] sm:$0xff] %vm2849, %v2844
      %2854 = vst.msk [vmem:[%s332 + $0x20] sm:$0xff] %vm2849, %v2845
      %2855 = vst.msk [vmem:[%s332 + $0x28] sm:$0xff] %vm2849, %v2846
      %2856 = vst.msk [vmem:[%s332 + $0x30] sm:$0xff] %vm2849, %v2847
      %2857 = vst.msk [vmem:[%s332 + $0x38] sm:$0xff] %vm2849, %v2848
      %p2858 = scmp.lt.s32.totalorder %s20, 1
      %s2859 = scalar_select %p2858, %s20, 1
      %s2860 = smul.addr %s2859, 8
      %s2861 = smul.addr %s2860, 8
      %s2862 = scalar_lea.vmem %s9, %s2861
      // Predicated region
      $region57: #{lis2img_forward.1} parent=55 // pred_check
        %p2863 = pneg %p232
      $region58: #{lis2img_forward.1} parent=55 // pred_check_branch
        %2865 = sbr.rel (%p2863) target = $region60
      $region59: #{lis2img_forward.1} parent=55 // pred_region
        _
      $region60: #{lis2img_forward.1} parent=55 // pred_fallthru
        _
    $region56: #{lis2img_forward.1} parent=5 // pred_fallthru
      _
    %p2866 = scmp.le.s32.totalorder 2, %s15
    // Predicated region
    $region61: #{lis2img_forward.1} parent=5 // pred_check
      %p2867 = pneg %p2866
    $region62: #{lis2img_forward.1} parent=5 // pred_check_branch
      %2869 = sbr.rel (%p2867) target = $region64
    $region63: #{lis2img_forward.1} parent=5 // pred_region
      %s2870 = ssub.s32 %s15, 2
      // Predicated region
      $region65: #{lis2img_forward.1} parent=63 // pred_check
        %p2871 = pneg %p238
      $region66: #{lis2img_forward.1} parent=63 // pred_check_branch
        %2873 = sbr.rel (%p2871) target = $region68
      $region67: #{lis2img_forward.1} parent=63 // pred_region
        %p2874 = scmp.lt.s32.totalorder %s21, 1
        %s2875 = scalar_select %p2874, %s21, 1
        %s2876 = smul.addr %s2875, 8
        %s2877 = smul.addr %s2876, 8
        %s2878 = scalar_lea.vmem %s9, %s2877
      $region68: #{lis2img_forward.1} parent=63 // pred_fallthru
        _
    $region64: #{lis2img_forward.1} parent=5 // pred_fallthru
      _
  $region6: #{lis2img_forward.1} parent=0 // loop_footer
    %s19 = sadd.s32 1, %s15
  $region7: #{lis2img_forward.1} parent=0 // loop_footer_branch
    %14 = sbr.rel target = $region3
  $region8: #{lis2img_forward.1} parent=0 // loop_exit
    _

</llo_original>
